<compile_context>
chip_gen: v7x
topology: tpu7x:2x2x1
jax: 0.10.0
libtpu: 0.0.40
codegen_flags: <defaults>
</compile_context>

<pallas_src>
import functools
import math

import jax
import jax.numpy as jnp
from jax.experimental import pallas as pl
from jax.experimental.pallas import tpu as pltpu


# ----------------------------------------------------------------------------
# Fused kernel: PE add + the whole attention stack, VMEM-resident activations.
# ----------------------------------------------------------------------------
def fused_stack_kernel(x_ref, pe_ref, cq_ref, wqkv_ref, wo_ref, o_ref, *,
                       num_layers, mid_idx, num_heads, add_pos):
    Bb, T, D = x_ref.shape
    H = num_heads
    hd = D // H
    cdt = wqkv_ref.dtype                       # compute dtype (bf16 weights)

    h = x_ref[...].astype(jnp.float32)         # (Bb, T, D)
    if add_pos:
        h = h + pe_ref[...].astype(jnp.float32)

    # TODO(synk): for large num_layers, stream per-layer weights (layer grid
    # axis / fori_loop) instead of this static unroll + fully-resident stacks
    # (important for v7x's 64 MiB VMEM when D*L grows).
    for li in range(num_layers):               # static unroll (L is small)
        w_qkv = wqkv_ref[li]                   # (D, 3D) bf16
        w_o = wo_ref[li]                       # (D, D)  bf16
        Lkv = h.shape[1]
        h2 = h.reshape(Bb * Lkv, D).astype(cdt)

        if li == mid_idx:
            # cross-attention layer: learned query (shared across rows).
            kv = jnp.dot(h2, w_qkv[:, D:],
                         preferred_element_type=jnp.float32)      # (Bb*Lkv, 2D)
            k2, v2 = kv[:, :D], kv[:, D:]
            qq = jnp.dot(cq_ref[...], w_qkv[:, :D],
                         preferred_element_type=jnp.float32)      # (CQ, D)
            Lq = cq_ref.shape[0]
            q3 = jnp.broadcast_to(qq[None], (Bb, Lq, D))
        else:
            # self-attention: ONE fused lane-dense QKV matmul (K=D, N=3D).
            qkv = jnp.dot(h2, w_qkv,
                          preferred_element_type=jnp.float32)     # (Bb*Lkv, 3D)
            q3 = qkv[:, :D].reshape(Bb, Lkv, D)
            k2, v2 = qkv[:, D:2 * D], qkv[:, 2 * D:]
            Lq = Lkv

        k3 = k2.reshape(Bb, Lkv, D)
        v3 = v2.reshape(Bb, Lkv, D)

        # Per-head attention (scale already folded into the Q weights).
        o_heads = []
        for hi in range(H):
            sl = slice(hi * hd, (hi + 1) * hd)
            qh = q3[:, :, sl].astype(cdt)                          # (Bb, Lq, hd)
            kh = k3[:, :, sl].astype(cdt)                          # (Bb, T,  hd)
            vh = v3[:, :, sl].astype(cdt)
            s = jnp.einsum('blk,btk->blt', qh, kh,
                           preferred_element_type=jnp.float32)     # (Bb, Lq, T)
            s = s - jnp.max(s, axis=-1, keepdims=True)
            p = jnp.exp(s)
            p = p / jnp.sum(p, axis=-1, keepdims=True)             # exact softmax
            oh = jnp.einsum('blt,btk->blk', p.astype(cdt), vh,
                            preferred_element_type=jnp.float32)    # (Bb, Lq, hd)
            o_heads.append(oh)

        # Concat heads along lanes, then ONE lane-dense output projection
        # (K = H*hd = D) — replaces per-head W_o matmuls + head-sum.
        o = jnp.concatenate(o_heads, axis=-1)                      # (Bb, Lq, D)
        h = jnp.dot(o.reshape(Bb * Lq, D).astype(cdt), w_o,
                    preferred_element_type=jnp.float32).reshape(Bb, Lq, D)

    o_ref[...] = h.astype(o_ref.dtype)


# ----------------------------------------------------------------------------
# Wrapper (pallas_call plumbing)
# ----------------------------------------------------------------------------
def cross_attention_fusion_forward(params, x, *, num_heads, add_pos=True,
                                   rows_per_step=None):
    B, T, D = x.shape
    assert D % num_heads == 0 and D % 128 == 0, "feat_dim should be a multiple of 128"

    wqkv = params["wqkv"]                       # (L, D, 3D) bf16 (built at init)
    wo = params["wo"]                           # (L, D, D)  bf16
    cq = params["custom_query"]                 # (CQ, D)    bf16
    pe = params["pe"][:T]                       # (T, D)     f32
    L = wqkv.shape[0]
    CQ = cq.shape[0]
    mid_idx = L // 2                            # middle layer uses the learned query

    # Rows per grid step: fill MXU M-rows / amortize step overhead, but keep
    # >= 4 grid steps when possible (>= 2 per v7x TensorCore for pipelining).
    if rows_per_step is None:
        min_steps = min(4, B)
        rows_per_step = max(d for d in range(1, B + 1)
                            if B % d == 0 and B // d >= min_steps)
    Bb = rows_per_step
    assert B % Bb == 0
    grid = (B // Bb,)

    kernel = functools.partial(fused_stack_kernel, num_layers=L, mid_idx=mid_idx,
                               num_heads=num_heads, add_pos=add_pos)

    inv2 = lambda b: (0, 0)                     # grid-invariant (VMEM-resident)
    inv3 = lambda b: (0, 0, 0)

    return pl.pallas_call(
        kernel,
        out_shape=jax.ShapeDtypeStruct((B, CQ, D), x.dtype),
        grid=grid,
        in_specs=[
            pl.BlockSpec((Bb, T, D), lambda b: (b, 0, 0)),         # x rows
            pl.BlockSpec((T, D), inv2),                            # PE table
            pl.BlockSpec((CQ, D), inv2),                           # learned query
            pl.BlockSpec((L, D, 3 * D), inv3),                     # fused Wqkv stack
            pl.BlockSpec((L, D, D), inv3),                         # Wo stack
        ],
        out_specs=pl.BlockSpec((Bb, CQ, D), lambda b: (b, 0, 0)),
        compiler_params=pltpu.CompilerParams(
            dimension_semantics=("parallel",),
            vmem_limit_bytes=32 * 1024 * 1024),
    )(x, pe, cq, wqkv, wo)


# ----------------------------------------------------------------------------
# Module parameters (weight stacks built ONCE here, not per forward call)
# ----------------------------------------------------------------------------
def make_sinusoidal_pe(max_len, d_model):
    pos = jnp.arange(max_len, dtype=jnp.float32)[:, None]
    i = jnp.arange(0, d_model, 2, dtype=jnp.float32)[None, :]
    div = jnp.exp(-math.log(10000.0) * i / d_model)
    ang = pos * div
    pe = jnp.zeros((max_len, d_model), jnp.float32)
    pe = pe.at[:, 0::2].set(jnp.sin(ang))
    pe = pe.at[:, 1::2].set(jnp.cos(ang))
    return pe


def init_cross_attention_fusion(key, feat_dim, max_tokens, custom_query_length,
                                num_layers, num_heads,
                                param_dtype=jnp.bfloat16):
    assert num_layers % 2 == 1, "num_layers must be an odd number"
    num_layers -= 1
    half = num_layers // 2
    total = 2 * half + 1
    D = feat_dim
    hd = D // num_heads
    w_scale = 1.0 / math.sqrt(D)
    qk_scale = 1.0 / math.sqrt(hd)              # folded into Wq (free at runtime)

    wqkv_list, wo_list = [], []
    for _ in range(total):
        key, kq, kk, kv_, ko = jax.random.split(key, 5)
        wq = jax.random.normal(kq, (D, D), jnp.float32) * w_scale
        wk = jax.random.normal(kk, (D, D), jnp.float32) * w_scale
        wv = jax.random.normal(kv_, (D, D), jnp.float32) * w_scale
        wo = jax.random.normal(ko, (D, D), jnp.float32) * w_scale
        wqkv_list.append(jnp.concatenate([wq * qk_scale, wk, wv], axis=1))
        wo_list.append(wo)
    key, kcq = jax.random.split(key)
    cq = jax.random.normal(kcq, (custom_query_length, D), jnp.float32) * w_scale

    return {
        "pe": make_sinusoidal_pe(max_tokens, D),                    # f32
        "wqkv": jnp.stack(wqkv_list).astype(param_dtype),           # (L, D, 3D)
        "wo": jnp.stack(wo_list).astype(param_dtype),               # (L, D, D)
        "custom_query": cq.astype(param_dtype),                     # (CQ, D)
    }


# ----------------------------------------------------------------------------
# Pure-JAX reference (mirrors the kernel's bf16/f32 cast pattern)
# ----------------------------------------------------------------------------
def _ref_forward(params, x, *, num_heads, add_pos=True):
    B, T, D = x.shape
    H = num_heads
    hd = D // H
    L = params["wqkv"].shape[0]
    mid = L // 2
    cdt = params["wqkv"].dtype

    h = x.astype(jnp.float32)
    if add_pos:
        h = h + params["pe"][:T][None].astype(jnp.float32)

    for li in range(L):
        wqkv = params["wqkv"][li]
        wo = params["wo"][li]
        Lkv = h.shape[1]
        hc = h.astype(cdt)
        if li == mid:
            q = jnp.einsum('ld,de->le', params["custom_query"], wqkv[:, :D],
                           preferred_element_type=jnp.float32)
            q = jnp.broadcast_to(q[None], (B,) + q.shape)
        else:
            q = jnp.einsum('btd,de->bte', hc, wqkv[:, :D],
                           preferred_element_type=jnp.float32)
        k = jnp.einsum('btd,de->bte', hc, wqkv[:, D:2 * D],
                       preferred_element_type=jnp.float32)
        v = jnp.einsum('btd,de->bte', hc, wqkv[:, 2 * D:],
                       preferred_element_type=jnp.float32)
        Lq = q.shape[1]
        qh = q.reshape(B, Lq, H, hd).transpose(0, 2, 1, 3).astype(cdt)
        kh = k.reshape(B, Lkv, H, hd).transpose(0, 2, 1, 3).astype(cdt)
        vh = v.reshape(B, Lkv, H, hd).transpose(0, 2, 1, 3).astype(cdt)
        s = jnp.einsum('bhld,bhtd->bhlt', qh, kh,
                       preferred_element_type=jnp.float32)          # scale folded in Wq
        p = jax.nn.softmax(s, axis=-1)
        o = jnp.einsum('bhlt,bhtd->bhld', p.astype(cdt), vh,
                       preferred_element_type=jnp.float32)
        o = o.transpose(0, 2, 1, 3).reshape(B, Lq, D).astype(cdt)
        h = jnp.einsum('bld,de->ble', o, wo,
                       preferred_element_type=jnp.float32)
    return h


# ----------------------------------------------------------------------------
if __name__ == "__main__":
    B = 8             # batch rows (grid auto-blocks to 2 rows/step -> 4 steps)
    T = 16            # input tokens
    D = 128           # feat_dim (multiple of 128 -> lane-dense matmuls/stores)
    MAX_TOKENS = 32
    CUSTOM_Q_LEN = 8
    NUM_LAYERS = 3    # odd -> 1 self-attn, 1 custom-query attn, 1 self-attn
    NUM_HEADS = 4

    key = jax.random.PRNGKey(0)
    kx, kp = jax.random.split(key)
    x = jax.random.normal(kx, (B, T, D), jnp.float32)

    params = init_cross_attention_fusion(kp, D, MAX_TOKENS, CUSTOM_Q_LEN,
                                         NUM_LAYERS, NUM_HEADS)

    out = cross_attention_fusion_forward(params, x, num_heads=NUM_HEADS,
                                         add_pos=True)
    out = jax.block_until_ready(out)

    ref = _ref_forward(params, x, num_heads=NUM_HEADS, add_pos=True)
    assert out.shape == (B, CUSTOM_Q_LEN, D), out.shape
    err = float(jnp.max(jnp.abs(out - ref)))
    assert jnp.allclose(out, ref, rtol=2e-2, atol=2e-2), f"mismatch: {err}"

    print("KERNEL_OK")
</pallas_src>

<mosaic_0001>
module attributes {stable_mosaic.version = 11 : i64} {
  func.func @fused_stack_kernel(%arg0: i32, %arg1: memref<2x16x128xf32, #tpu.memory_space<vmem>>, %arg2: memref<16x128xf32, #tpu.memory_space<vmem>>, %arg3: memref<8x128xbf16, #tpu.memory_space<vmem>>, %arg4: memref<3x128x384xbf16, #tpu.memory_space<vmem>>, %arg5: memref<3x128x128xbf16, #tpu.memory_space<vmem>>, %arg6: memref<2x8x128xf32, #tpu.memory_space<vmem>>) attributes {dimension_semantics = [#tpu.dimension_semantics<parallel>], iteration_bounds = array<i64: 4>, scalar_prefetch = 0 : i64, scratch_operands = 0 : i64, tpu.core_type = #tpu.core_type<tc>, window_params = [{transform_indices = @transform_0, window_bounds = array<i64: 2, 16, 128>}, {pipeline_mode = #tpu.pipeline_mode<synchronous>, transform_indices = @transform_1, window_bounds = array<i64: 16, 128>}, {pipeline_mode = #tpu.pipeline_mode<synchronous>, transform_indices = @transform_2, window_bounds = array<i64: 8, 128>}, {pipeline_mode = #tpu.pipeline_mode<synchronous>, transform_indices = @transform_3, window_bounds = array<i64: 3, 128, 384>}, {pipeline_mode = #tpu.pipeline_mode<synchronous>, transform_indices = @transform_4, window_bounds = array<i64: 3, 128, 128>}, {transform_indices = @transform_5, window_bounds = array<i64: 2, 8, 128>}]} {
    %c0 = arith.constant 0 : index
    %c0_0 = arith.constant 0 : index
    %c0_1 = arith.constant 0 : index
    %0 = vector.load %arg1[%c0, %c0_0, %c0_1] : memref<2x16x128xf32, #tpu.memory_space<vmem>>, vector<2x16x128xf32>
    %c0_2 = arith.constant 0 : index
    %c0_3 = arith.constant 0 : index
    %1 = vector.load %arg2[%c0_2, %c0_3] : memref<16x128xf32, #tpu.memory_space<vmem>>, vector<16x128xf32>
    %2 = vector.shape_cast %1 : vector<16x128xf32> to vector<1x16x128xf32>
    %3 = vector.broadcast %2 : vector<1x16x128xf32> to vector<2x16x128xf32>
    %4 = arith.addf %0, %3 : vector<2x16x128xf32>
    %c0_4 = arith.constant 0 : index
    %c0_5 = arith.constant 0 : index
    %c0_6 = arith.constant 0 : index
    %5 = vector.load %arg4[%c0_4, %c0_5, %c0_6] : memref<3x128x384xbf16, #tpu.memory_space<vmem>>, vector<1x128x384xbf16>
    %6 = vector.shape_cast %5 : vector<1x128x384xbf16> to vector<128x384xbf16>
    %c0_7 = arith.constant 0 : index
    %c0_8 = arith.constant 0 : index
    %c0_9 = arith.constant 0 : index
    %7 = vector.load %arg5[%c0_7, %c0_8, %c0_9] : memref<3x128x128xbf16, #tpu.memory_space<vmem>>, vector<1x128x128xbf16>
    %8 = vector.shape_cast %7 : vector<1x128x128xbf16> to vector<128x128xbf16>
    %9 = vector.shape_cast %4 : vector<2x16x128xf32> to vector<32x128xf32>
    %10 = arith.truncf %9 : vector<32x128xf32> to vector<32x128xbf16>
    %cst = arith.constant dense<0.000000e+00> : vector<32x384xf32>
    %11 = tpu.matmul %10, %6, %cst {dimension_numbers = #tpu.dot_dimension_numbers<[1], [0], [0], [1], [0, 0, 1, 1], [], []>} : vector<32x128xbf16>, vector<128x384xbf16>, vector<32x384xf32> -> vector<32x384xf32>
    %12 = vector.extract_strided_slice %11 {offsets = [0, 0], sizes = [32, 128], strides = [1, 1]} : vector<32x384xf32> to vector<32x128xf32>
    %13 = vector.shape_cast %12 : vector<32x128xf32> to vector<2x16x128xf32>
    %14 = vector.extract_strided_slice %11 {offsets = [0, 128], sizes = [32, 128], strides = [1, 1]} : vector<32x384xf32> to vector<32x128xf32>
    %15 = vector.extract_strided_slice %11 {offsets = [0, 256], sizes = [32, 128], strides = [1, 1]} : vector<32x384xf32> to vector<32x128xf32>
    %16 = vector.shape_cast %14 : vector<32x128xf32> to vector<2x16x128xf32>
    %17 = vector.shape_cast %15 : vector<32x128xf32> to vector<2x16x128xf32>
    %18 = vector.extract_strided_slice %13 {offsets = [0, 0, 0], sizes = [2, 16, 32], strides = [1, 1, 1]} : vector<2x16x128xf32> to vector<2x16x32xf32>
    %19 = arith.truncf %18 : vector<2x16x32xf32> to vector<2x16x32xbf16>
    %20 = vector.extract_strided_slice %16 {offsets = [0, 0, 0], sizes = [2, 16, 32], strides = [1, 1, 1]} : vector<2x16x128xf32> to vector<2x16x32xf32>
    %21 = arith.truncf %20 : vector<2x16x32xf32> to vector<2x16x32xbf16>
    %22 = vector.extract_strided_slice %17 {offsets = [0, 0, 0], sizes = [2, 16, 32], strides = [1, 1, 1]} : vector<2x16x128xf32> to vector<2x16x32xf32>
    %23 = arith.truncf %22 : vector<2x16x32xf32> to vector<2x16x32xbf16>
    "tpu.trace_start"() <{level = 10 : i32, message = "blk,btk->blt"}> : () -> ()
    %cst_10 = arith.constant dense<0.000000e+00> : vector<2x16x16xf32>
    %24 = tpu.matmul %19, %21, %cst_10 {dimension_numbers = #tpu.dot_dimension_numbers<[2], [2], [1], [1], [0, 0, 0, 1, 1, 1], [0], [0]>} : vector<2x16x32xbf16>, vector<2x16x32xbf16>, vector<2x16x16xf32> -> vector<2x16x16xf32>
    "tpu.trace_stop"() : () -> ()
    %cst_11 = arith.constant dense<0xFF800000> : vector<2x16xf32>
    %25 = vector.multi_reduction <maximumf>, %24, %cst_11 [2] : vector<2x16x16xf32> to vector<2x16xf32>
    %26 = vector.shape_cast %25 : vector<2x16xf32> to vector<2x16x1xf32>
    %27 = vector.broadcast %26 : vector<2x16x1xf32> to vector<2x16x16xf32>
    %28 = arith.subf %24, %27 : vector<2x16x16xf32>
    %29 = math.exp %28 : vector<2x16x16xf32>
    %cst_12 = arith.constant dense<0.000000e+00> : vector<2x16xf32>
    %30 = vector.multi_reduction <add>, %29, %cst_12 [2] : vector<2x16x16xf32> to vector<2x16xf32>
    %31 = vector.shape_cast %30 : vector<2x16xf32> to vector<2x16x1xf32>
    %32 = vector.broadcast %31 : vector<2x16x1xf32> to vector<2x16x16xf32>
    %33 = arith.divf %29, %32 : vector<2x16x16xf32>
    %34 = arith.truncf %33 : vector<2x16x16xf32> to vector<2x16x16xbf16>
    "tpu.trace_start"() <{level = 10 : i32, message = "blt,btk->blk"}> : () -> ()
    %cst_13 = arith.constant dense<0.000000e+00> : vector<2x16x32xf32>
    %35 = tpu.matmul %34, %23, %cst_13 {dimension_numbers = #tpu.dot_dimension_numbers<[2], [1], [1], [2], [0, 0, 0, 1, 1, 2], [0], [0]>} : vector<2x16x16xbf16>, vector<2x16x32xbf16>, vector<2x16x32xf32> -> vector<2x16x32xf32>
    "tpu.trace_stop"() : () -> ()
    %36 = vector.extract_strided_slice %13 {offsets = [0, 0, 32], sizes = [2, 16, 32], strides = [1, 1, 1]} : vector<2x16x128xf32> to vector<2x16x32xf32>
    %37 = arith.truncf %36 : vector<2x16x32xf32> to vector<2x16x32xbf16>
    %38 = vector.extract_strided_slice %16 {offsets = [0, 0, 32], sizes = [2, 16, 32], strides = [1, 1, 1]} : vector<2x16x128xf32> to vector<2x16x32xf32>
    %39 = arith.truncf %38 : vector<2x16x32xf32> to vector<2x16x32xbf16>
    %40 = vector.extract_strided_slice %17 {offsets = [0, 0, 32], sizes = [2, 16, 32], strides = [1, 1, 1]} : vector<2x16x128xf32> to vector<2x16x32xf32>
    %41 = arith.truncf %40 : vector<2x16x32xf32> to vector<2x16x32xbf16>
    "tpu.trace_start"() <{level = 10 : i32, message = "blk,btk->blt"}> : () -> ()
    %cst_14 = arith.constant dense<0.000000e+00> : vector<2x16x16xf32>
    %42 = tpu.matmul %37, %39, %cst_14 {dimension_numbers = #tpu.dot_dimension_numbers<[2], [2], [1], [1], [0, 0, 0, 1, 1, 1], [0], [0]>} : vector<2x16x32xbf16>, vector<2x16x32xbf16>, vector<2x16x16xf32> -> vector<2x16x16xf32>
    "tpu.trace_stop"() : () -> ()
    %cst_15 = arith.constant dense<0xFF800000> : vector<2x16xf32>
    %43 = vector.multi_reduction <maximumf>, %42, %cst_15 [2] : vector<2x16x16xf32> to vector<2x16xf32>
    %44 = vector.shape_cast %43 : vector<2x16xf32> to vector<2x16x1xf32>
    %45 = vector.broadcast %44 : vector<2x16x1xf32> to vector<2x16x16xf32>
    %46 = arith.subf %42, %45 : vector<2x16x16xf32>
    %47 = math.exp %46 : vector<2x16x16xf32>
    %cst_16 = arith.constant dense<0.000000e+00> : vector<2x16xf32>
    %48 = vector.multi_reduction <add>, %47, %cst_16 [2] : vector<2x16x16xf32> to vector<2x16xf32>
    %49 = vector.shape_cast %48 : vector<2x16xf32> to vector<2x16x1xf32>
    %50 = vector.broadcast %49 : vector<2x16x1xf32> to vector<2x16x16xf32>
    %51 = arith.divf %47, %50 : vector<2x16x16xf32>
    %52 = arith.truncf %51 : vector<2x16x16xf32> to vector<2x16x16xbf16>
    "tpu.trace_start"() <{level = 10 : i32, message = "blt,btk->blk"}> : () -> ()
    %cst_17 = arith.constant dense<0.000000e+00> : vector<2x16x32xf32>
    %53 = tpu.matmul %52, %41, %cst_17 {dimension_numbers = #tpu.dot_dimension_numbers<[2], [1], [1], [2], [0, 0, 0, 1, 1, 2], [0], [0]>} : vector<2x16x16xbf16>, vector<2x16x32xbf16>, vector<2x16x32xf32> -> vector<2x16x32xf32>
    "tpu.trace_stop"() : () -> ()
    %54 = vector.extract_strided_slice %13 {offsets = [0, 0, 64], sizes = [2, 16, 32], strides = [1, 1, 1]} : vector<2x16x128xf32> to vector<2x16x32xf32>
    %55 = arith.truncf %54 : vector<2x16x32xf32> to vector<2x16x32xbf16>
    %56 = vector.extract_strided_slice %16 {offsets = [0, 0, 64], sizes = [2, 16, 32], strides = [1, 1, 1]} : vector<2x16x128xf32> to vector<2x16x32xf32>
    %57 = arith.truncf %56 : vector<2x16x32xf32> to vector<2x16x32xbf16>
    %58 = vector.extract_strided_slice %17 {offsets = [0, 0, 64], sizes = [2, 16, 32], strides = [1, 1, 1]} : vector<2x16x128xf32> to vector<2x16x32xf32>
    %59 = arith.truncf %58 : vector<2x16x32xf32> to vector<2x16x32xbf16>
    "tpu.trace_start"() <{level = 10 : i32, message = "blk,btk->blt"}> : () -> ()
    %cst_18 = arith.constant dense<0.000000e+00> : vector<2x16x16xf32>
    %60 = tpu.matmul %55, %57, %cst_18 {dimension_numbers = #tpu.dot_dimension_numbers<[2], [2], [1], [1], [0, 0, 0, 1, 1, 1], [0], [0]>} : vector<2x16x32xbf16>, vector<2x16x32xbf16>, vector<2x16x16xf32> -> vector<2x16x16xf32>
    "tpu.trace_stop"() : () -> ()
    %cst_19 = arith.constant dense<0xFF800000> : vector<2x16xf32>
    %61 = vector.multi_reduction <maximumf>, %60, %cst_19 [2] : vector<2x16x16xf32> to vector<2x16xf32>
    %62 = vector.shape_cast %61 : vector<2x16xf32> to vector<2x16x1xf32>
    %63 = vector.broadcast %62 : vector<2x16x1xf32> to vector<2x16x16xf32>
    %64 = arith.subf %60, %63 : vector<2x16x16xf32>
    %65 = math.exp %64 : vector<2x16x16xf32>
    %cst_20 = arith.constant dense<0.000000e+00> : vector<2x16xf32>
    %66 = vector.multi_reduction <add>, %65, %cst_20 [2] : vector<2x16x16xf32> to vector<2x16xf32>
    %67 = vector.shape_cast %66 : vector<2x16xf32> to vector<2x16x1xf32>
    %68 = vector.broadcast %67 : vector<2x16x1xf32> to vector<2x16x16xf32>
    %69 = arith.divf %65, %68 : vector<2x16x16xf32>
    %70 = arith.truncf %69 : vector<2x16x16xf32> to vector<2x16x16xbf16>
    "tpu.trace_start"() <{level = 10 : i32, message = "blt,btk->blk"}> : () -> ()
    %cst_21 = arith.constant dense<0.000000e+00> : vector<2x16x32xf32>
    %71 = tpu.matmul %70, %59, %cst_21 {dimension_numbers = #tpu.dot_dimension_numbers<[2], [1], [1], [2], [0, 0, 0, 1, 1, 2], [0], [0]>} : vector<2x16x16xbf16>, vector<2x16x32xbf16>, vector<2x16x32xf32> -> vector<2x16x32xf32>
    "tpu.trace_stop"() : () -> ()
    %72 = vector.extract_strided_slice %13 {offsets = [0, 0, 96], sizes = [2, 16, 32], strides = [1, 1, 1]} : vector<2x16x128xf32> to vector<2x16x32xf32>
    %73 = arith.truncf %72 : vector<2x16x32xf32> to vector<2x16x32xbf16>
    %74 = vector.extract_strided_slice %16 {offsets = [0, 0, 96], sizes = [2, 16, 32], strides = [1, 1, 1]} : vector<2x16x128xf32> to vector<2x16x32xf32>
    %75 = arith.truncf %74 : vector<2x16x32xf32> to vector<2x16x32xbf16>
    %76 = vector.extract_strided_slice %17 {offsets = [0, 0, 96], sizes = [2, 16, 32], strides = [1, 1, 1]} : vector<2x16x128xf32> to vector<2x16x32xf32>
    %77 = arith.truncf %76 : vector<2x16x32xf32> to vector<2x16x32xbf16>
    "tpu.trace_start"() <{level = 10 : i32, message = "blk,btk->blt"}> : () -> ()
    %cst_22 = arith.constant dense<0.000000e+00> : vector<2x16x16xf32>
    %78 = tpu.matmul %73, %75, %cst_22 {dimension_numbers = #tpu.dot_dimension_numbers<[2], [2], [1], [1], [0, 0, 0, 1, 1, 1], [0], [0]>} : vector<2x16x32xbf16>, vector<2x16x32xbf16>, vector<2x16x16xf32> -> vector<2x16x16xf32>
    "tpu.trace_stop"() : () -> ()
    %cst_23 = arith.constant dense<0xFF800000> : vector<2x16xf32>
    %79 = vector.multi_reduction <maximumf>, %78, %cst_23 [2] : vector<2x16x16xf32> to vector<2x16xf32>
    %80 = vector.shape_cast %79 : vector<2x16xf32> to vector<2x16x1xf32>
    %81 = vector.broadcast %80 : vector<2x16x1xf32> to vector<2x16x16xf32>
    %82 = arith.subf %78, %81 : vector<2x16x16xf32>
    %83 = math.exp %82 : vector<2x16x16xf32>
    %cst_24 = arith.constant dense<0.000000e+00> : vector<2x16xf32>
    %84 = vector.multi_reduction <add>, %83, %cst_24 [2] : vector<2x16x16xf32> to vector<2x16xf32>
    %85 = vector.shape_cast %84 : vector<2x16xf32> to vector<2x16x1xf32>
    %86 = vector.broadcast %85 : vector<2x16x1xf32> to vector<2x16x16xf32>
    %87 = arith.divf %83, %86 : vector<2x16x16xf32>
    %88 = arith.truncf %87 : vector<2x16x16xf32> to vector<2x16x16xbf16>
    "tpu.trace_start"() <{level = 10 : i32, message = "blt,btk->blk"}> : () -> ()
    %cst_25 = arith.constant dense<0.000000e+00> : vector<2x16x32xf32>
    %89 = tpu.matmul %88, %77, %cst_25 {dimension_numbers = #tpu.dot_dimension_numbers<[2], [1], [1], [2], [0, 0, 0, 1, 1, 2], [0], [0]>} : vector<2x16x16xbf16>, vector<2x16x32xbf16>, vector<2x16x32xf32> -> vector<2x16x32xf32>
    "tpu.trace_stop"() : () -> ()
    %90 = tpu.concatenate %35, %53, %71, %89 in 2 : vector<2x16x32xf32>, vector<2x16x32xf32>, vector<2x16x32xf32>, vector<2x16x32xf32> -> vector<2x16x128xf32>
    %91 = vector.shape_cast %90 : vector<2x16x128xf32> to vector<32x128xf32>
    %92 = arith.truncf %91 : vector<32x128xf32> to vector<32x128xbf16>
    %cst_26 = arith.constant dense<0.000000e+00> : vector<32x128xf32>
    %93 = tpu.matmul %92, %8, %cst_26 {dimension_numbers = #tpu.dot_dimension_numbers<[1], [0], [0], [1], [0, 0, 1, 1], [], []>} : vector<32x128xbf16>, vector<128x128xbf16>, vector<32x128xf32> -> vector<32x128xf32>
    %94 = vector.shape_cast %93 : vector<32x128xf32> to vector<2x16x128xf32>
    %c1 = arith.constant 1 : index
    %c0_27 = arith.constant 0 : index
    %c0_28 = arith.constant 0 : index
    %95 = vector.load %arg4[%c1, %c0_27, %c0_28] : memref<3x128x384xbf16, #tpu.memory_space<vmem>>, vector<1x128x384xbf16>
    %96 = vector.shape_cast %95 : vector<1x128x384xbf16> to vector<128x384xbf16>
    %c1_29 = arith.constant 1 : index
    %c0_30 = arith.constant 0 : index
    %c0_31 = arith.constant 0 : index
    %97 = vector.load %arg5[%c1_29, %c0_30, %c0_31] : memref<3x128x128xbf16, #tpu.memory_space<vmem>>, vector<1x128x128xbf16>
    %98 = vector.shape_cast %97 : vector<1x128x128xbf16> to vector<128x128xbf16>
    %99 = vector.shape_cast %94 : vector<2x16x128xf32> to vector<32x128xf32>
    %100 = arith.truncf %99 : vector<32x128xf32> to vector<32x128xbf16>
    %101 = vector.extract_strided_slice %96 {offsets = [0, 128], sizes = [128, 256], strides = [1, 1]} : vector<128x384xbf16> to vector<128x256xbf16>
    %cst_32 = arith.constant dense<0.000000e+00> : vector<32x256xf32>
    %102 = tpu.matmul %100, %101, %cst_32 {dimension_numbers = #tpu.dot_dimension_numbers<[1], [0], [0], [1], [0, 0, 1, 1], [], []>} : vector<32x128xbf16>, vector<128x256xbf16>, vector<32x256xf32> -> vector<32x256xf32>
    %103 = vector.extract_strided_slice %102 {offsets = [0, 0], sizes = [32, 128], strides = [1, 1]} : vector<32x256xf32> to vector<32x128xf32>
    %104 = vector.extract_strided_slice %102 {offsets = [0, 128], sizes = [32, 128], strides = [1, 1]} : vector<32x256xf32> to vector<32x128xf32>
    %c0_33 = arith.constant 0 : index
    %c0_34 = arith.constant 0 : index
    %105 = vector.load %arg3[%c0_33, %c0_34] : memref<8x128xbf16, #tpu.memory_space<vmem>>, vector<8x128xbf16>
    %106 = vector.extract_strided_slice %96 {offsets = [0, 0], sizes = [128, 128], strides = [1, 1]} : vector<128x384xbf16> to vector<128x128xbf16>
    %cst_35 = arith.constant dense<0.000000e+00> : vector<8x128xf32>
    %107 = tpu.matmul %105, %106, %cst_35 {dimension_numbers = #tpu.dot_dimension_numbers<[1], [0], [0], [1], [0, 0, 1, 1], [], []>} : vector<8x128xbf16>, vector<128x128xbf16>, vector<8x128xf32> -> vector<8x128xf32>
    %108 = vector.shape_cast %107 : vector<8x128xf32> to vector<1x8x128xf32>
    %109 = vector.shape_cast %108 : vector<1x8x128xf32> to vector<1x8x128xf32>
    %110 = vector.broadcast %109 : vector<1x8x128xf32> to vector<2x8x128xf32>
    %111 = vector.shape_cast %103 : vector<32x128xf32> to vector<2x16x128xf32>
    %112 = vector.shape_cast %104 : vector<32x128xf32> to vector<2x16x128xf32>
    %113 = vector.extract_strided_slice %110 {offsets = [0, 0, 0], sizes = [2, 8, 32], strides = [1, 1, 1]} : vector<2x8x128xf32> to vector<2x8x32xf32>
    %114 = arith.truncf %113 : vector<2x8x32xf32> to vector<2x8x32xbf16>
    %115 = vector.extract_strided_slice %111 {offsets = [0, 0, 0], sizes = [2, 16, 32], strides = [1, 1, 1]} : vector<2x16x128xf32> to vector<2x16x32xf32>
    %116 = arith.truncf %115 : vector<2x16x32xf32> to vector<2x16x32xbf16>
    %117 = vector.extract_strided_slice %112 {offsets = [0, 0, 0], sizes = [2, 16, 32], strides = [1, 1, 1]} : vector<2x16x128xf32> to vector<2x16x32xf32>
    %118 = arith.truncf %117 : vector<2x16x32xf32> to vector<2x16x32xbf16>
    "tpu.trace_start"() <{level = 10 : i32, message = "blk,btk->blt"}> : () -> ()
    %cst_36 = arith.constant dense<0.000000e+00> : vector<2x8x16xf32>
    %119 = tpu.matmul %114, %116, %cst_36 {dimension_numbers = #tpu.dot_dimension_numbers<[2], [2], [1], [1], [0, 0, 0, 1, 1, 1], [0], [0]>} : vector<2x8x32xbf16>, vector<2x16x32xbf16>, vector<2x8x16xf32> -> vector<2x8x16xf32>
    "tpu.trace_stop"() : () -> ()
    %cst_37 = arith.constant dense<0xFF800000> : vector<2x8xf32>
    %120 = vector.multi_reduction <maximumf>, %119, %cst_37 [2] : vector<2x8x16xf32> to vector<2x8xf32>
    %121 = vector.shape_cast %120 : vector<2x8xf32> to vector<2x8x1xf32>
    %122 = vector.broadcast %121 : vector<2x8x1xf32> to vector<2x8x16xf32>
    %123 = arith.subf %119, %122 : vector<2x8x16xf32>
    %124 = math.exp %123 : vector<2x8x16xf32>
    %cst_38 = arith.constant dense<0.000000e+00> : vector<2x8xf32>
    %125 = vector.multi_reduction <add>, %124, %cst_38 [2] : vector<2x8x16xf32> to vector<2x8xf32>
    %126 = vector.shape_cast %125 : vector<2x8xf32> to vector<2x8x1xf32>
    %127 = vector.broadcast %126 : vector<2x8x1xf32> to vector<2x8x16xf32>
    %128 = arith.divf %124, %127 : vector<2x8x16xf32>
    %129 = arith.truncf %128 : vector<2x8x16xf32> to vector<2x8x16xbf16>
    "tpu.trace_start"() <{level = 10 : i32, message = "blt,btk->blk"}> : () -> ()
    %cst_39 = arith.constant dense<0.000000e+00> : vector<2x8x32xf32>
    %130 = tpu.matmul %129, %118, %cst_39 {dimension_numbers = #tpu.dot_dimension_numbers<[2], [1], [1], [2], [0, 0, 0, 1, 1, 2], [0], [0]>} : vector<2x8x16xbf16>, vector<2x16x32xbf16>, vector<2x8x32xf32> -> vector<2x8x32xf32>
    "tpu.trace_stop"() : () -> ()
    %131 = vector.extract_strided_slice %110 {offsets = [0, 0, 32], sizes = [2, 8, 32], strides = [1, 1, 1]} : vector<2x8x128xf32> to vector<2x8x32xf32>
    %132 = arith.truncf %131 : vector<2x8x32xf32> to vector<2x8x32xbf16>
    %133 = vector.extract_strided_slice %111 {offsets = [0, 0, 32], sizes = [2, 16, 32], strides = [1, 1, 1]} : vector<2x16x128xf32> to vector<2x16x32xf32>
    %134 = arith.truncf %133 : vector<2x16x32xf32> to vector<2x16x32xbf16>
    %135 = vector.extract_strided_slice %112 {offsets = [0, 0, 32], sizes = [2, 16, 32], strides = [1, 1, 1]} : vector<2x16x128xf32> to vector<2x16x32xf32>
    %136 = arith.truncf %135 : vector<2x16x32xf32> to vector<2x16x32xbf16>
    "tpu.trace_start"() <{level = 10 : i32, message = "blk,btk->blt"}> : () -> ()
    %cst_40 = arith.constant dense<0.000000e+00> : vector<2x8x16xf32>
    %137 = tpu.matmul %132, %134, %cst_40 {dimension_numbers = #tpu.dot_dimension_numbers<[2], [2], [1], [1], [0, 0, 0, 1, 1, 1], [0], [0]>} : vector<2x8x32xbf16>, vector<2x16x32xbf16>, vector<2x8x16xf32> -> vector<2x8x16xf32>
    "tpu.trace_stop"() : () -> ()
    %cst_41 = arith.constant dense<0xFF800000> : vector<2x8xf32>
    %138 = vector.multi_reduction <maximumf>, %137, %cst_41 [2] : vector<2x8x16xf32> to vector<2x8xf32>
    %139 = vector.shape_cast %138 : vector<2x8xf32> to vector<2x8x1xf32>
    %140 = vector.broadcast %139 : vector<2x8x1xf32> to vector<2x8x16xf32>
    %141 = arith.subf %137, %140 : vector<2x8x16xf32>
    %142 = math.exp %141 : vector<2x8x16xf32>
    %cst_42 = arith.constant dense<0.000000e+00> : vector<2x8xf32>
    %143 = vector.multi_reduction <add>, %142, %cst_42 [2] : vector<2x8x16xf32> to vector<2x8xf32>
    %144 = vector.shape_cast %143 : vector<2x8xf32> to vector<2x8x1xf32>
    %145 = vector.broadcast %144 : vector<2x8x1xf32> to vector<2x8x16xf32>
    %146 = arith.divf %142, %145 : vector<2x8x16xf32>
    %147 = arith.truncf %146 : vector<2x8x16xf32> to vector<2x8x16xbf16>
    "tpu.trace_start"() <{level = 10 : i32, message = "blt,btk->blk"}> : () -> ()
    %cst_43 = arith.constant dense<0.000000e+00> : vector<2x8x32xf32>
    %148 = tpu.matmul %147, %136, %cst_43 {dimension_numbers = #tpu.dot_dimension_numbers<[2], [1], [1], [2], [0, 0, 0, 1, 1, 2], [0], [0]>} : vector<2x8x16xbf16>, vector<2x16x32xbf16>, vector<2x8x32xf32> -> vector<2x8x32xf32>
    "tpu.trace_stop"() : () -> ()
    %149 = vector.extract_strided_slice %110 {offsets = [0, 0, 64], sizes = [2, 8, 32], strides = [1, 1, 1]} : vector<2x8x128xf32> to vector<2x8x32xf32>
    %150 = arith.truncf %149 : vector<2x8x32xf32> to vector<2x8x32xbf16>
    %151 = vector.extract_strided_slice %111 {offsets = [0, 0, 64], sizes = [2, 16, 32], strides = [1, 1, 1]} : vector<2x16x128xf32> to vector<2x16x32xf32>
    %152 = arith.truncf %151 : vector<2x16x32xf32> to vector<2x16x32xbf16>
    %153 = vector.extract_strided_slice %112 {offsets = [0, 0, 64], sizes = [2, 16, 32], strides = [1, 1, 1]} : vector<2x16x128xf32> to vector<2x16x32xf32>
    %154 = arith.truncf %153 : vector<2x16x32xf32> to vector<2x16x32xbf16>
    "tpu.trace_start"() <{level = 10 : i32, message = "blk,btk->blt"}> : () -> ()
    %cst_44 = arith.constant dense<0.000000e+00> : vector<2x8x16xf32>
    %155 = tpu.matmul %150, %152, %cst_44 {dimension_numbers = #tpu.dot_dimension_numbers<[2], [2], [1], [1], [0, 0, 0, 1, 1, 1], [0], [0]>} : vector<2x8x32xbf16>, vector<2x16x32xbf16>, vector<2x8x16xf32> -> vector<2x8x16xf32>
    "tpu.trace_stop"() : () -> ()
    %cst_45 = arith.constant dense<0xFF800000> : vector<2x8xf32>
    %156 = vector.multi_reduction <maximumf>, %155, %cst_45 [2] : vector<2x8x16xf32> to vector<2x8xf32>
    %157 = vector.shape_cast %156 : vector<2x8xf32> to vector<2x8x1xf32>
    %158 = vector.broadcast %157 : vector<2x8x1xf32> to vector<2x8x16xf32>
    %159 = arith.subf %155, %158 : vector<2x8x16xf32>
    %160 = math.exp %159 : vector<2x8x16xf32>
    %cst_46 = arith.constant dense<0.000000e+00> : vector<2x8xf32>
    %161 = vector.multi_reduction <add>, %160, %cst_46 [2] : vector<2x8x16xf32> to vector<2x8xf32>
    %162 = vector.shape_cast %161 : vector<2x8xf32> to vector<2x8x1xf32>
    %163 = vector.broadcast %162 : vector<2x8x1xf32> to vector<2x8x16xf32>
    %164 = arith.divf %160, %163 : vector<2x8x16xf32>
    %165 = arith.truncf %164 : vector<2x8x16xf32> to vector<2x8x16xbf16>
    "tpu.trace_start"() <{level = 10 : i32, message = "blt,btk->blk"}> : () -> ()
    %cst_47 = arith.constant dense<0.000000e+00> : vector<2x8x32xf32>
    %166 = tpu.matmul %165, %154, %cst_47 {dimension_numbers = #tpu.dot_dimension_numbers<[2], [1], [1], [2], [0, 0, 0, 1, 1, 2], [0], [0]>} : vector<2x8x16xbf16>, vector<2x16x32xbf16>, vector<2x8x32xf32> -> vector<2x8x32xf32>
    "tpu.trace_stop"() : () -> ()
    %167 = vector.extract_strided_slice %110 {offsets = [0, 0, 96], sizes = [2, 8, 32], strides = [1, 1, 1]} : vector<2x8x128xf32> to vector<2x8x32xf32>
    %168 = arith.truncf %167 : vector<2x8x32xf32> to vector<2x8x32xbf16>
    %169 = vector.extract_strided_slice %111 {offsets = [0, 0, 96], sizes = [2, 16, 32], strides = [1, 1, 1]} : vector<2x16x128xf32> to vector<2x16x32xf32>
    %170 = arith.truncf %169 : vector<2x16x32xf32> to vector<2x16x32xbf16>
    %171 = vector.extract_strided_slice %112 {offsets = [0, 0, 96], sizes = [2, 16, 32], strides = [1, 1, 1]} : vector<2x16x128xf32> to vector<2x16x32xf32>
    %172 = arith.truncf %171 : vector<2x16x32xf32> to vector<2x16x32xbf16>
    "tpu.trace_start"() <{level = 10 : i32, message = "blk,btk->blt"}> : () -> ()
    %cst_48 = arith.constant dense<0.000000e+00> : vector<2x8x16xf32>
    %173 = tpu.matmul %168, %170, %cst_48 {dimension_numbers = #tpu.dot_dimension_numbers<[2], [2], [1], [1], [0, 0, 0, 1, 1, 1], [0], [0]>} : vector<2x8x32xbf16>, vector<2x16x32xbf16>, vector<2x8x16xf32> -> vector<2x8x16xf32>
    "tpu.trace_stop"() : () -> ()
    %cst_49 = arith.constant dense<0xFF800000> : vector<2x8xf32>
    %174 = vector.multi_reduction <maximumf>, %173, %cst_49 [2] : vector<2x8x16xf32> to vector<2x8xf32>
    %175 = vector.shape_cast %174 : vector<2x8xf32> to vector<2x8x1xf32>
    %176 = vector.broadcast %175 : vector<2x8x1xf32> to vector<2x8x16xf32>
    %177 = arith.subf %173, %176 : vector<2x8x16xf32>
    %178 = math.exp %177 : vector<2x8x16xf32>
    %cst_50 = arith.constant dense<0.000000e+00> : vector<2x8xf32>
    %179 = vector.multi_reduction <add>, %178, %cst_50 [2] : vector<2x8x16xf32> to vector<2x8xf32>
    %180 = vector.shape_cast %179 : vector<2x8xf32> to vector<2x8x1xf32>
    %181 = vector.broadcast %180 : vector<2x8x1xf32> to vector<2x8x16xf32>
    %182 = arith.divf %178, %181 : vector<2x8x16xf32>
    %183 = arith.truncf %182 : vector<2x8x16xf32> to vector<2x8x16xbf16>
    "tpu.trace_start"() <{level = 10 : i32, message = "blt,btk->blk"}> : () -> ()
    %cst_51 = arith.constant dense<0.000000e+00> : vector<2x8x32xf32>
    %184 = tpu.matmul %183, %172, %cst_51 {dimension_numbers = #tpu.dot_dimension_numbers<[2], [1], [1], [2], [0, 0, 0, 1, 1, 2], [0], [0]>} : vector<2x8x16xbf16>, vector<2x16x32xbf16>, vector<2x8x32xf32> -> vector<2x8x32xf32>
    "tpu.trace_stop"() : () -> ()
    %185 = tpu.concatenate %130, %148, %166, %184 in 2 : vector<2x8x32xf32>, vector<2x8x32xf32>, vector<2x8x32xf32>, vector<2x8x32xf32> -> vector<2x8x128xf32>
    %186 = vector.shape_cast %185 : vector<2x8x128xf32> to vector<16x128xf32>
    %187 = arith.truncf %186 : vector<16x128xf32> to vector<16x128xbf16>
    %cst_52 = arith.constant dense<0.000000e+00> : vector<16x128xf32>
    %188 = tpu.matmul %187, %98, %cst_52 {dimension_numbers = #tpu.dot_dimension_numbers<[1], [0], [0], [1], [0, 0, 1, 1], [], []>} : vector<16x128xbf16>, vector<128x128xbf16>, vector<16x128xf32> -> vector<16x128xf32>
    %189 = vector.shape_cast %188 : vector<16x128xf32> to vector<2x8x128xf32>
    %c2 = arith.constant 2 : index
    %c0_53 = arith.constant 0 : index
    %c0_54 = arith.constant 0 : index
    %190 = vector.load %arg4[%c2, %c0_53, %c0_54] : memref<3x128x384xbf16, #tpu.memory_space<vmem>>, vector<1x128x384xbf16>
    %191 = vector.shape_cast %190 : vector<1x128x384xbf16> to vector<128x384xbf16>
    %c2_55 = arith.constant 2 : index
    %c0_56 = arith.constant 0 : index
    %c0_57 = arith.constant 0 : index
    %192 = vector.load %arg5[%c2_55, %c0_56, %c0_57] : memref<3x128x128xbf16, #tpu.memory_space<vmem>>, vector<1x128x128xbf16>
    %193 = vector.shape_cast %192 : vector<1x128x128xbf16> to vector<128x128xbf16>
    %194 = vector.shape_cast %189 : vector<2x8x128xf32> to vector<16x128xf32>
    %195 = arith.truncf %194 : vector<16x128xf32> to vector<16x128xbf16>
    %cst_58 = arith.constant dense<0.000000e+00> : vector<16x384xf32>
    %196 = tpu.matmul %195, %191, %cst_58 {dimension_numbers = #tpu.dot_dimension_numbers<[1], [0], [0], [1], [0, 0, 1, 1], [], []>} : vector<16x128xbf16>, vector<128x384xbf16>, vector<16x384xf32> -> vector<16x384xf32>
    %197 = vector.extract_strided_slice %196 {offsets = [0, 0], sizes = [16, 128], strides = [1, 1]} : vector<16x384xf32> to vector<16x128xf32>
    %198 = vector.shape_cast %197 : vector<16x128xf32> to vector<2x8x128xf32>
    %199 = vector.extract_strided_slice %196 {offsets = [0, 128], sizes = [16, 128], strides = [1, 1]} : vector<16x384xf32> to vector<16x128xf32>
    %200 = vector.extract_strided_slice %196 {offsets = [0, 256], sizes = [16, 128], strides = [1, 1]} : vector<16x384xf32> to vector<16x128xf32>
    %201 = vector.shape_cast %199 : vector<16x128xf32> to vector<2x8x128xf32>
    %202 = vector.shape_cast %200 : vector<16x128xf32> to vector<2x8x128xf32>
    %203 = vector.extract_strided_slice %198 {offsets = [0, 0, 0], sizes = [2, 8, 32], strides = [1, 1, 1]} : vector<2x8x128xf32> to vector<2x8x32xf32>
    %204 = arith.truncf %203 : vector<2x8x32xf32> to vector<2x8x32xbf16>
    %205 = vector.extract_strided_slice %201 {offsets = [0, 0, 0], sizes = [2, 8, 32], strides = [1, 1, 1]} : vector<2x8x128xf32> to vector<2x8x32xf32>
    %206 = arith.truncf %205 : vector<2x8x32xf32> to vector<2x8x32xbf16>
    %207 = vector.extract_strided_slice %202 {offsets = [0, 0, 0], sizes = [2, 8, 32], strides = [1, 1, 1]} : vector<2x8x128xf32> to vector<2x8x32xf32>
    %208 = arith.truncf %207 : vector<2x8x32xf32> to vector<2x8x32xbf16>
    "tpu.trace_start"() <{level = 10 : i32, message = "blk,btk->blt"}> : () -> ()
    %cst_59 = arith.constant dense<0.000000e+00> : vector<2x8x8xf32>
    %209 = tpu.matmul %204, %206, %cst_59 {dimension_numbers = #tpu.dot_dimension_numbers<[2], [2], [1], [1], [0, 0, 0, 1, 1, 1], [0], [0]>} : vector<2x8x32xbf16>, vector<2x8x32xbf16>, vector<2x8x8xf32> -> vector<2x8x8xf32>
    "tpu.trace_stop"() : () -> ()
    %cst_60 = arith.constant dense<0xFF800000> : vector<2x8xf32>
    %210 = vector.multi_reduction <maximumf>, %209, %cst_60 [2] : vector<2x8x8xf32> to vector<2x8xf32>
    %211 = vector.shape_cast %210 : vector<2x8xf32> to vector<2x8x1xf32>
    %212 = vector.broadcast %211 : vector<2x8x1xf32> to vector<2x8x8xf32>
    %213 = arith.subf %209, %212 : vector<2x8x8xf32>
    %214 = math.exp %213 : vector<2x8x8xf32>
    %cst_61 = arith.constant dense<0.000000e+00> : vector<2x8xf32>
    %215 = vector.multi_reduction <add>, %214, %cst_61 [2] : vector<2x8x8xf32> to vector<2x8xf32>
    %216 = vector.shape_cast %215 : vector<2x8xf32> to vector<2x8x1xf32>
    %217 = vector.broadcast %216 : vector<2x8x1xf32> to vector<2x8x8xf32>
    %218 = arith.divf %214, %217 : vector<2x8x8xf32>
    %219 = arith.truncf %218 : vector<2x8x8xf32> to vector<2x8x8xbf16>
    "tpu.trace_start"() <{level = 10 : i32, message = "blt,btk->blk"}> : () -> ()
    %cst_62 = arith.constant dense<0.000000e+00> : vector<2x8x32xf32>
    %220 = tpu.matmul %219, %208, %cst_62 {dimension_numbers = #tpu.dot_dimension_numbers<[2], [1], [1], [2], [0, 0, 0, 1, 1, 2], [0], [0]>} : vector<2x8x8xbf16>, vector<2x8x32xbf16>, vector<2x8x32xf32> -> vector<2x8x32xf32>
    "tpu.trace_stop"() : () -> ()
    %221 = vector.extract_strided_slice %198 {offsets = [0, 0, 32], sizes = [2, 8, 32], strides = [1, 1, 1]} : vector<2x8x128xf32> to vector<2x8x32xf32>
    %222 = arith.truncf %221 : vector<2x8x32xf32> to vector<2x8x32xbf16>
    %223 = vector.extract_strided_slice %201 {offsets = [0, 0, 32], sizes = [2, 8, 32], strides = [1, 1, 1]} : vector<2x8x128xf32> to vector<2x8x32xf32>
    %224 = arith.truncf %223 : vector<2x8x32xf32> to vector<2x8x32xbf16>
    %225 = vector.extract_strided_slice %202 {offsets = [0, 0, 32], sizes = [2, 8, 32], strides = [1, 1, 1]} : vector<2x8x128xf32> to vector<2x8x32xf32>
    %226 = arith.truncf %225 : vector<2x8x32xf32> to vector<2x8x32xbf16>
    "tpu.trace_start"() <{level = 10 : i32, message = "blk,btk->blt"}> : () -> ()
    %cst_63 = arith.constant dense<0.000000e+00> : vector<2x8x8xf32>
    %227 = tpu.matmul %222, %224, %cst_63 {dimension_numbers = #tpu.dot_dimension_numbers<[2], [2], [1], [1], [0, 0, 0, 1, 1, 1], [0], [0]>} : vector<2x8x32xbf16>, vector<2x8x32xbf16>, vector<2x8x8xf32> -> vector<2x8x8xf32>
    "tpu.trace_stop"() : () -> ()
    %cst_64 = arith.constant dense<0xFF800000> : vector<2x8xf32>
    %228 = vector.multi_reduction <maximumf>, %227, %cst_64 [2] : vector<2x8x8xf32> to vector<2x8xf32>
    %229 = vector.shape_cast %228 : vector<2x8xf32> to vector<2x8x1xf32>
    %230 = vector.broadcast %229 : vector<2x8x1xf32> to vector<2x8x8xf32>
    %231 = arith.subf %227, %230 : vector<2x8x8xf32>
    %232 = math.exp %231 : vector<2x8x8xf32>
    %cst_65 = arith.constant dense<0.000000e+00> : vector<2x8xf32>
    %233 = vector.multi_reduction <add>, %232, %cst_65 [2] : vector<2x8x8xf32> to vector<2x8xf32>
    %234 = vector.shape_cast %233 : vector<2x8xf32> to vector<2x8x1xf32>
    %235 = vector.broadcast %234 : vector<2x8x1xf32> to vector<2x8x8xf32>
    %236 = arith.divf %232, %235 : vector<2x8x8xf32>
    %237 = arith.truncf %236 : vector<2x8x8xf32> to vector<2x8x8xbf16>
    "tpu.trace_start"() <{level = 10 : i32, message = "blt,btk->blk"}> : () -> ()
    %cst_66 = arith.constant dense<0.000000e+00> : vector<2x8x32xf32>
    %238 = tpu.matmul %237, %226, %cst_66 {dimension_numbers = #tpu.dot_dimension_numbers<[2], [1], [1], [2], [0, 0, 0, 1, 1, 2], [0], [0]>} : vector<2x8x8xbf16>, vector<2x8x32xbf16>, vector<2x8x32xf32> -> vector<2x8x32xf32>
    "tpu.trace_stop"() : () -> ()
    %239 = vector.extract_strided_slice %198 {offsets = [0, 0, 64], sizes = [2, 8, 32], strides = [1, 1, 1]} : vector<2x8x128xf32> to vector<2x8x32xf32>
    %240 = arith.truncf %239 : vector<2x8x32xf32> to vector<2x8x32xbf16>
    %241 = vector.extract_strided_slice %201 {offsets = [0, 0, 64], sizes = [2, 8, 32], strides = [1, 1, 1]} : vector<2x8x128xf32> to vector<2x8x32xf32>
    %242 = arith.truncf %241 : vector<2x8x32xf32> to vector<2x8x32xbf16>
    %243 = vector.extract_strided_slice %202 {offsets = [0, 0, 64], sizes = [2, 8, 32], strides = [1, 1, 1]} : vector<2x8x128xf32> to vector<2x8x32xf32>
    %244 = arith.truncf %243 : vector<2x8x32xf32> to vector<2x8x32xbf16>
    "tpu.trace_start"() <{level = 10 : i32, message = "blk,btk->blt"}> : () -> ()
    %cst_67 = arith.constant dense<0.000000e+00> : vector<2x8x8xf32>
    %245 = tpu.matmul %240, %242, %cst_67 {dimension_numbers = #tpu.dot_dimension_numbers<[2], [2], [1], [1], [0, 0, 0, 1, 1, 1], [0], [0]>} : vector<2x8x32xbf16>, vector<2x8x32xbf16>, vector<2x8x8xf32> -> vector<2x8x8xf32>
    "tpu.trace_stop"() : () -> ()
    %cst_68 = arith.constant dense<0xFF800000> : vector<2x8xf32>
    %246 = vector.multi_reduction <maximumf>, %245, %cst_68 [2] : vector<2x8x8xf32> to vector<2x8xf32>
    %247 = vector.shape_cast %246 : vector<2x8xf32> to vector<2x8x1xf32>
    %248 = vector.broadcast %247 : vector<2x8x1xf32> to vector<2x8x8xf32>
    %249 = arith.subf %245, %248 : vector<2x8x8xf32>
    %250 = math.exp %249 : vector<2x8x8xf32>
    %cst_69 = arith.constant dense<0.000000e+00> : vector<2x8xf32>
    %251 = vector.multi_reduction <add>, %250, %cst_69 [2] : vector<2x8x8xf32> to vector<2x8xf32>
    %252 = vector.shape_cast %251 : vector<2x8xf32> to vector<2x8x1xf32>
    %253 = vector.broadcast %252 : vector<2x8x1xf32> to vector<2x8x8xf32>
    %254 = arith.divf %250, %253 : vector<2x8x8xf32>
    %255 = arith.truncf %254 : vector<2x8x8xf32> to vector<2x8x8xbf16>
    "tpu.trace_start"() <{level = 10 : i32, message = "blt,btk->blk"}> : () -> ()
    %cst_70 = arith.constant dense<0.000000e+00> : vector<2x8x32xf32>
    %256 = tpu.matmul %255, %244, %cst_70 {dimension_numbers = #tpu.dot_dimension_numbers<[2], [1], [1], [2], [0, 0, 0, 1, 1, 2], [0], [0]>} : vector<2x8x8xbf16>, vector<2x8x32xbf16>, vector<2x8x32xf32> -> vector<2x8x32xf32>
    "tpu.trace_stop"() : () -> ()
    %257 = vector.extract_strided_slice %198 {offsets = [0, 0, 96], sizes = [2, 8, 32], strides = [1, 1, 1]} : vector<2x8x128xf32> to vector<2x8x32xf32>
    %258 = arith.truncf %257 : vector<2x8x32xf32> to vector<2x8x32xbf16>
    %259 = vector.extract_strided_slice %201 {offsets = [0, 0, 96], sizes = [2, 8, 32], strides = [1, 1, 1]} : vector<2x8x128xf32> to vector<2x8x32xf32>
    %260 = arith.truncf %259 : vector<2x8x32xf32> to vector<2x8x32xbf16>
    %261 = vector.extract_strided_slice %202 {offsets = [0, 0, 96], sizes = [2, 8, 32], strides = [1, 1, 1]} : vector<2x8x128xf32> to vector<2x8x32xf32>
    %262 = arith.truncf %261 : vector<2x8x32xf32> to vector<2x8x32xbf16>
    "tpu.trace_start"() <{level = 10 : i32, message = "blk,btk->blt"}> : () -> ()
    %cst_71 = arith.constant dense<0.000000e+00> : vector<2x8x8xf32>
    %263 = tpu.matmul %258, %260, %cst_71 {dimension_numbers = #tpu.dot_dimension_numbers<[2], [2], [1], [1], [0, 0, 0, 1, 1, 1], [0], [0]>} : vector<2x8x32xbf16>, vector<2x8x32xbf16>, vector<2x8x8xf32> -> vector<2x8x8xf32>
    "tpu.trace_stop"() : () -> ()
    %cst_72 = arith.constant dense<0xFF800000> : vector<2x8xf32>
    %264 = vector.multi_reduction <maximumf>, %263, %cst_72 [2] : vector<2x8x8xf32> to vector<2x8xf32>
    %265 = vector.shape_cast %264 : vector<2x8xf32> to vector<2x8x1xf32>
    %266 = vector.broadcast %265 : vector<2x8x1xf32> to vector<2x8x8xf32>
    %267 = arith.subf %263, %266 : vector<2x8x8xf32>
    %268 = math.exp %267 : vector<2x8x8xf32>
    %cst_73 = arith.constant dense<0.000000e+00> : vector<2x8xf32>
    %269 = vector.multi_reduction <add>, %268, %cst_73 [2] : vector<2x8x8xf32> to vector<2x8xf32>
    %270 = vector.shape_cast %269 : vector<2x8xf32> to vector<2x8x1xf32>
    %271 = vector.broadcast %270 : vector<2x8x1xf32> to vector<2x8x8xf32>
    %272 = arith.divf %268, %271 : vector<2x8x8xf32>
    %273 = arith.truncf %272 : vector<2x8x8xf32> to vector<2x8x8xbf16>
    "tpu.trace_start"() <{level = 10 : i32, message = "blt,btk->blk"}> : () -> ()
    %cst_74 = arith.constant dense<0.000000e+00> : vector<2x8x32xf32>
    %274 = tpu.matmul %273, %262, %cst_74 {dimension_numbers = #tpu.dot_dimension_numbers<[2], [1], [1], [2], [0, 0, 0, 1, 1, 2], [0], [0]>} : vector<2x8x8xbf16>, vector<2x8x32xbf16>, vector<2x8x32xf32> -> vector<2x8x32xf32>
    "tpu.trace_stop"() : () -> ()
    %275 = tpu.concatenate %220, %238, %256, %274 in 2 : vector<2x8x32xf32>, vector<2x8x32xf32>, vector<2x8x32xf32>, vector<2x8x32xf32> -> vector<2x8x128xf32>
    %276 = vector.shape_cast %275 : vector<2x8x128xf32> to vector<16x128xf32>
    %277 = arith.truncf %276 : vector<16x128xf32> to vector<16x128xbf16>
    %cst_75 = arith.constant dense<0.000000e+00> : vector<16x128xf32>
    %278 = tpu.matmul %277, %193, %cst_75 {dimension_numbers = #tpu.dot_dimension_numbers<[1], [0], [0], [1], [0, 0, 1, 1], [], []>} : vector<16x128xbf16>, vector<128x128xbf16>, vector<16x128xf32> -> vector<16x128xf32>
    %279 = vector.shape_cast %278 : vector<16x128xf32> to vector<2x8x128xf32>
    %c0_76 = arith.constant 0 : index
    %c0_77 = arith.constant 0 : index
    %c0_78 = arith.constant 0 : index
    %280 = vector.load %arg6[%c0_76, %c0_77, %c0_78] : memref<2x8x128xf32, #tpu.memory_space<vmem>>, vector<2x8x128xf32>
    tpu.vector_store %arg6[%c0_76, %c0_77, %c0_78], %279 {strides = array<i32>} : memref<2x8x128xf32, #tpu.memory_space<vmem>>, vector<2x8x128xf32>,
    return
  }
  func.func @transform_0(%arg0: i32) -> (i32, i32, i32) {
    %c0_i32 = arith.constant 0 : i32
    %c0_i32_0 = arith.constant 0 : i32
    %c0_i32_1 = arith.constant 0 : i32
    return %arg0, %c0_i32, %c0_i32_0 : i32, i32, i32
  }
  func.func @transform_1(%arg0: i32) -> (i32, i32) {
    %c0_i32 = arith.constant 0 : i32
    %c0_i32_0 = arith.constant 0 : i32
    %c0_i32_1 = arith.constant 0 : i32
    return %c0_i32, %c0_i32_0 : i32, i32
  }
  func.func @transform_2(%arg0: i32) -> (i32, i32) {
    %c0_i32 = arith.constant 0 : i32
    %c0_i32_0 = arith.constant 0 : i32
    %c0_i32_1 = arith.constant 0 : i32
    return %c0_i32, %c0_i32_0 : i32, i32
  }
  func.func @transform_3(%arg0: i32) -> (i32, i32, i32) {
    %c0_i32 = arith.constant 0 : i32
    %c0_i32_0 = arith.constant 0 : i32
    %c0_i32_1 = arith.constant 0 : i32
    %c0_i32_2 = arith.constant 0 : i32
    return %c0_i32, %c0_i32_0, %c0_i32_1 : i32, i32, i32
  }
  func.func @transform_4(%arg0: i32) -> (i32, i32, i32) {
    %c0_i32 = arith.constant 0 : i32
    %c0_i32_0 = arith.constant 0 : i32
    %c0_i32_1 = arith.constant 0 : i32
    %c0_i32_2 = arith.constant 0 : i32
    return %c0_i32, %c0_i32_0, %c0_i32_1 : i32, i32, i32
  }
  func.func @transform_5(%arg0: i32) -> (i32, i32, i32) {
    %c0_i32 = arith.constant 0 : i32
    %c0_i32_0 = arith.constant 0 : i32
    %c0_i32_1 = arith.constant 0 : i32
    return %arg0, %c0_i32, %c0_i32_0 : i32, i32, i32
  }
}

</mosaic_0001>

<llo_original>
// kernel: tpu_custom_call.1
$region0: #{tpu_custom_call.1}
  #allocation0 [shape = 'u32[]', space=smem, size = 0x4, offset = 0x4, fixed_abs, tag = 'smem constant byte address 0x4 - core index']
  #allocation1 [shape = 'u32[144,128]{1,0:T(1,128)}', space=vmem, size = 0x12000, scoped, tag = 'internal scratch']
  %s0 = inlined_call_operand.hbm [shape: f32[8,16,128], index: 0, kind: input, shape index: {}]
  %s1 = inlined_call_operand.hbm [shape: f32[16,128], index: 1, kind: input, shape index: {}]
  %s2 = inlined_call_operand.vmem [shape: bf16[8,128], index: 2, kind: input, shape index: {}]
  %s3 = inlined_call_operand.hbm [shape: bf16[3,128,384], index: 3, kind: input, shape index: {}]
  %s4 = inlined_call_operand.hbm [shape: bf16[3,128,128], index: 4, kind: input, shape index: {}]
  %s5 = inlined_call_operand.hbm [shape: f32[8,8,128], index: 5, kind: output, shape index: {}]
  %s6 = sld [smem:[#allocation0]]
  $region69: #{tpu_custom_call.1} parent=0
    _
  %s8 = ssub.s32 1, %s6
  %s9 = scalar_select 0, %s8, %s6
  $region1: #{tpu_custom_call.1} parent=0
    #allocation2 [shape = 'u8[32768]{0}', space=vmem, size = 0x8000, scoped, tag = 'input window, operand 0']
    #allocation3 [shape = 's32[2]{0}', space=sflag, size = 0x8, scoped, tag = 'scoped memory for tpu_custom_call.1']
    #allocation4 [shape = 's32[2]{0}', space=sflag, size = 0x8, scoped, tag = 'scoped memory for tpu_custom_call.1']
    #allocation5 [shape = 'u8[8192]{0}', space=vmem, size = 0x2000, scoped, tag = 'input window, operand 1, single buffered']
    #allocation6 [shape = 's32[1]{0}', space=sflag, size = 0x4, scoped, tag = 'scoped memory for tpu_custom_call.1']
    #allocation7 [shape = 'u8[294912]{0}', space=vmem, size = 0x48000, scoped, tag = 'input window, operand 3, single buffered']
    #allocation8 [shape = 'u8[98304]{0}', space=vmem, size = 0x18000, scoped, tag = 'input window, operand 4, single buffered']
    #allocation9 [shape = 's32[1]{0}', space=sflag, size = 0x4, scoped, tag = 'scoped memory for tpu_custom_call.1']
    #allocation10 [shape = 'u8[16384]{0}', space=vmem, size = 0x4000, scoped, tag = 'output window, operand 0']
    %10 = vsyncpa [#allocation3], 0
    %s11 = scalar_lea.sflag [#allocation3], 1
    %12 = vsyncpa %s11, 0
    %13 = vsyncpa [#allocation6], 0
    %14 = vsyncpa [#allocation9], 0
    %15 = vsyncpa [#allocation4], 0
    %s16 = scalar_lea.sflag [#allocation4], 1
    %17 = vsyncpa %s16, 0
    loop: start=0, step=1, limit=6
    $region2: #{tpu_custom_call.1} parent=1 // loop_pre_header
      _
    $region3: #{tpu_custom_call.1} parent=1 // loop_header
      %s19 = sphi 0, %s23
      %p20 = scmp.ge.s32.totalorder %s19, 6
      %s29 = sphi 0, %s31
      %s32 = sphi 0, %s29
      %s33 = sphi 0, %s32
      %s49 = sphi 0, %s33
      %s53 = sphi 0, %s53
      %s55 = sphi 0, %s53
      %s56 = sphi 0, %s55
      %s70 = sphi 0, %s56
      %s74 = sphi 0, %s74
      %s76 = sphi 0, %s74
      %s77 = sphi 0, %s76
      %s91 = sphi 0, %s77
      %s95 = sphi 0, %s95
      %s97 = sphi 0, %s95
      %s98 = sphi 0, %s97
      %s112 = sphi 0, %s98
      %s116 = sphi 0, %s116
      %s118 = sphi 0, %s116
      %s119 = sphi 0, %s118
      %s133 = sphi 0, %s119
      %s139 = sphi 0, %s141
      %s142 = sphi 0, %s139
      %s143 = sphi 0, %s142
      %s159 = sphi 0, %s143
    $region4: #{tpu_custom_call.1} parent=1 // loop_header_branch
      %22 = sbr.rel (%p20) target = $region8
    $region5: #{tpu_custom_call.1} parent=1 // loop_body
      %s24 = ssub.s32 %s19, 1
      %s25 = ssub.s32 %s19, 2
      %s26 = sadd.s32 %s19, 1
      %s27 = ssub.s32 %s19, %s26
      %p28 = scmp.eq.s32.totalorder %s27, 0
      %s30 = sadd.s32 %s29, 1
      %s31 = scalar_select %p28, %s29, %s30
      %p34 = pneg %p28
      %p35 = scmp.eq.s32.totalorder %s19, 3
      %p36 = por %p34, %p35
      %p37 = scmp.ne.s32.totalorder %s29, %s32
      %p38 = scmp.eq.s32.totalorder %s19, 0
      %p39 = por %p37, %p38
      %p40 = scmp.ne.s32.totalorder %s29, %s32
      %p41 = scmp.eq.s32.totalorder %s24, 3
      %p42 = por %p40, %p41
      %p43 = scmp.ne.s32.totalorder %s32, %s33
      %p44 = scmp.eq.s32.totalorder %s24, 0
      %p45 = por %p43, %p44
      %p46 = scmp.ne.s32.totalorder %s32, %s33
      %p47 = scmp.eq.s32.totalorder %s25, 3
      %p48 = por %p46, %p47
      %p50 = scmp.ne.s32.totalorder %s33, %s49
      %p51 = scmp.eq.s32.totalorder %s25, 0
      %p52 = por %p50, %p51
      %s54 = sadd.s32 %s53, 1
      %p57 = scmp.eq.s32.totalorder %s19, 3
      %p58 = scmp.ne.s32.totalorder %s53, %s55
      %p59 = scmp.eq.s32.totalorder %s19, 0
      %p60 = por %p58, %p59
      %p61 = scmp.ne.s32.totalorder %s53, %s55
      %p62 = scmp.eq.s32.totalorder %s24, 3
      %p63 = por %p61, %p62
      %p64 = scmp.ne.s32.totalorder %s55, %s56
      %p65 = scmp.eq.s32.totalorder %s24, 0
      %p66 = por %p64, %p65
      %p67 = scmp.ne.s32.totalorder %s55, %s56
      %p68 = scmp.eq.s32.totalorder %s25, 3
      %p69 = por %p67, %p68
      %p71 = scmp.ne.s32.totalorder %s56, %s70
      %p72 = scmp.eq.s32.totalorder %s25, 0
      %p73 = por %p71, %p72
      %s75 = sadd.s32 %s74, 1
      %p78 = scmp.eq.s32.totalorder %s19, 3
      %p79 = scmp.ne.s32.totalorder %s74, %s76
      %p80 = scmp.eq.s32.totalorder %s19, 0
      %p81 = por %p79, %p80
      %p82 = scmp.ne.s32.totalorder %s74, %s76
      %p83 = scmp.eq.s32.totalorder %s24, 3
      %p84 = por %p82, %p83
      %p85 = scmp.ne.s32.totalorder %s76, %s77
      %p86 = scmp.eq.s32.totalorder %s24, 0
      %p87 = por %p85, %p86
      %p88 = scmp.ne.s32.totalorder %s76, %s77
      %p89 = scmp.eq.s32.totalorder %s25, 3
      %p90 = por %p88, %p89
      %p92 = scmp.ne.s32.totalorder %s77, %s91
      %p93 = scmp.eq.s32.totalorder %s25, 0
      %p94 = por %p92, %p93
      %s96 = sadd.s32 %s95, 1
      %p99 = scmp.eq.s32.totalorder %s19, 3
      %p100 = scmp.ne.s32.totalorder %s95, %s97
      %p101 = scmp.eq.s32.totalorder %s19, 0
      %p102 = por %p100, %p101
      %p103 = scmp.ne.s32.totalorder %s95, %s97
      %p104 = scmp.eq.s32.totalorder %s24, 3
      %p105 = por %p103, %p104
      %p106 = scmp.ne.s32.totalorder %s97, %s98
      %p107 = scmp.eq.s32.totalorder %s24, 0
      %p108 = por %p106, %p107
      %p109 = scmp.ne.s32.totalorder %s97, %s98
      %p110 = scmp.eq.s32.totalorder %s25, 3
      %p111 = por %p109, %p110
      %p113 = scmp.ne.s32.totalorder %s98, %s112
      %p114 = scmp.eq.s32.totalorder %s25, 0
      %p115 = por %p113, %p114
      %s117 = sadd.s32 %s116, 1
      %p120 = scmp.eq.s32.totalorder %s19, 3
      %p121 = scmp.ne.s32.totalorder %s116, %s118
      %p122 = scmp.eq.s32.totalorder %s19, 0
      %p123 = por %p121, %p122
      %p124 = scmp.ne.s32.totalorder %s116, %s118
      %p125 = scmp.eq.s32.totalorder %s24, 3
      %p126 = por %p124, %p125
      %p127 = scmp.ne.s32.totalorder %s118, %s119
      %p128 = scmp.eq.s32.totalorder %s24, 0
      %p129 = por %p127, %p128
      %p130 = scmp.ne.s32.totalorder %s118, %s119
      %p131 = scmp.eq.s32.totalorder %s25, 3
      %p132 = por %p130, %p131
      %p134 = scmp.ne.s32.totalorder %s119, %s133
      %p135 = scmp.eq.s32.totalorder %s25, 0
      %p136 = por %p134, %p135
      %s137 = ssub.s32 %s19, %s26
      %p138 = scmp.eq.s32.totalorder %s137, 0
      %s140 = sadd.s32 %s139, 1
      %s141 = scalar_select %p138, %s139, %s140
      %p144 = pneg %p138
      %p145 = scmp.eq.s32.totalorder %s19, 3
      %p146 = por %p144, %p145
      %p147 = scmp.ne.s32.totalorder %s139, %s142
      %p148 = scmp.eq.s32.totalorder %s19, 0
      %p149 = por %p147, %p148
      %p150 = scmp.ne.s32.totalorder %s139, %s142
      %p151 = scmp.eq.s32.totalorder %s24, 3
      %p152 = por %p150, %p151
      %p153 = scmp.ne.s32.totalorder %s142, %s143
      %p154 = scmp.eq.s32.totalorder %s24, 0
      %p155 = por %p153, %p154
      %p156 = scmp.ne.s32.totalorder %s142, %s143
      %p157 = scmp.eq.s32.totalorder %s25, 3
      %p158 = por %p156, %p157
      %p160 = scmp.ne.s32.totalorder %s143, %s159
      %p161 = scmp.eq.s32.totalorder %s25, 0
      %p162 = por %p160, %p161
      %p163 = scmp.le.s32.totalorder 1, %s19
      %p164 = scmp.lt.s32.totalorder %s19, 5
      %p165 = pnand %p163, %p164
      %p166 = pneg %p165
      // Predicated region
      $region9: #{tpu_custom_call.1} parent=5 // pred_check
        _
      $region10: #{tpu_custom_call.1} parent=5 // pred_check_branch
        %168 = sbr.rel (%p165) target = $region12
      $region11: #{tpu_custom_call.1} parent=5 // pred_region
        %s169 = ssub.s32 %s19, 1
        // Predicated region
        $region13: #{tpu_custom_call.1} parent=11 // pred_check
          %p170 = pneg %p66
        $region14: #{tpu_custom_call.1} parent=11 // pred_check_branch
          %172 = sbr.rel (%p170) target = $region16
        $region15: #{tpu_custom_call.1} parent=11 // pred_region
          %s174 = ssub.s32 256, 256
          %175 = vsyncadd [#allocation6], %s174
          %s176 = sshll.u32 [#allocation5], 4
          %s177 = int_to_ptr.vmem [resolvable:$true] %s176
          %182 = dma.hbm_to_vmem [thread:$0]  %s1, 256, %s177, [#allocation6], 128, 128, 8
        $region16: #{tpu_custom_call.1} parent=11 // pred_fallthru
          _
        // Predicated region
        $region17: #{tpu_custom_call.1} parent=11 // pred_check
          %p183 = pneg %p87
        $region18: #{tpu_custom_call.1} parent=11 // pred_check_branch
          %185 = sbr.rel (%p183) target = $region20
        $region19: #{tpu_custom_call.1} parent=11 // pred_region
          _
        $region20: #{tpu_custom_call.1} parent=11 // pred_fallthru
          _
        // Predicated region
        $region21: #{tpu_custom_call.1} parent=11 // pred_check
          %p186 = pneg %p108
        $region22: #{tpu_custom_call.1} parent=11 // pred_check_branch
          %188 = sbr.rel (%p186) target = $region24
        $region23: #{tpu_custom_call.1} parent=11 // pred_region
          %s190 = ssub.s32 9216, 9216
          %191 = vsyncadd [#allocation6], %s190
          %s192 = sshll.u32 [#allocation7], 4
          %s193 = int_to_ptr.vmem [resolvable:$true] %s192
          %198 = dma.hbm_to_vmem [thread:$0]  %s3, 9216, %s193, [#allocation6], 192, 192, 12
        $region24: #{tpu_custom_call.1} parent=11 // pred_fallthru
          _
        // Predicated region
        $region25: #{tpu_custom_call.1} parent=11 // pred_check
          %p199 = pneg %p129
        $region26: #{tpu_custom_call.1} parent=11 // pred_check_branch
          %201 = sbr.rel (%p199) target = $region28
        $region27: #{tpu_custom_call.1} parent=11 // pred_region
          %s203 = ssub.s32 3072, 3072
          %204 = vsyncadd [#allocation9], %s203
          %s205 = sshll.u32 [#allocation8], 4
          %s206 = int_to_ptr.vmem [resolvable:$true] %s205
          %211 = dma.hbm_to_vmem [thread:$0]  %s4, 3072, %s206, [#allocation9], 64, 64, 4
        $region28: #{tpu_custom_call.1} parent=11 // pred_fallthru
          _
      $region12: #{tpu_custom_call.1} parent=5 // pred_fallthru
        _
      %p212 = scmp.lt.s32.totalorder %s19, 4
      // Predicated region
      $region29: #{tpu_custom_call.1} parent=5 // pred_check
        %p213 = pneg %p212
      $region30: #{tpu_custom_call.1} parent=5 // pred_check_branch
        %215 = sbr.rel (%p213) target = $region32
      $region31: #{tpu_custom_call.1} parent=5 // pred_region
        // Predicated region
        $region33: #{tpu_custom_call.1} parent=31 // pred_check
          %p216 = pneg %p39
        $region34: #{tpu_custom_call.1} parent=31 // pred_check_branch
          %218 = sbr.rel (%p216) target = $region36
        $region35: #{tpu_custom_call.1} parent=31 // pred_region
          %s219 = sand.u32 %s29, 1
          %s220 = scalar_lea.sflag [#allocation3], %s219
          %s221 = sand.u32 %s29, 1
          %s222 = smul.addr %s221, 32
          %s223 = scalar_lea.vmem [#allocation2], %s222
          %s224 = smul.u32 2, %s19
          %s226 = ssub.s32 512, 512
          %227 = vsyncadd %s220, %s226
          %s228 = smul.addr %s224, 2
          %s229 = smul.addr %s228, 128
          %s230 = scalar_lea.hbm %s0, %s229
          %s231 = sshll.u32 %s223, 4
          %s232 = int_to_ptr.vmem [resolvable:$true] %s231
          %237 = dma.hbm_to_vmem [thread:$0]  %s230, 512, %s232, %s220, 128, 128, 8
        $region36: #{tpu_custom_call.1} parent=31 // pred_fallthru
          _
      $region32: #{tpu_custom_call.1} parent=5 // pred_fallthru
        _
      %p238 = scmp.le.s32.totalorder 1, %s19
      %p239 = scmp.lt.s32.totalorder %s19, 5
      %p240 = pnand %p238, %p239
      %p241 = pneg %p240
      // Predicated region
      $region37: #{tpu_custom_call.1} parent=5 // pred_check
        _
      $region38: #{tpu_custom_call.1} parent=5 // pred_check_branch
        %243 = sbr.rel (%p240) target = $region40
      $region39: #{tpu_custom_call.1} parent=5 // pred_region
        %s244 = ssub.s32 %s19, 1
        %s245 = sand.u32 %s32, 1
        %s246 = scalar_lea.sflag [#allocation3], %s245
        %s247 = sand.u32 %s32, 1
        %s248 = smul.addr %s247, 32
        %s249 = scalar_lea.vmem [#allocation2], %s248
        // Predicated region
        $region41: #{tpu_custom_call.1} parent=39 // pred_check
          %p250 = pneg %p45
        $region42: #{tpu_custom_call.1} parent=39 // pred_check_branch
          %252 = sbr.rel (%p250) target = $region44
        $region43: #{tpu_custom_call.1} parent=39 // pred_region
          %253 = dma.done %s246, 512
        $region44: #{tpu_custom_call.1} parent=39 // pred_fallthru
          _
        // Predicated region
        $region45: #{tpu_custom_call.1} parent=39 // pred_check
          %p254 = pneg %p66
        $region46: #{tpu_custom_call.1} parent=39 // pred_check_branch
          %256 = sbr.rel (%p254) target = $region48
        $region47: #{tpu_custom_call.1} parent=39 // pred_region
          %257 = dma.done [#allocation6], 256
        $region48: #{tpu_custom_call.1} parent=39 // pred_fallthru
          _
        // Predicated region
        $region49: #{tpu_custom_call.1} parent=39 // pred_check
          %p258 = pneg %p108
        $region50: #{tpu_custom_call.1} parent=39 // pred_check_branch
          %260 = sbr.rel (%p258) target = $region52
        $region51: #{tpu_custom_call.1} parent=39 // pred_region
          %261 = dma.done [#allocation6], 9216
        $region52: #{tpu_custom_call.1} parent=39 // pred_fallthru
          _
        // Predicated region
        $region53: #{tpu_custom_call.1} parent=39 // pred_check
          %p262 = pneg %p129
        $region54: #{tpu_custom_call.1} parent=39 // pred_check_branch
          %264 = sbr.rel (%p262) target = $region56
        $region55: #{tpu_custom_call.1} parent=39 // pred_region
          %265 = dma.done [#allocation9], 3072
        $region56: #{tpu_custom_call.1} parent=39 // pred_fallthru
          _
        %s266 = sand.u32 %s32, 1
        %s267 = scalar_lea.sflag [#allocation3], %s266
        %s268 = sand.u32 %s32, 1
        %s269 = smul.addr %s268, 32
        %s270 = scalar_lea.vmem [#allocation2], %s269
        %p271 = pneg %p45
        %p272 = pneg %p42
        %p273 = pneg %p66
        %p274 = pneg %p63
        %p275 = pneg %p87
        %p276 = pneg %p84
        %p277 = pneg %p108
        %p278 = pneg %p105
        %p279 = pneg %p129
        %p280 = pneg %p126
        %p281 = pneg %p155
        %p282 = pneg %p152
        %s283 = sand.u32 %s142, 1
        %s284 = scalar_lea.sflag [#allocation4], %s283
        %s285 = sand.u32 %s142, 1
        %s286 = smul.addr %s285, 16
        %s287 = scalar_lea.vmem [#allocation10], %s286
        %s288 = smul.u32 2, %s24
        %s289 = smul.u32 2, %s24
        %v291 = vld [vmem:[%s249] sm:$0xff]
        %v292 = vld [vmem:[%s249 + $0x8] sm:$0xff]
        %v293 = vld [vmem:[%s249 + $0x10] sm:$0xff]
        %v294 = vld [vmem:[%s249 + $0x18] sm:$0xff]
        %v295 = vld [vmem:[#allocation5] sm:$0xff]
        %v296 = vld [vmem:[#allocation5 + $0x8] sm:$0xff]
        %v297 = vadd.f32 %v291, %v295
        %v298 = vadd.f32 %v292, %v296
        %v299 = vadd.f32 %v293, %v295
        %v300 = vadd.f32 %v294, %v296
        %v301 = vld [vmem:[#allocation7] sm:$0xff]
        %v302 = vld [vmem:[#allocation7 + $0x8] sm:$0xf]
        %v303 = vld [vmem:[#allocation7 + $0xc] sm:$0xff]
        %v304 = vld [vmem:[#allocation7 + $0x14] sm:$0xf]
        %v305 = vld [vmem:[#allocation7 + $0x18] sm:$0xff]
        %v306 = vld [vmem:[#allocation7 + $0x20] sm:$0xf]
        %v307 = vld [vmem:[#allocation7 + $0x24] sm:$0xff]
        %v308 = vld [vmem:[#allocation7 + $0x2c] sm:$0xf]
        %v309 = vld [vmem:[#allocation7 + $0x30] sm:$0xff]
        %v310 = vld [vmem:[#allocation7 + $0x38] sm:$0xf]
        %v311 = vld [vmem:[#allocation7 + $0x3c] sm:$0xff]
        %v312 = vld [vmem:[#allocation7 + $0x44] sm:$0xf]
        %v313 = vld [vmem:[#allocation7 + $0x48] sm:$0xff]
        %v314 = vld [vmem:[#allocation7 + $0x50] sm:$0xf]
        %v315 = vld [vmem:[#allocation7 + $0x54] sm:$0xff]
        %v316 = vld [vmem:[#allocation7 + $0x5c] sm:$0xf]
        %v317 = vld [vmem:[#allocation7 + $0x60] sm:$0xff]
        %v318 = vld [vmem:[#allocation7 + $0x68] sm:$0xf]
        %v319 = vld [vmem:[#allocation7 + $0x6c] sm:$0xff]
        %v320 = vld [vmem:[#allocation7 + $0x74] sm:$0xf]
        %v321 = vld [vmem:[#allocation7 + $0x78] sm:$0xff]
        %v322 = vld [vmem:[#allocation7 + $0x80] sm:$0xf]
        %v323 = vld [vmem:[#allocation7 + $0x84] sm:$0xff]
        %v324 = vld [vmem:[#allocation7 + $0x8c] sm:$0xf]
        %v325 = vld [vmem:[#allocation7 + $0x90] sm:$0xff]
        %v326 = vld [vmem:[#allocation7 + $0x98] sm:$0xf]
        %v327 = vld [vmem:[#allocation7 + $0x9c] sm:$0xff]
        %v328 = vld [vmem:[#allocation7 + $0xa4] sm:$0xf]
        %v329 = vld [vmem:[#allocation7 + $0xa8] sm:$0xff]
        %v330 = vld [vmem:[#allocation7 + $0xb0] sm:$0xf]
        %v331 = vld [vmem:[#allocation7 + $0xb4] sm:$0xff]
        %v332 = vld [vmem:[#allocation7 + $0xbc] sm:$0xf]
        %v333 = vld [vmem:[#allocation8] sm:$0xf]
        %v334 = vld [vmem:[#allocation8 + $0x4] sm:$0xf]
        %v335 = vld [vmem:[#allocation8 + $0x8] sm:$0xf]
        %v336 = vld [vmem:[#allocation8 + $0xc] sm:$0xf]
        %v337 = vld [vmem:[#allocation8 + $0x10] sm:$0xf]
        %v338 = vld [vmem:[#allocation8 + $0x14] sm:$0xf]
        %v339 = vld [vmem:[#allocation8 + $0x18] sm:$0xf]
        %v340 = vld [vmem:[#allocation8 + $0x1c] sm:$0xf]
        %v341 = vld [vmem:[#allocation8 + $0x20] sm:$0xf]
        %v342 = vld [vmem:[#allocation8 + $0x24] sm:$0xf]
        %v343 = vld [vmem:[#allocation8 + $0x28] sm:$0xf]
        %v344 = vld [vmem:[#allocation8 + $0x2c] sm:$0xf]
        %v345 = vld [vmem:[#allocation8 + $0x30] sm:$0xf]
        %v346 = vld [vmem:[#allocation8 + $0x34] sm:$0xf]
        %v347 = vld [vmem:[#allocation8 + $0x38] sm:$0xf]
        %v348 = vld [vmem:[#allocation8 + $0x3c] sm:$0xf]
        %v349 = vpack.c.bf16 %v298, %v297
        %v350 = vpack.c.bf16 %v300, %v299
        %v383 = vunpack.c.l.b16 %v301
        %v384 = vunpack.c.h.b16 %v301
        %v385 = vunpack.c.l.b16 %v302
        %v386 = vunpack.c.l.b16 %v303
        %v387 = vunpack.c.h.b16 %v303
        %v388 = vunpack.c.l.b16 %v304
        %v389 = vunpack.c.l.b16 %v305
        %v390 = vunpack.c.h.b16 %v305
        %v391 = vunpack.c.l.b16 %v306
        %v392 = vunpack.c.l.b16 %v307
        %v393 = vunpack.c.h.b16 %v307
        %v394 = vunpack.c.l.b16 %v308
        %v395 = vunpack.c.l.b16 %v309
        %v396 = vunpack.c.h.b16 %v309
        %v397 = vunpack.c.l.b16 %v310
        %v398 = vunpack.c.l.b16 %v311
        %v399 = vunpack.c.h.b16 %v311
        %v400 = vunpack.c.l.b16 %v312
        %v401 = vunpack.c.l.b16 %v313
        %v402 = vunpack.c.h.b16 %v313
        %v403 = vunpack.c.l.b16 %v314
        %v404 = vunpack.c.l.b16 %v315
        %v405 = vunpack.c.h.b16 %v315
        %v406 = vunpack.c.l.b16 %v316
        %v407 = vunpack.c.l.b16 %v317
        %v408 = vunpack.c.h.b16 %v317
        %v409 = vunpack.c.l.b16 %v318
        %v410 = vunpack.c.l.b16 %v319
        %v411 = vunpack.c.h.b16 %v319
        %v412 = vunpack.c.l.b16 %v320
        %v413 = vunpack.c.l.b16 %v321
        %v414 = vunpack.c.h.b16 %v321
        %v415 = vunpack.c.l.b16 %v322
        %v416 = vunpack.c.l.b16 %v323
        %v417 = vunpack.c.h.b16 %v323
        %v418 = vunpack.c.l.b16 %v324
        %v419 = vunpack.c.l.b16 %v325
        %v420 = vunpack.c.h.b16 %v325
        %v421 = vunpack.c.l.b16 %v326
        %v422 = vunpack.c.l.b16 %v327
        %v423 = vunpack.c.h.b16 %v327
        %v424 = vunpack.c.l.b16 %v328
        %v425 = vunpack.c.l.b16 %v329
        %v426 = vunpack.c.h.b16 %v329
        %v427 = vunpack.c.l.b16 %v330
        %v428 = vunpack.c.l.b16 %v331
        %v429 = vunpack.c.h.b16 %v331
        %v430 = vunpack.c.l.b16 %v332
        %v431 = vpack.c.b16 %v386, %v383
        %v432 = vpack.c.b16 %v387, %v384
        %v433 = vpack.c.b16 %v388, %v385
        %v434 = vpack.c.b16 %v392, %v389
        %v435 = vpack.c.b16 %v393, %v390
        %v436 = vpack.c.b16 %v394, %v391
        %v437 = vpack.c.b16 %v398, %v395
        %v438 = vpack.c.b16 %v399, %v396
        %v439 = vpack.c.b16 %v400, %v397
        %v440 = vpack.c.b16 %v404, %v401
        %v441 = vpack.c.b16 %v405, %v402
        %v442 = vpack.c.b16 %v406, %v403
        %v443 = vpack.c.b16 %v410, %v407
        %v444 = vpack.c.b16 %v411, %v408
        %v445 = vpack.c.b16 %v412, %v409
        %v446 = vpack.c.b16 %v416, %v413
        %v447 = vpack.c.b16 %v417, %v414
        %v448 = vpack.c.b16 %v418, %v415
        %v449 = vpack.c.b16 %v422, %v419
        %v450 = vpack.c.b16 %v423, %v420
        %v451 = vpack.c.b16 %v424, %v421
        %v452 = vpack.c.b16 %v428, %v425
        %v453 = vpack.c.b16 %v429, %v426
        %v454 = vpack.c.b16 %v430, %v427
        %479 = vmatprep.subr.bf16.mxu0 %v432
        %480 = vmatpush1.bf16.msra.mxu0 %v431
        %481 = vmatprep.subr.bf16.mxu0 %v435
        %482 = vmatpush1.bf16.msra.mxu0 %v434
        %483 = vmatprep.subr.bf16.mxu0 %v438
        %484 = vmatpush1.bf16.msra.mxu0 %v437
        %485 = vmatprep.subr.bf16.mxu0 %v441
        %486 = vmatpush1.bf16.msra.mxu0 %v440
        %487 = vmatprep.subr.bf16.mxu0 %v444
        %488 = vmatpush1.bf16.msra.mxu0 %v443
        %489 = vmatprep.subr.bf16.mxu0 %v447
        %490 = vmatpush1.bf16.msra.mxu0 %v446
        %491 = vmatprep.subr.bf16.mxu0 %v450
        %492 = vmatpush1.bf16.msra.mxu0 %v449
        %493 = vmatprep.subr.bf16.mxu0 %v453
        %494 = vmatpush1.bf16.msra.mxu0 %v452
        %495 = vmatprep.subr.bf16.mxu0 0
        %496 = vmatpush1.bf16.msra.mxu0 0
        %497 = vmatprep.subr.bf16.mxu0 0
        %498 = vmatpush1.bf16.msra.mxu0 0
        %499 = vmatprep.subr.bf16.mxu0 0
        %500 = vmatpush1.bf16.msra.mxu0 0
        %501 = vmatprep.subr.bf16.mxu0 0
        %502 = vmatpush1.bf16.msra.mxu0 0
        %503 = vmatprep.subr.bf16.mxu0 0
        %504 = vmatpush1.bf16.msra.mxu0 0
        %505 = vmatprep.subr.bf16.mxu0 0
        %506 = vmatpush1.bf16.msra.mxu0 0
        %507 = vmatprep.subr.bf16.mxu0 0
        %508 = vmatpush1.bf16.msra.mxu0 0
        %509 = vmatprep.subr.bf16.mxu0 0
        %510 = vmatpush1.bf16.msra.mxu0 0
        %511 = vmatprep.mubr.bf16.mxu0 0
        %512 = vmatmul.mubr.bf16.gmra.mrb[0].mxu0 %v349
        %v513 = vpop.f32.mrb[0].mxu0
        %v514 = vadd.f32 0.0, %v513
        %v515 = vpop.f32.mrb[0].mxu0
        %v516 = vadd.f32 0.0, %v515
        %v517 = vpop.f32.mrb[0].mxu0
        %v518 = vadd.f32 0.0, %v517
        %v519 = vpop.f32.mrb[0].mxu0
        %v520 = vadd.f32 0.0, %v519
        %521 = vmatprep.mubr.bf16.mxu0 0
        %522 = vmatmul.mubr.bf16.gmra.mrb[0].mxu0 %v350
        %v523 = vpop.f32.mrb[0].mxu0
        %v524 = vadd.f32 0.0, %v523
        %v525 = vpop.f32.mrb[0].mxu0
        %v526 = vadd.f32 0.0, %v525
        %v527 = vpop.f32.mrb[0].mxu0
        %v528 = vadd.f32 0.0, %v527
        %v529 = vpop.f32.mrb[0].mxu0
        %v530 = vadd.f32 0.0, %v529
        %531 = vdwg.mxu0
        %532 = vmatprep.subr.bf16.mxu0 0
        %533 = vmatpush1.bf16.msra.mxu0 %v433
        %534 = vmatprep.subr.bf16.mxu0 0
        %535 = vmatpush1.bf16.msra.mxu0 %v436
        %536 = vmatprep.subr.bf16.mxu0 0
        %537 = vmatpush1.bf16.msra.mxu0 %v439
        %538 = vmatprep.subr.bf16.mxu0 0
        %539 = vmatpush1.bf16.msra.mxu0 %v442
        %540 = vmatprep.subr.bf16.mxu0 0
        %541 = vmatpush1.bf16.msra.mxu0 %v445
        %542 = vmatprep.subr.bf16.mxu0 0
        %543 = vmatpush1.bf16.msra.mxu0 %v448
        %544 = vmatprep.subr.bf16.mxu0 0
        %545 = vmatpush1.bf16.msra.mxu0 %v451
        %546 = vmatprep.subr.bf16.mxu0 0
        %547 = vmatpush1.bf16.msra.mxu0 %v454
        %548 = vmatprep.subr.bf16.mxu0 0
        %549 = vmatpush1.bf16.msra.mxu0 0
        %550 = vmatprep.subr.bf16.mxu0 0
        %551 = vmatpush1.bf16.msra.mxu0 0
        %552 = vmatprep.subr.bf16.mxu0 0
        %553 = vmatpush1.bf16.msra.mxu0 0
        %554 = vmatprep.subr.bf16.mxu0 0
        %555 = vmatpush1.bf16.msra.mxu0 0
        %556 = vmatprep.subr.bf16.mxu0 0
        %557 = vmatpush1.bf16.msra.mxu0 0
        %558 = vmatprep.subr.bf16.mxu0 0
        %559 = vmatpush1.bf16.msra.mxu0 0
        %560 = vmatprep.subr.bf16.mxu0 0
        %561 = vmatpush1.bf16.msra.mxu0 0
        %562 = vmatprep.subr.bf16.mxu0 0
        %563 = vmatpush1.bf16.msra.mxu0 0
        %564 = vmatprep.mubr.bf16.mxu0 0
        %565 = vmatmul.mubr.bf16.gmra.mrb[0].mxu0 %v349
        %v566 = vpop.f32.mrb[0].mxu0
        %v567 = vadd.f32 0.0, %v566
        %v568 = vpop.f32.mrb[0].mxu0
        %v569 = vpop.f32.mrb[0].mxu0
        %v570 = vadd.f32 0.0, %v569
        %v571 = vpop.f32.mrb[0].mxu0
        %572 = vmatprep.mubr.bf16.mxu0 0
        %573 = vmatmul.mubr.bf16.gmra.mrb[0].mxu0 %v350
        %v574 = vpop.f32.mrb[0].mxu0
        %v575 = vadd.f32 0.0, %v574
        %v576 = vpop.f32.mrb[0].mxu0
        %v577 = vpop.f32.mrb[0].mxu0
        %v578 = vadd.f32 0.0, %v577
        %v579 = vpop.f32.mrb[0].mxu0
        %580 = vdwg.mxu0
        %v581 = vpack.c.bf16 %v518, %v514
        %v582 = vpack.c.bf16 %v528, %v524
        %v583 = vpack.c.bf16 %v520, %v516
        %v584 = vpack.c.bf16 %v530, %v526
        %v585 = vpack.c.bf16 %v570, %v567
        %v586 = vpack.c.bf16 %v578, %v575
        %vm587 = vcmask 261120
        %v589 = vsel %vm587, %v581, 0
        %v592 = vsel %vm587, %v583, 0
        %594 = vmatprep.subr.bf16.mxu0 0
        %595 = vmatpush1.bf16.xpose.msra.mxu0 %v592
        %596 = vmatprep.subr.bf16.mxu0 0
        %597 = vmatpush1.bf16.xpose.msra.mxu0 0
        %598 = vmatprep.subr.bf16.mxu0 0
        %599 = vmatpush1.bf16.xpose.msra.mxu0 0
        %600 = vmatprep.subr.bf16.mxu0 0
        %601 = vmatpush1.bf16.xpose.msra.mxu0 0
        %602 = vmatprep.subr.bf16.mxu0 0
        %603 = vmatpush1.bf16.xpose.msra.mxu0 0
        %604 = vmatprep.subr.bf16.mxu0 0
        %605 = vmatpush1.bf16.xpose.msra.mxu0 0
        %606 = vmatprep.subr.bf16.mxu0 0
        %607 = vmatpush1.bf16.xpose.msra.mxu0 0
        %608 = vmatprep.subr.bf16.mxu0 0
        %609 = vmatpush1.bf16.xpose.msra.mxu0 0
        %610 = vmatprep.subr.bf16.mxu0 0
        %611 = vmatpush1.bf16.xpose.msra.mxu0 0
        %612 = vmatprep.subr.bf16.mxu0 0
        %613 = vmatpush1.bf16.xpose.msra.mxu0 0
        %614 = vmatprep.subr.bf16.mxu0 0
        %615 = vmatpush1.bf16.xpose.msra.mxu0 0
        %616 = vmatprep.subr.bf16.mxu0 0
        %617 = vmatpush1.bf16.xpose.msra.mxu0 0
        %618 = vmatprep.subr.bf16.mxu0 0
        %619 = vmatpush1.bf16.xpose.msra.mxu0 0
        %620 = vmatprep.subr.bf16.mxu0 0
        %621 = vmatpush1.bf16.xpose.msra.mxu0 0
        %622 = vmatprep.subr.bf16.mxu0 0
        %623 = vmatpush1.bf16.xpose.msra.mxu0 0
        %624 = vmatprep.subr.bf16.mxu0 0
        %625 = vmatpush1.bf16.xpose.msra.mxu0 0
        %626 = vmatprep.mubr.bf16.mxu0 0
        %627 = vmatmul.mubr.bf16.gmra.mrb[0].mxu0 %v589
        %v628 = vpop.f32.mrb[0].mxu0
        %v629 = vadd.f32 0.0, %v628
        %v630 = vpop.f32.mrb[0].mxu0
        %v631 = vpop.f32.mrb[0].mxu0
        %v632 = vadd.f32 0.0, %v631
        %v633 = vpop.f32.mrb[0].mxu0
        %634 = vdwg.mxu0
        %v636 = vsel %vm587, %v582, 0
        %v639 = vsel %vm587, %v584, 0
        %641 = vmatprep.subr.bf16.mxu0 0
        %642 = vmatpush1.bf16.xpose.msra.mxu0 %v639
        %643 = vmatprep.subr.bf16.mxu0 0
        %644 = vmatpush1.bf16.xpose.msra.mxu0 0
        %645 = vmatprep.subr.bf16.mxu0 0
        %646 = vmatpush1.bf16.xpose.msra.mxu0 0
        %647 = vmatprep.subr.bf16.mxu0 0
        %648 = vmatpush1.bf16.xpose.msra.mxu0 0
        %649 = vmatprep.subr.bf16.mxu0 0
        %650 = vmatpush1.bf16.xpose.msra.mxu0 0
        %651 = vmatprep.subr.bf16.mxu0 0
        %652 = vmatpush1.bf16.xpose.msra.mxu0 0
        %653 = vmatprep.subr.bf16.mxu0 0
        %654 = vmatpush1.bf16.xpose.msra.mxu0 0
        %655 = vmatprep.subr.bf16.mxu0 0
        %656 = vmatpush1.bf16.xpose.msra.mxu0 0
        %657 = vmatprep.subr.bf16.mxu0 0
        %658 = vmatpush1.bf16.xpose.msra.mxu0 0
        %659 = vmatprep.subr.bf16.mxu0 0
        %660 = vmatpush1.bf16.xpose.msra.mxu0 0
        %661 = vmatprep.subr.bf16.mxu0 0
        %662 = vmatpush1.bf16.xpose.msra.mxu0 0
        %663 = vmatprep.subr.bf16.mxu0 0
        %664 = vmatpush1.bf16.xpose.msra.mxu0 0
        %665 = vmatprep.subr.bf16.mxu0 0
        %666 = vmatpush1.bf16.xpose.msra.mxu0 0
        %667 = vmatprep.subr.bf16.mxu0 0
        %668 = vmatpush1.bf16.xpose.msra.mxu0 0
        %669 = vmatprep.subr.bf16.mxu0 0
        %670 = vmatpush1.bf16.xpose.msra.mxu0 0
        %671 = vmatprep.subr.bf16.mxu0 0
        %672 = vmatpush1.bf16.xpose.msra.mxu0 0
        %673 = vmatprep.mubr.bf16.mxu0 0
        %674 = vmatmul.mubr.bf16.gmra.mrb[0].mxu0 %v636
        %v675 = vpop.f32.mrb[0].mxu0
        %v676 = vadd.f32 0.0, %v675
        %v677 = vpop.f32.mrb[0].mxu0
        %v678 = vpop.f32.mrb[0].mxu0
        %v679 = vadd.f32 0.0, %v678
        %v680 = vpop.f32.mrb[0].mxu0
        %681 = vdwg.mxu0
        %vm682 = vcmask 130048
        %v683 = vsel %vm682, %v629, -inf
        %684 = vmax.xlane.f32.xlu0 %v683
        %v685 = vpop.xlane.xlu0 %684
        %v686 = vsel %vm682, %v632, -inf
        %687 = vmax.xlane.f32.xlu0 %v686
        %v688 = vpop.xlane.xlu0 %687
        %v689 = vsel %vm682, %v676, -inf
        %690 = vmax.xlane.f32.xlu0 %v689
        %v691 = vpop.xlane.xlu0 %690
        %v692 = vsel %vm682, %v679, -inf
        %693 = vmax.xlane.f32.xlu0 %v692
        %v694 = vpop.xlane.xlu0 %693
        %v695 = vsub.f32 %v629, %v685
        %v696 = vsub.f32 %v632, %v688
        %v697 = vsub.f32 %v676, %v691
        %v698 = vsub.f32 %v679, %v694
        %v699 = vmul.f32 %v695, 1.442695
        %v700 = vpow.pop %v699
        %v701 = vmul.f32 %v696, 1.442695
        %v702 = vpow.pop %v701
        %v703 = vmul.f32 %v697, 1.442695
        %v704 = vpow.pop %v703
        %v705 = vmul.f32 %v698, 1.442695
        %v706 = vpow.pop %v705
        %v707 = vsel %vm682, %v700, 0.0
        %708 = vadd.xlane.f32.xlu0 %v707
        %v709 = vpop.xlane.xlu0 %708
        %v710 = vsel %vm682, %v702, 0.0
        %711 = vadd.xlane.f32.xlu0 %v710
        %v712 = vpop.xlane.xlu0 %711
        %v713 = vsel %vm682, %v704, 0.0
        %714 = vadd.xlane.f32.xlu0 %v713
        %v715 = vpop.xlane.xlu0 %714
        %v716 = vsel %vm682, %v706, 0.0
        %717 = vadd.xlane.f32.xlu0 %v716
        %v718 = vpop.xlane.xlu0 %717
        %v719 = vrcp.pop %v709
        %v720 = vmul.f32 %v700, %v719
        %v721 = vrcp.pop %v712
        %v722 = vmul.f32 %v702, %v721
        %v723 = vrcp.pop %v715
        %v724 = vmul.f32 %v704, %v723
        %v725 = vrcp.pop %v718
        %v726 = vmul.f32 %v706, %v725
        %v727 = vpack.c.bf16 %v722, %v720
        %v728 = vpack.c.bf16 %v726, %v724
        %v730 = vsel %vm682, %v727, 0
        %732 = vmatprep.subr.bf16.mxu0 0
        %733 = vmatpush1.bf16.msra.mxu0 %v585
        %734 = vmatprep.subr.bf16.mxu0 0
        %735 = vmatpush1.bf16.msra.mxu0 0
        %736 = vmatprep.subr.bf16.mxu0 0
        %737 = vmatpush1.bf16.msra.mxu0 0
        %738 = vmatprep.subr.bf16.mxu0 0
        %739 = vmatpush1.bf16.msra.mxu0 0
        %740 = vmatprep.subr.bf16.mxu0 0
        %741 = vmatpush1.bf16.msra.mxu0 0
        %742 = vmatprep.subr.bf16.mxu0 0
        %743 = vmatpush1.bf16.msra.mxu0 0
        %744 = vmatprep.subr.bf16.mxu0 0
        %745 = vmatpush1.bf16.msra.mxu0 0
        %746 = vmatprep.subr.bf16.mxu0 0
        %747 = vmatpush1.bf16.msra.mxu0 0
        %748 = vmatprep.subr.bf16.mxu0 0
        %749 = vmatpush1.bf16.msra.mxu0 0
        %750 = vmatprep.subr.bf16.mxu0 0
        %751 = vmatpush1.bf16.msra.mxu0 0
        %752 = vmatprep.subr.bf16.mxu0 0
        %753 = vmatpush1.bf16.msra.mxu0 0
        %754 = vmatprep.subr.bf16.mxu0 0
        %755 = vmatpush1.bf16.msra.mxu0 0
        %756 = vmatprep.subr.bf16.mxu0 0
        %757 = vmatpush1.bf16.msra.mxu0 0
        %758 = vmatprep.subr.bf16.mxu0 0
        %759 = vmatpush1.bf16.msra.mxu0 0
        %760 = vmatprep.subr.bf16.mxu0 0
        %761 = vmatpush1.bf16.msra.mxu0 0
        %762 = vmatprep.subr.bf16.mxu0 0
        %763 = vmatpush1.bf16.msra.mxu0 0
        %764 = vmatprep.mubr.bf16.mxu0 0
        %765 = vmatmul.mubr.bf16.gmra.mrb[0].mxu0 %v730
        %v766 = vpop.f32.mrb[0].mxu0
        %v767 = vadd.f32 0.0, %v766
        %v768 = vpop.f32.mrb[0].mxu0
        %v769 = vpop.f32.mrb[0].mxu0
        %v770 = vadd.f32 0.0, %v769
        %v771 = vpop.f32.mrb[0].mxu0
        %772 = vdwg.mxu0
        %v774 = vsel %vm682, %v728, 0
        %776 = vmatprep.subr.bf16.mxu0 0
        %777 = vmatpush1.bf16.msra.mxu0 %v586
        %778 = vmatprep.subr.bf16.mxu0 0
        %779 = vmatpush1.bf16.msra.mxu0 0
        %780 = vmatprep.subr.bf16.mxu0 0
        %781 = vmatpush1.bf16.msra.mxu0 0
        %782 = vmatprep.subr.bf16.mxu0 0
        %783 = vmatpush1.bf16.msra.mxu0 0
        %784 = vmatprep.subr.bf16.mxu0 0
        %785 = vmatpush1.bf16.msra.mxu0 0
        %786 = vmatprep.subr.bf16.mxu0 0
        %787 = vmatpush1.bf16.msra.mxu0 0
        %788 = vmatprep.subr.bf16.mxu0 0
        %789 = vmatpush1.bf16.msra.mxu0 0
        %790 = vmatprep.subr.bf16.mxu0 0
        %791 = vmatpush1.bf16.msra.mxu0 0
        %792 = vmatprep.subr.bf16.mxu0 0
        %793 = vmatpush1.bf16.msra.mxu0 0
        %794 = vmatprep.subr.bf16.mxu0 0
        %795 = vmatpush1.bf16.msra.mxu0 0
        %796 = vmatprep.subr.bf16.mxu0 0
        %797 = vmatpush1.bf16.msra.mxu0 0
        %798 = vmatprep.subr.bf16.mxu0 0
        %799 = vmatpush1.bf16.msra.mxu0 0
        %800 = vmatprep.subr.bf16.mxu0 0
        %801 = vmatpush1.bf16.msra.mxu0 0
        %802 = vmatprep.subr.bf16.mxu0 0
        %803 = vmatpush1.bf16.msra.mxu0 0
        %804 = vmatprep.subr.bf16.mxu0 0
        %805 = vmatpush1.bf16.msra.mxu0 0
        %806 = vmatprep.subr.bf16.mxu0 0
        %807 = vmatpush1.bf16.msra.mxu0 0
        %808 = vmatprep.mubr.bf16.mxu0 0
        %809 = vmatmul.mubr.bf16.gmra.mrb[0].mxu0 %v774
        %v810 = vpop.f32.mrb[0].mxu0
        %v811 = vadd.f32 0.0, %v810
        %v812 = vpop.f32.mrb[0].mxu0
        %v813 = vpop.f32.mrb[0].mxu0
        %v814 = vadd.f32 0.0, %v813
        %v815 = vpop.f32.mrb[0].mxu0
        %816 = vdwg.mxu0
        %818 = vrot.lane.b32.xlu0 %v581, 96
        %v819 = vpop.permute.xlu0 %818
        %821 = vrot.lane.b32.xlu0 %v583, 96
        %v822 = vpop.permute.xlu0 %821
        %v824 = vsel %vm587, %v819, 0
        %v827 = vsel %vm587, %v822, 0
        %829 = vmatprep.subr.bf16.mxu0 0
        %830 = vmatpush1.bf16.xpose.msra.mxu0 %v827
        %831 = vmatprep.subr.bf16.mxu0 0
        %832 = vmatpush1.bf16.xpose.msra.mxu0 0
        %833 = vmatprep.subr.bf16.mxu0 0
        %834 = vmatpush1.bf16.xpose.msra.mxu0 0
        %835 = vmatprep.subr.bf16.mxu0 0
        %836 = vmatpush1.bf16.xpose.msra.mxu0 0
        %837 = vmatprep.subr.bf16.mxu0 0
        %838 = vmatpush1.bf16.xpose.msra.mxu0 0
        %839 = vmatprep.subr.bf16.mxu0 0
        %840 = vmatpush1.bf16.xpose.msra.mxu0 0
        %841 = vmatprep.subr.bf16.mxu0 0
        %842 = vmatpush1.bf16.xpose.msra.mxu0 0
        %843 = vmatprep.subr.bf16.mxu0 0
        %844 = vmatpush1.bf16.xpose.msra.mxu0 0
        %845 = vmatprep.subr.bf16.mxu0 0
        %846 = vmatpush1.bf16.xpose.msra.mxu0 0
        %847 = vmatprep.subr.bf16.mxu0 0
        %848 = vmatpush1.bf16.xpose.msra.mxu0 0
        %849 = vmatprep.subr.bf16.mxu0 0
        %850 = vmatpush1.bf16.xpose.msra.mxu0 0
        %851 = vmatprep.subr.bf16.mxu0 0
        %852 = vmatpush1.bf16.xpose.msra.mxu0 0
        %853 = vmatprep.subr.bf16.mxu0 0
        %854 = vmatpush1.bf16.xpose.msra.mxu0 0
        %855 = vmatprep.subr.bf16.mxu0 0
        %856 = vmatpush1.bf16.xpose.msra.mxu0 0
        %857 = vmatprep.subr.bf16.mxu0 0
        %858 = vmatpush1.bf16.xpose.msra.mxu0 0
        %859 = vmatprep.subr.bf16.mxu0 0
        %860 = vmatpush1.bf16.xpose.msra.mxu0 0
        %861 = vmatprep.mubr.bf16.mxu0 0
        %862 = vmatmul.mubr.bf16.gmra.mrb[0].mxu0 %v824
        %v863 = vpop.f32.mrb[0].mxu0
        %v864 = vadd.f32 0.0, %v863
        %v865 = vpop.f32.mrb[0].mxu0
        %v866 = vpop.f32.mrb[0].mxu0
        %v867 = vadd.f32 0.0, %v866
        %v868 = vpop.f32.mrb[0].mxu0
        %869 = vdwg.mxu0
        %871 = vrot.lane.b32.xlu0 %v582, 96
        %v872 = vpop.permute.xlu0 %871
        %874 = vrot.lane.b32.xlu0 %v584, 96
        %v875 = vpop.permute.xlu0 %874
        %v877 = vsel %vm587, %v872, 0
        %v880 = vsel %vm587, %v875, 0
        %882 = vmatprep.subr.bf16.mxu0 0
        %883 = vmatpush1.bf16.xpose.msra.mxu0 %v880
        %884 = vmatprep.subr.bf16.mxu0 0
        %885 = vmatpush1.bf16.xpose.msra.mxu0 0
        %886 = vmatprep.subr.bf16.mxu0 0
        %887 = vmatpush1.bf16.xpose.msra.mxu0 0
        %888 = vmatprep.subr.bf16.mxu0 0
        %889 = vmatpush1.bf16.xpose.msra.mxu0 0
        %890 = vmatprep.subr.bf16.mxu0 0
        %891 = vmatpush1.bf16.xpose.msra.mxu0 0
        %892 = vmatprep.subr.bf16.mxu0 0
        %893 = vmatpush1.bf16.xpose.msra.mxu0 0
        %894 = vmatprep.subr.bf16.mxu0 0
        %895 = vmatpush1.bf16.xpose.msra.mxu0 0
        %896 = vmatprep.subr.bf16.mxu0 0
        %897 = vmatpush1.bf16.xpose.msra.mxu0 0
        %898 = vmatprep.subr.bf16.mxu0 0
        %899 = vmatpush1.bf16.xpose.msra.mxu0 0
        %900 = vmatprep.subr.bf16.mxu0 0
        %901 = vmatpush1.bf16.xpose.msra.mxu0 0
        %902 = vmatprep.subr.bf16.mxu0 0
        %903 = vmatpush1.bf16.xpose.msra.mxu0 0
        %904 = vmatprep.subr.bf16.mxu0 0
        %905 = vmatpush1.bf16.xpose.msra.mxu0 0
        %906 = vmatprep.subr.bf16.mxu0 0
        %907 = vmatpush1.bf16.xpose.msra.mxu0 0
        %908 = vmatprep.subr.bf16.mxu0 0
        %909 = vmatpush1.bf16.xpose.msra.mxu0 0
        %910 = vmatprep.subr.bf16.mxu0 0
        %911 = vmatpush1.bf16.xpose.msra.mxu0 0
        %912 = vmatprep.subr.bf16.mxu0 0
        %913 = vmatpush1.bf16.xpose.msra.mxu0 0
        %914 = vmatprep.mubr.bf16.mxu0 0
        %915 = vmatmul.mubr.bf16.gmra.mrb[0].mxu0 %v877
        %v916 = vpop.f32.mrb[0].mxu0
        %v917 = vadd.f32 0.0, %v916
        %v918 = vpop.f32.mrb[0].mxu0
        %v919 = vpop.f32.mrb[0].mxu0
        %v920 = vadd.f32 0.0, %v919
        %v921 = vpop.f32.mrb[0].mxu0
        %922 = vdwg.mxu0
        %v923 = vsel %vm682, %v864, -inf
        %924 = vmax.xlane.f32.xlu0 %v923
        %v925 = vpop.xlane.xlu0 %924
        %v926 = vsel %vm682, %v867, -inf
        %927 = vmax.xlane.f32.xlu0 %v926
        %v928 = vpop.xlane.xlu0 %927
        %v929 = vsel %vm682, %v917, -inf
        %930 = vmax.xlane.f32.xlu0 %v929
        %v931 = vpop.xlane.xlu0 %930
        %v932 = vsel %vm682, %v920, -inf
        %933 = vmax.xlane.f32.xlu0 %v932
        %v934 = vpop.xlane.xlu0 %933
        %v935 = vsub.f32 %v864, %v925
        %v936 = vsub.f32 %v867, %v928
        %v937 = vsub.f32 %v917, %v931
        %v938 = vsub.f32 %v920, %v934
        %v939 = vmul.f32 %v935, 1.442695
        %v940 = vpow.pop %v939
        %v941 = vmul.f32 %v936, 1.442695
        %v942 = vpow.pop %v941
        %v943 = vmul.f32 %v937, 1.442695
        %v944 = vpow.pop %v943
        %v945 = vmul.f32 %v938, 1.442695
        %v946 = vpow.pop %v945
        %v947 = vsel %vm682, %v940, 0.0
        %948 = vadd.xlane.f32.xlu0 %v947
        %v949 = vpop.xlane.xlu0 %948
        %v950 = vsel %vm682, %v942, 0.0
        %951 = vadd.xlane.f32.xlu0 %v950
        %v952 = vpop.xlane.xlu0 %951
        %v953 = vsel %vm682, %v944, 0.0
        %954 = vadd.xlane.f32.xlu0 %v953
        %v955 = vpop.xlane.xlu0 %954
        %v956 = vsel %vm682, %v946, 0.0
        %957 = vadd.xlane.f32.xlu0 %v956
        %v958 = vpop.xlane.xlu0 %957
        %v959 = vrcp.pop %v949
        %v960 = vmul.f32 %v940, %v959
        %v961 = vrcp.pop %v952
        %v962 = vmul.f32 %v942, %v961
        %v963 = vrcp.pop %v955
        %v964 = vmul.f32 %v944, %v963
        %v965 = vrcp.pop %v958
        %v966 = vmul.f32 %v946, %v965
        %v967 = vpack.c.bf16 %v962, %v960
        %v968 = vpack.c.bf16 %v966, %v964
        %970 = vrot.lane.b32.xlu0 %v585, 96
        %v971 = vpop.permute.xlu0 %970
        %v974 = vsel %vm682, %v967, 0
        %976 = vmatprep.subr.bf16.mxu0 0
        %977 = vmatpush1.bf16.msra.mxu0 %v971
        %978 = vmatprep.subr.bf16.mxu0 0
        %979 = vmatpush1.bf16.msra.mxu0 0
        %980 = vmatprep.subr.bf16.mxu0 0
        %981 = vmatpush1.bf16.msra.mxu0 0
        %982 = vmatprep.subr.bf16.mxu0 0
        %983 = vmatpush1.bf16.msra.mxu0 0
        %984 = vmatprep.subr.bf16.mxu0 0
        %985 = vmatpush1.bf16.msra.mxu0 0
        %986 = vmatprep.subr.bf16.mxu0 0
        %987 = vmatpush1.bf16.msra.mxu0 0
        %988 = vmatprep.subr.bf16.mxu0 0
        %989 = vmatpush1.bf16.msra.mxu0 0
        %990 = vmatprep.subr.bf16.mxu0 0
        %991 = vmatpush1.bf16.msra.mxu0 0
        %992 = vmatprep.subr.bf16.mxu0 0
        %993 = vmatpush1.bf16.msra.mxu0 0
        %994 = vmatprep.subr.bf16.mxu0 0
        %995 = vmatpush1.bf16.msra.mxu0 0
        %996 = vmatprep.subr.bf16.mxu0 0
        %997 = vmatpush1.bf16.msra.mxu0 0
        %998 = vmatprep.subr.bf16.mxu0 0
        %999 = vmatpush1.bf16.msra.mxu0 0
        %1000 = vmatprep.subr.bf16.mxu0 0
        %1001 = vmatpush1.bf16.msra.mxu0 0
        %1002 = vmatprep.subr.bf16.mxu0 0
        %1003 = vmatpush1.bf16.msra.mxu0 0
        %1004 = vmatprep.subr.bf16.mxu0 0
        %1005 = vmatpush1.bf16.msra.mxu0 0
        %1006 = vmatprep.subr.bf16.mxu0 0
        %1007 = vmatpush1.bf16.msra.mxu0 0
        %1008 = vmatprep.mubr.bf16.mxu0 0
        %1009 = vmatmul.mubr.bf16.gmra.mrb[0].mxu0 %v974
        %v1010 = vpop.f32.mrb[0].mxu0
        %v1011 = vadd.f32 0.0, %v1010
        %v1012 = vpop.f32.mrb[0].mxu0
        %v1013 = vpop.f32.mrb[0].mxu0
        %v1014 = vadd.f32 0.0, %v1013
        %v1015 = vpop.f32.mrb[0].mxu0
        %1016 = vdwg.mxu0
        %1018 = vrot.lane.b32.xlu0 %v586, 96
        %v1019 = vpop.permute.xlu0 %1018
        %v1022 = vsel %vm682, %v968, 0
        %1024 = vmatprep.subr.bf16.mxu0 0
        %1025 = vmatpush1.bf16.msra.mxu0 %v1019
        %1026 = vmatprep.subr.bf16.mxu0 0
        %1027 = vmatpush1.bf16.msra.mxu0 0
        %1028 = vmatprep.subr.bf16.mxu0 0
        %1029 = vmatpush1.bf16.msra.mxu0 0
        %1030 = vmatprep.subr.bf16.mxu0 0
        %1031 = vmatpush1.bf16.msra.mxu0 0
        %1032 = vmatprep.subr.bf16.mxu0 0
        %1033 = vmatpush1.bf16.msra.mxu0 0
        %1034 = vmatprep.subr.bf16.mxu0 0
        %1035 = vmatpush1.bf16.msra.mxu0 0
        %1036 = vmatprep.subr.bf16.mxu0 0
        %1037 = vmatpush1.bf16.msra.mxu0 0
        %1038 = vmatprep.subr.bf16.mxu0 0
        %1039 = vmatpush1.bf16.msra.mxu0 0
        %1040 = vmatprep.subr.bf16.mxu0 0
        %1041 = vmatpush1.bf16.msra.mxu0 0
        %1042 = vmatprep.subr.bf16.mxu0 0
        %1043 = vmatpush1.bf16.msra.mxu0 0
        %1044 = vmatprep.subr.bf16.mxu0 0
        %1045 = vmatpush1.bf16.msra.mxu0 0
        %1046 = vmatprep.subr.bf16.mxu0 0
        %1047 = vmatpush1.bf16.msra.mxu0 0
        %1048 = vmatprep.subr.bf16.mxu0 0
        %1049 = vmatpush1.bf16.msra.mxu0 0
        %1050 = vmatprep.subr.bf16.mxu0 0
        %1051 = vmatpush1.bf16.msra.mxu0 0
        %1052 = vmatprep.subr.bf16.mxu0 0
        %1053 = vmatpush1.bf16.msra.mxu0 0
        %1054 = vmatprep.subr.bf16.mxu0 0
        %1055 = vmatpush1.bf16.msra.mxu0 0
        %1056 = vmatprep.mubr.bf16.mxu0 0
        %1057 = vmatmul.mubr.bf16.gmra.mrb[0].mxu0 %v1022
        %v1058 = vpop.f32.mrb[0].mxu0
        %v1059 = vadd.f32 0.0, %v1058
        %v1060 = vpop.f32.mrb[0].mxu0
        %v1061 = vpop.f32.mrb[0].mxu0
        %v1062 = vadd.f32 0.0, %v1061
        %v1063 = vpop.f32.mrb[0].mxu0
        %1064 = vdwg.mxu0
        %1065 = vrot.lane.b32.xlu0 %v581, 64
        %v1066 = vpop.permute.xlu0 %1065
        %1067 = vrot.lane.b32.xlu0 %v583, 64
        %v1068 = vpop.permute.xlu0 %1067
        %v1070 = vsel %vm587, %v1066, 0
        %v1073 = vsel %vm587, %v1068, 0
        %1075 = vmatprep.subr.bf16.mxu0 0
        %1076 = vmatpush1.bf16.xpose.msra.mxu0 %v1073
        %1077 = vmatprep.subr.bf16.mxu0 0
        %1078 = vmatpush1.bf16.xpose.msra.mxu0 0
        %1079 = vmatprep.subr.bf16.mxu0 0
        %1080 = vmatpush1.bf16.xpose.msra.mxu0 0
        %1081 = vmatprep.subr.bf16.mxu0 0
        %1082 = vmatpush1.bf16.xpose.msra.mxu0 0
        %1083 = vmatprep.subr.bf16.mxu0 0
        %1084 = vmatpush1.bf16.xpose.msra.mxu0 0
        %1085 = vmatprep.subr.bf16.mxu0 0
        %1086 = vmatpush1.bf16.xpose.msra.mxu0 0
        %1087 = vmatprep.subr.bf16.mxu0 0
        %1088 = vmatpush1.bf16.xpose.msra.mxu0 0
        %1089 = vmatprep.subr.bf16.mxu0 0
        %1090 = vmatpush1.bf16.xpose.msra.mxu0 0
        %1091 = vmatprep.subr.bf16.mxu0 0
        %1092 = vmatpush1.bf16.xpose.msra.mxu0 0
        %1093 = vmatprep.subr.bf16.mxu0 0
        %1094 = vmatpush1.bf16.xpose.msra.mxu0 0
        %1095 = vmatprep.subr.bf16.mxu0 0
        %1096 = vmatpush1.bf16.xpose.msra.mxu0 0
        %1097 = vmatprep.subr.bf16.mxu0 0
        %1098 = vmatpush1.bf16.xpose.msra.mxu0 0
        %1099 = vmatprep.subr.bf16.mxu0 0
        %1100 = vmatpush1.bf16.xpose.msra.mxu0 0
        %1101 = vmatprep.subr.bf16.mxu0 0
        %1102 = vmatpush1.bf16.xpose.msra.mxu0 0
        %1103 = vmatprep.subr.bf16.mxu0 0
        %1104 = vmatpush1.bf16.xpose.msra.mxu0 0
        %1105 = vmatprep.subr.bf16.mxu0 0
        %1106 = vmatpush1.bf16.xpose.msra.mxu0 0
        %1107 = vmatprep.mubr.bf16.mxu0 0
        %1108 = vmatmul.mubr.bf16.gmra.mrb[0].mxu0 %v1070
        %v1109 = vpop.f32.mrb[0].mxu0
        %v1110 = vadd.f32 0.0, %v1109
        %v1111 = vpop.f32.mrb[0].mxu0
        %v1112 = vpop.f32.mrb[0].mxu0
        %v1113 = vadd.f32 0.0, %v1112
        %v1114 = vpop.f32.mrb[0].mxu0
        %1115 = vdwg.mxu0
        %1116 = vrot.lane.b32.xlu0 %v582, 64
        %v1117 = vpop.permute.xlu0 %1116
        %1118 = vrot.lane.b32.xlu0 %v584, 64
        %v1119 = vpop.permute.xlu0 %1118
        %v1121 = vsel %vm587, %v1117, 0
        %v1124 = vsel %vm587, %v1119, 0
        %1126 = vmatprep.subr.bf16.mxu0 0
        %1127 = vmatpush1.bf16.xpose.msra.mxu0 %v1124
        %1128 = vmatprep.subr.bf16.mxu0 0
        %1129 = vmatpush1.bf16.xpose.msra.mxu0 0
        %1130 = vmatprep.subr.bf16.mxu0 0
        %1131 = vmatpush1.bf16.xpose.msra.mxu0 0
        %1132 = vmatprep.subr.bf16.mxu0 0
        %1133 = vmatpush1.bf16.xpose.msra.mxu0 0
        %1134 = vmatprep.subr.bf16.mxu0 0
        %1135 = vmatpush1.bf16.xpose.msra.mxu0 0
        %1136 = vmatprep.subr.bf16.mxu0 0
        %1137 = vmatpush1.bf16.xpose.msra.mxu0 0
        %1138 = vmatprep.subr.bf16.mxu0 0
        %1139 = vmatpush1.bf16.xpose.msra.mxu0 0
        %1140 = vmatprep.subr.bf16.mxu0 0
        %1141 = vmatpush1.bf16.xpose.msra.mxu0 0
        %1142 = vmatprep.subr.bf16.mxu0 0
        %1143 = vmatpush1.bf16.xpose.msra.mxu0 0
        %1144 = vmatprep.subr.bf16.mxu0 0
        %1145 = vmatpush1.bf16.xpose.msra.mxu0 0
        %1146 = vmatprep.subr.bf16.mxu0 0
        %1147 = vmatpush1.bf16.xpose.msra.mxu0 0
        %1148 = vmatprep.subr.bf16.mxu0 0
        %1149 = vmatpush1.bf16.xpose.msra.mxu0 0
        %1150 = vmatprep.subr.bf16.mxu0 0
        %1151 = vmatpush1.bf16.xpose.msra.mxu0 0
        %1152 = vmatprep.subr.bf16.mxu0 0
        %1153 = vmatpush1.bf16.xpose.msra.mxu0 0
        %1154 = vmatprep.subr.bf16.mxu0 0
        %1155 = vmatpush1.bf16.xpose.msra.mxu0 0
        %1156 = vmatprep.subr.bf16.mxu0 0
        %1157 = vmatpush1.bf16.xpose.msra.mxu0 0
        %1158 = vmatprep.mubr.bf16.mxu0 0
        %1159 = vmatmul.mubr.bf16.gmra.mrb[0].mxu0 %v1121
        %v1160 = vpop.f32.mrb[0].mxu0
        %v1161 = vadd.f32 0.0, %v1160
        %v1162 = vpop.f32.mrb[0].mxu0
        %v1163 = vpop.f32.mrb[0].mxu0
        %v1164 = vadd.f32 0.0, %v1163
        %v1165 = vpop.f32.mrb[0].mxu0
        %1166 = vdwg.mxu0
        %v1167 = vsel %vm682, %v1110, -inf
        %1168 = vmax.xlane.f32.xlu0 %v1167
        %v1169 = vpop.xlane.xlu0 %1168
        %v1170 = vsel %vm682, %v1113, -inf
        %1171 = vmax.xlane.f32.xlu0 %v1170
        %v1172 = vpop.xlane.xlu0 %1171
        %v1173 = vsel %vm682, %v1161, -inf
        %1174 = vmax.xlane.f32.xlu0 %v1173
        %v1175 = vpop.xlane.xlu0 %1174
        %v1176 = vsel %vm682, %v1164, -inf
        %1177 = vmax.xlane.f32.xlu0 %v1176
        %v1178 = vpop.xlane.xlu0 %1177
        %v1179 = vsub.f32 %v1110, %v1169
        %v1180 = vsub.f32 %v1113, %v1172
        %v1181 = vsub.f32 %v1161, %v1175
        %v1182 = vsub.f32 %v1164, %v1178
        %v1183 = vmul.f32 %v1179, 1.442695
        %v1184 = vpow.pop %v1183
        %v1185 = vmul.f32 %v1180, 1.442695
        %v1186 = vpow.pop %v1185
        %v1187 = vmul.f32 %v1181, 1.442695
        %v1188 = vpow.pop %v1187
        %v1189 = vmul.f32 %v1182, 1.442695
        %v1190 = vpow.pop %v1189
        %v1191 = vsel %vm682, %v1184, 0.0
        %1192 = vadd.xlane.f32.xlu0 %v1191
        %v1193 = vpop.xlane.xlu0 %1192
        %v1194 = vsel %vm682, %v1186, 0.0
        %1195 = vadd.xlane.f32.xlu0 %v1194
        %v1196 = vpop.xlane.xlu0 %1195
        %v1197 = vsel %vm682, %v1188, 0.0
        %1198 = vadd.xlane.f32.xlu0 %v1197
        %v1199 = vpop.xlane.xlu0 %1198
        %v1200 = vsel %vm682, %v1190, 0.0
        %1201 = vadd.xlane.f32.xlu0 %v1200
        %v1202 = vpop.xlane.xlu0 %1201
        %v1203 = vrcp.pop %v1193
        %v1204 = vmul.f32 %v1184, %v1203
        %v1205 = vrcp.pop %v1196
        %v1206 = vmul.f32 %v1186, %v1205
        %v1207 = vrcp.pop %v1199
        %v1208 = vmul.f32 %v1188, %v1207
        %v1209 = vrcp.pop %v1202
        %v1210 = vmul.f32 %v1190, %v1209
        %v1211 = vpack.c.bf16 %v1206, %v1204
        %v1212 = vpack.c.bf16 %v1210, %v1208
        %1213 = vrot.lane.b32.xlu0 %v585, 64
        %v1214 = vpop.permute.xlu0 %1213
        %v1217 = vsel %vm682, %v1211, 0
        %1219 = vmatprep.subr.bf16.mxu0 0
        %1220 = vmatpush1.bf16.msra.mxu0 %v1214
        %1221 = vmatprep.subr.bf16.mxu0 0
        %1222 = vmatpush1.bf16.msra.mxu0 0
        %1223 = vmatprep.subr.bf16.mxu0 0
        %1224 = vmatpush1.bf16.msra.mxu0 0
        %1225 = vmatprep.subr.bf16.mxu0 0
        %1226 = vmatpush1.bf16.msra.mxu0 0
        %1227 = vmatprep.subr.bf16.mxu0 0
        %1228 = vmatpush1.bf16.msra.mxu0 0
        %1229 = vmatprep.subr.bf16.mxu0 0
        %1230 = vmatpush1.bf16.msra.mxu0 0
        %1231 = vmatprep.subr.bf16.mxu0 0
        %1232 = vmatpush1.bf16.msra.mxu0 0
        %1233 = vmatprep.subr.bf16.mxu0 0
        %1234 = vmatpush1.bf16.msra.mxu0 0
        %1235 = vmatprep.subr.bf16.mxu0 0
        %1236 = vmatpush1.bf16.msra.mxu0 0
        %1237 = vmatprep.subr.bf16.mxu0 0
        %1238 = vmatpush1.bf16.msra.mxu0 0
        %1239 = vmatprep.subr.bf16.mxu0 0
        %1240 = vmatpush1.bf16.msra.mxu0 0
        %1241 = vmatprep.subr.bf16.mxu0 0
        %1242 = vmatpush1.bf16.msra.mxu0 0
        %1243 = vmatprep.subr.bf16.mxu0 0
        %1244 = vmatpush1.bf16.msra.mxu0 0
        %1245 = vmatprep.subr.bf16.mxu0 0
        %1246 = vmatpush1.bf16.msra.mxu0 0
        %1247 = vmatprep.subr.bf16.mxu0 0
        %1248 = vmatpush1.bf16.msra.mxu0 0
        %1249 = vmatprep.subr.bf16.mxu0 0
        %1250 = vmatpush1.bf16.msra.mxu0 0
        %1251 = vmatprep.mubr.bf16.mxu0 0
        %1252 = vmatmul.mubr.bf16.gmra.mrb[0].mxu0 %v1217
        %v1253 = vpop.f32.mrb[0].mxu0
        %v1254 = vadd.f32 0.0, %v1253
        %v1255 = vpop.f32.mrb[0].mxu0
        %v1256 = vpop.f32.mrb[0].mxu0
        %v1257 = vadd.f32 0.0, %v1256
        %v1258 = vpop.f32.mrb[0].mxu0
        %1259 = vdwg.mxu0
        %1260 = vrot.lane.b32.xlu0 %v586, 64
        %v1261 = vpop.permute.xlu0 %1260
        %v1264 = vsel %vm682, %v1212, 0
        %1266 = vmatprep.subr.bf16.mxu0 0
        %1267 = vmatpush1.bf16.msra.mxu0 %v1261
        %1268 = vmatprep.subr.bf16.mxu0 0
        %1269 = vmatpush1.bf16.msra.mxu0 0
        %1270 = vmatprep.subr.bf16.mxu0 0
        %1271 = vmatpush1.bf16.msra.mxu0 0
        %1272 = vmatprep.subr.bf16.mxu0 0
        %1273 = vmatpush1.bf16.msra.mxu0 0
        %1274 = vmatprep.subr.bf16.mxu0 0
        %1275 = vmatpush1.bf16.msra.mxu0 0
        %1276 = vmatprep.subr.bf16.mxu0 0
        %1277 = vmatpush1.bf16.msra.mxu0 0
        %1278 = vmatprep.subr.bf16.mxu0 0
        %1279 = vmatpush1.bf16.msra.mxu0 0
        %1280 = vmatprep.subr.bf16.mxu0 0
        %1281 = vmatpush1.bf16.msra.mxu0 0
        %1282 = vmatprep.subr.bf16.mxu0 0
        %1283 = vmatpush1.bf16.msra.mxu0 0
        %1284 = vmatprep.subr.bf16.mxu0 0
        %1285 = vmatpush1.bf16.msra.mxu0 0
        %1286 = vmatprep.subr.bf16.mxu0 0
        %1287 = vmatpush1.bf16.msra.mxu0 0
        %1288 = vmatprep.subr.bf16.mxu0 0
        %1289 = vmatpush1.bf16.msra.mxu0 0
        %1290 = vmatprep.subr.bf16.mxu0 0
        %1291 = vmatpush1.bf16.msra.mxu0 0
        %1292 = vmatprep.subr.bf16.mxu0 0
        %1293 = vmatpush1.bf16.msra.mxu0 0
        %1294 = vmatprep.subr.bf16.mxu0 0
        %1295 = vmatpush1.bf16.msra.mxu0 0
        %1296 = vmatprep.subr.bf16.mxu0 0
        %1297 = vmatpush1.bf16.msra.mxu0 0
        %1298 = vmatprep.mubr.bf16.mxu0 0
        %1299 = vmatmul.mubr.bf16.gmra.mrb[0].mxu0 %v1264
        %v1300 = vpop.f32.mrb[0].mxu0
        %v1301 = vadd.f32 0.0, %v1300
        %v1302 = vpop.f32.mrb[0].mxu0
        %v1303 = vpop.f32.mrb[0].mxu0
        %v1304 = vadd.f32 0.0, %v1303
        %v1305 = vpop.f32.mrb[0].mxu0
        %1306 = vdwg.mxu0
        %1307 = vrot.lane.b32.xlu0 %v581, 32
        %v1308 = vpop.permute.xlu0 %1307
        %1309 = vrot.lane.b32.xlu0 %v583, 32
        %v1310 = vpop.permute.xlu0 %1309
        %v1312 = vsel %vm587, %v1308, 0
        %v1315 = vsel %vm587, %v1310, 0
        %1317 = vmatprep.subr.bf16.mxu0 0
        %1318 = vmatpush1.bf16.xpose.msra.mxu0 %v1315
        %1319 = vmatprep.subr.bf16.mxu0 0
        %1320 = vmatpush1.bf16.xpose.msra.mxu0 0
        %1321 = vmatprep.subr.bf16.mxu0 0
        %1322 = vmatpush1.bf16.xpose.msra.mxu0 0
        %1323 = vmatprep.subr.bf16.mxu0 0
        %1324 = vmatpush1.bf16.xpose.msra.mxu0 0
        %1325 = vmatprep.subr.bf16.mxu0 0
        %1326 = vmatpush1.bf16.xpose.msra.mxu0 0
        %1327 = vmatprep.subr.bf16.mxu0 0
        %1328 = vmatpush1.bf16.xpose.msra.mxu0 0
        %1329 = vmatprep.subr.bf16.mxu0 0
        %1330 = vmatpush1.bf16.xpose.msra.mxu0 0
        %1331 = vmatprep.subr.bf16.mxu0 0
        %1332 = vmatpush1.bf16.xpose.msra.mxu0 0
        %1333 = vmatprep.subr.bf16.mxu0 0
        %1334 = vmatpush1.bf16.xpose.msra.mxu0 0
        %1335 = vmatprep.subr.bf16.mxu0 0
        %1336 = vmatpush1.bf16.xpose.msra.mxu0 0
        %1337 = vmatprep.subr.bf16.mxu0 0
        %1338 = vmatpush1.bf16.xpose.msra.mxu0 0
        %1339 = vmatprep.subr.bf16.mxu0 0
        %1340 = vmatpush1.bf16.xpose.msra.mxu0 0
        %1341 = vmatprep.subr.bf16.mxu0 0
        %1342 = vmatpush1.bf16.xpose.msra.mxu0 0
        %1343 = vmatprep.subr.bf16.mxu0 0
        %1344 = vmatpush1.bf16.xpose.msra.mxu0 0
        %1345 = vmatprep.subr.bf16.mxu0 0
        %1346 = vmatpush1.bf16.xpose.msra.mxu0 0
        %1347 = vmatprep.subr.bf16.mxu0 0
        %1348 = vmatpush1.bf16.xpose.msra.mxu0 0
        %1349 = vmatprep.mubr.bf16.mxu0 0
        %1350 = vmatmul.mubr.bf16.gmra.mrb[0].mxu0 %v1312
        %v1351 = vpop.f32.mrb[0].mxu0
        %v1352 = vadd.f32 0.0, %v1351
        %v1353 = vpop.f32.mrb[0].mxu0
        %v1354 = vpop.f32.mrb[0].mxu0
        %v1355 = vadd.f32 0.0, %v1354
        %v1356 = vpop.f32.mrb[0].mxu0
        %1357 = vdwg.mxu0
        %1358 = vrot.lane.b32.xlu0 %v582, 32
        %v1359 = vpop.permute.xlu0 %1358
        %1360 = vrot.lane.b32.xlu0 %v584, 32
        %v1361 = vpop.permute.xlu0 %1360
        %v1363 = vsel %vm587, %v1359, 0
        %v1366 = vsel %vm587, %v1361, 0
        %1368 = vmatprep.subr.bf16.mxu0 0
        %1369 = vmatpush1.bf16.xpose.msra.mxu0 %v1366
        %1370 = vmatprep.subr.bf16.mxu0 0
        %1371 = vmatpush1.bf16.xpose.msra.mxu0 0
        %1372 = vmatprep.subr.bf16.mxu0 0
        %1373 = vmatpush1.bf16.xpose.msra.mxu0 0
        %1374 = vmatprep.subr.bf16.mxu0 0
        %1375 = vmatpush1.bf16.xpose.msra.mxu0 0
        %1376 = vmatprep.subr.bf16.mxu0 0
        %1377 = vmatpush1.bf16.xpose.msra.mxu0 0
        %1378 = vmatprep.subr.bf16.mxu0 0
        %1379 = vmatpush1.bf16.xpose.msra.mxu0 0
        %1380 = vmatprep.subr.bf16.mxu0 0
        %1381 = vmatpush1.bf16.xpose.msra.mxu0 0
        %1382 = vmatprep.subr.bf16.mxu0 0
        %1383 = vmatpush1.bf16.xpose.msra.mxu0 0
        %1384 = vmatprep.subr.bf16.mxu0 0
        %1385 = vmatpush1.bf16.xpose.msra.mxu0 0
        %1386 = vmatprep.subr.bf16.mxu0 0
        %1387 = vmatpush1.bf16.xpose.msra.mxu0 0
        %1388 = vmatprep.subr.bf16.mxu0 0
        %1389 = vmatpush1.bf16.xpose.msra.mxu0 0
        %1390 = vmatprep.subr.bf16.mxu0 0
        %1391 = vmatpush1.bf16.xpose.msra.mxu0 0
        %1392 = vmatprep.subr.bf16.mxu0 0
        %1393 = vmatpush1.bf16.xpose.msra.mxu0 0
        %1394 = vmatprep.subr.bf16.mxu0 0
        %1395 = vmatpush1.bf16.xpose.msra.mxu0 0
        %1396 = vmatprep.subr.bf16.mxu0 0
        %1397 = vmatpush1.bf16.xpose.msra.mxu0 0
        %1398 = vmatprep.subr.bf16.mxu0 0
        %1399 = vmatpush1.bf16.xpose.msra.mxu0 0
        %1400 = vmatprep.mubr.bf16.mxu0 0
        %1401 = vmatmul.mubr.bf16.gmra.mrb[0].mxu0 %v1363
        %v1402 = vpop.f32.mrb[0].mxu0
        %v1403 = vadd.f32 0.0, %v1402
        %v1404 = vpop.f32.mrb[0].mxu0
        %v1405 = vpop.f32.mrb[0].mxu0
        %v1406 = vadd.f32 0.0, %v1405
        %v1407 = vpop.f32.mrb[0].mxu0
        %1408 = vdwg.mxu0
        %v1409 = vsel %vm682, %v1352, -inf
        %1410 = vmax.xlane.f32.xlu0 %v1409
        %v1411 = vpop.xlane.xlu0 %1410
        %v1412 = vsel %vm682, %v1355, -inf
        %1413 = vmax.xlane.f32.xlu0 %v1412
        %v1414 = vpop.xlane.xlu0 %1413
        %v1415 = vsel %vm682, %v1403, -inf
        %1416 = vmax.xlane.f32.xlu0 %v1415
        %v1417 = vpop.xlane.xlu0 %1416
        %v1418 = vsel %vm682, %v1406, -inf
        %1419 = vmax.xlane.f32.xlu0 %v1418
        %v1420 = vpop.xlane.xlu0 %1419
        %v1421 = vsub.f32 %v1352, %v1411
        %v1422 = vsub.f32 %v1355, %v1414
        %v1423 = vsub.f32 %v1403, %v1417
        %v1424 = vsub.f32 %v1406, %v1420
        %v1425 = vmul.f32 %v1421, 1.442695
        %v1426 = vpow.pop %v1425
        %v1427 = vmul.f32 %v1422, 1.442695
        %v1428 = vpow.pop %v1427
        %v1429 = vmul.f32 %v1423, 1.442695
        %v1430 = vpow.pop %v1429
        %v1431 = vmul.f32 %v1424, 1.442695
        %v1432 = vpow.pop %v1431
        %v1433 = vsel %vm682, %v1426, 0.0
        %1434 = vadd.xlane.f32.xlu0 %v1433
        %v1435 = vpop.xlane.xlu0 %1434
        %v1436 = vsel %vm682, %v1428, 0.0
        %1437 = vadd.xlane.f32.xlu0 %v1436
        %v1438 = vpop.xlane.xlu0 %1437
        %v1439 = vsel %vm682, %v1430, 0.0
        %1440 = vadd.xlane.f32.xlu0 %v1439
        %v1441 = vpop.xlane.xlu0 %1440
        %v1442 = vsel %vm682, %v1432, 0.0
        %1443 = vadd.xlane.f32.xlu0 %v1442
        %v1444 = vpop.xlane.xlu0 %1443
        %v1445 = vrcp.pop %v1435
        %v1446 = vmul.f32 %v1426, %v1445
        %v1447 = vrcp.pop %v1438
        %v1448 = vmul.f32 %v1428, %v1447
        %v1449 = vrcp.pop %v1441
        %v1450 = vmul.f32 %v1430, %v1449
        %v1451 = vrcp.pop %v1444
        %v1452 = vmul.f32 %v1432, %v1451
        %v1453 = vpack.c.bf16 %v1448, %v1446
        %v1454 = vpack.c.bf16 %v1452, %v1450
        %1455 = vrot.lane.b32.xlu0 %v585, 32
        %v1456 = vpop.permute.xlu0 %1455
        %v1459 = vsel %vm682, %v1453, 0
        %1461 = vmatprep.subr.bf16.mxu0 0
        %1462 = vmatpush1.bf16.msra.mxu0 %v1456
        %1463 = vmatprep.subr.bf16.mxu0 0
        %1464 = vmatpush1.bf16.msra.mxu0 0
        %1465 = vmatprep.subr.bf16.mxu0 0
        %1466 = vmatpush1.bf16.msra.mxu0 0
        %1467 = vmatprep.subr.bf16.mxu0 0
        %1468 = vmatpush1.bf16.msra.mxu0 0
        %1469 = vmatprep.subr.bf16.mxu0 0
        %1470 = vmatpush1.bf16.msra.mxu0 0
        %1471 = vmatprep.subr.bf16.mxu0 0
        %1472 = vmatpush1.bf16.msra.mxu0 0
        %1473 = vmatprep.subr.bf16.mxu0 0
        %1474 = vmatpush1.bf16.msra.mxu0 0
        %1475 = vmatprep.subr.bf16.mxu0 0
        %1476 = vmatpush1.bf16.msra.mxu0 0
        %1477 = vmatprep.subr.bf16.mxu0 0
        %1478 = vmatpush1.bf16.msra.mxu0 0
        %1479 = vmatprep.subr.bf16.mxu0 0
        %1480 = vmatpush1.bf16.msra.mxu0 0
        %1481 = vmatprep.subr.bf16.mxu0 0
        %1482 = vmatpush1.bf16.msra.mxu0 0
        %1483 = vmatprep.subr.bf16.mxu0 0
        %1484 = vmatpush1.bf16.msra.mxu0 0
        %1485 = vmatprep.subr.bf16.mxu0 0
        %1486 = vmatpush1.bf16.msra.mxu0 0
        %1487 = vmatprep.subr.bf16.mxu0 0
        %1488 = vmatpush1.bf16.msra.mxu0 0
        %1489 = vmatprep.subr.bf16.mxu0 0
        %1490 = vmatpush1.bf16.msra.mxu0 0
        %1491 = vmatprep.subr.bf16.mxu0 0
        %1492 = vmatpush1.bf16.msra.mxu0 0
        %1493 = vmatprep.mubr.bf16.mxu0 0
        %1494 = vmatmul.mubr.bf16.gmra.mrb[0].mxu0 %v1459
        %v1495 = vpop.f32.mrb[0].mxu0
        %v1496 = vadd.f32 0.0, %v1495
        %v1497 = vpop.f32.mrb[0].mxu0
        %v1498 = vpop.f32.mrb[0].mxu0
        %v1499 = vadd.f32 0.0, %v1498
        %v1500 = vpop.f32.mrb[0].mxu0
        %1501 = vdwg.mxu0
        %1502 = vrot.lane.b32.xlu0 %v586, 32
        %v1503 = vpop.permute.xlu0 %1502
        %v1506 = vsel %vm682, %v1454, 0
        %1508 = vmatprep.subr.bf16.mxu0 0
        %1509 = vmatpush1.bf16.msra.mxu0 %v1503
        %1510 = vmatprep.subr.bf16.mxu0 0
        %1511 = vmatpush1.bf16.msra.mxu0 0
        %1512 = vmatprep.subr.bf16.mxu0 0
        %1513 = vmatpush1.bf16.msra.mxu0 0
        %1514 = vmatprep.subr.bf16.mxu0 0
        %1515 = vmatpush1.bf16.msra.mxu0 0
        %1516 = vmatprep.subr.bf16.mxu0 0
        %1517 = vmatpush1.bf16.msra.mxu0 0
        %1518 = vmatprep.subr.bf16.mxu0 0
        %1519 = vmatpush1.bf16.msra.mxu0 0
        %1520 = vmatprep.subr.bf16.mxu0 0
        %1521 = vmatpush1.bf16.msra.mxu0 0
        %1522 = vmatprep.subr.bf16.mxu0 0
        %1523 = vmatpush1.bf16.msra.mxu0 0
        %1524 = vmatprep.subr.bf16.mxu0 0
        %1525 = vmatpush1.bf16.msra.mxu0 0
        %1526 = vmatprep.subr.bf16.mxu0 0
        %1527 = vmatpush1.bf16.msra.mxu0 0
        %1528 = vmatprep.subr.bf16.mxu0 0
        %1529 = vmatpush1.bf16.msra.mxu0 0
        %1530 = vmatprep.subr.bf16.mxu0 0
        %1531 = vmatpush1.bf16.msra.mxu0 0
        %1532 = vmatprep.subr.bf16.mxu0 0
        %1533 = vmatpush1.bf16.msra.mxu0 0
        %1534 = vmatprep.subr.bf16.mxu0 0
        %1535 = vmatpush1.bf16.msra.mxu0 0
        %1536 = vmatprep.subr.bf16.mxu0 0
        %1537 = vmatpush1.bf16.msra.mxu0 0
        %1538 = vmatprep.subr.bf16.mxu0 0
        %1539 = vmatpush1.bf16.msra.mxu0 0
        %1540 = vmatprep.mubr.bf16.mxu0 0
        %1541 = vmatmul.mubr.bf16.gmra.mrb[0].mxu0 %v1506
        %v1542 = vpop.f32.mrb[0].mxu0
        %v1543 = vadd.f32 0.0, %v1542
        %v1544 = vpop.f32.mrb[0].mxu0
        %v1545 = vpop.f32.mrb[0].mxu0
        %v1546 = vadd.f32 0.0, %v1545
        %v1547 = vpop.f32.mrb[0].mxu0
        %1548 = vdwg.mxu0
        %1553 = vrot.lane.b32.xlu0 %v1011, 32
        %v1554 = vpop.permute.xlu0 %1553
        %1555 = vrot.lane.b32.xlu0 %v1014, 32
        %v1556 = vpop.permute.xlu0 %1555
        %1557 = vrot.lane.b32.xlu0 %v1059, 32
        %v1558 = vpop.permute.xlu0 %1557
        %1559 = vrot.lane.b32.xlu0 %v1062, 32
        %v1560 = vpop.permute.xlu0 %1559
        %1569 = vrot.lane.b32.xlu0 %v1254, 64
        %v1570 = vpop.permute.xlu0 %1569
        %1571 = vrot.lane.b32.xlu0 %v1257, 64
        %v1572 = vpop.permute.xlu0 %1571
        %1573 = vrot.lane.b32.xlu0 %v1301, 64
        %v1574 = vpop.permute.xlu0 %1573
        %1575 = vrot.lane.b32.xlu0 %v1304, 64
        %v1576 = vpop.permute.xlu0 %1575
        %1585 = vrot.lane.b32.xlu0 %v1496, 96
        %v1586 = vpop.permute.xlu0 %1585
        %1587 = vrot.lane.b32.xlu0 %v1499, 96
        %v1588 = vpop.permute.xlu0 %1587
        %1589 = vrot.lane.b32.xlu0 %v1543, 96
        %v1590 = vpop.permute.xlu0 %1589
        %1591 = vrot.lane.b32.xlu0 %v1546, 96
        %v1592 = vpop.permute.xlu0 %1591
        %v1597 = vsel %vm587, %v767, %v1554
        %v1598 = vsel %vm587, %v770, %v1556
        %v1599 = vsel %vm587, %v811, %v1558
        %v1600 = vsel %vm587, %v814, %v1560
        %vm1601 = vcmask 523264
        %v1602 = vsel %vm1601, %v1597, %v1570
        %v1603 = vsel %vm1601, %v1598, %v1572
        %v1604 = vsel %vm1601, %v1599, %v1574
        %v1605 = vsel %vm1601, %v1600, %v1576
        %vm1606 = vcmask 785408
        %v1607 = vsel %vm1606, %v1602, %v1586
        %v1608 = vsel %vm1606, %v1603, %v1588
        %v1609 = vsel %vm1606, %v1604, %v1590
        %v1610 = vsel %vm1606, %v1605, %v1592
        %v1611 = vpack.c.bf16 %v1608, %v1607
        %v1612 = vpack.c.bf16 %v1610, %v1609
        %v1629 = vunpack.c.l.b16 %v333
        %v1630 = vunpack.c.l.b16 %v334
        %v1631 = vunpack.c.l.b16 %v335
        %v1632 = vunpack.c.l.b16 %v336
        %v1633 = vunpack.c.l.b16 %v337
        %v1634 = vunpack.c.l.b16 %v338
        %v1635 = vunpack.c.l.b16 %v339
        %v1636 = vunpack.c.l.b16 %v340
        %v1637 = vunpack.c.l.b16 %v341
        %v1638 = vunpack.c.l.b16 %v342
        %v1639 = vunpack.c.l.b16 %v343
        %v1640 = vunpack.c.l.b16 %v344
        %v1641 = vunpack.c.l.b16 %v345
        %v1642 = vunpack.c.l.b16 %v346
        %v1643 = vunpack.c.l.b16 %v347
        %v1644 = vunpack.c.l.b16 %v348
        %v1645 = vpack.c.b16 %v1630, %v1629
        %v1646 = vpack.c.b16 %v1632, %v1631
        %v1647 = vpack.c.b16 %v1634, %v1633
        %v1648 = vpack.c.b16 %v1636, %v1635
        %v1649 = vpack.c.b16 %v1638, %v1637
        %v1650 = vpack.c.b16 %v1640, %v1639
        %v1651 = vpack.c.b16 %v1642, %v1641
        %v1652 = vpack.c.b16 %v1644, %v1643
        %1661 = vmatprep.subr.bf16.mxu0 0
        %1662 = vmatpush1.bf16.msra.mxu0 %v1645
        %1663 = vmatprep.subr.bf16.mxu0 0
        %1664 = vmatpush1.bf16.msra.mxu0 %v1646
        %1665 = vmatprep.subr.bf16.mxu0 0
        %1666 = vmatpush1.bf16.msra.mxu0 %v1647
        %1667 = vmatprep.subr.bf16.mxu0 0
        %1668 = vmatpush1.bf16.msra.mxu0 %v1648
        %1669 = vmatprep.subr.bf16.mxu0 0
        %1670 = vmatpush1.bf16.msra.mxu0 %v1649
        %1671 = vmatprep.subr.bf16.mxu0 0
        %1672 = vmatpush1.bf16.msra.mxu0 %v1650
        %1673 = vmatprep.subr.bf16.mxu0 0
        %1674 = vmatpush1.bf16.msra.mxu0 %v1651
        %1675 = vmatprep.subr.bf16.mxu0 0
        %1676 = vmatpush1.bf16.msra.mxu0 %v1652
        %1677 = vmatprep.subr.bf16.mxu0 0
        %1678 = vmatpush1.bf16.msra.mxu0 0
        %1679 = vmatprep.subr.bf16.mxu0 0
        %1680 = vmatpush1.bf16.msra.mxu0 0
        %1681 = vmatprep.subr.bf16.mxu0 0
        %1682 = vmatpush1.bf16.msra.mxu0 0
        %1683 = vmatprep.subr.bf16.mxu0 0
        %1684 = vmatpush1.bf16.msra.mxu0 0
        %1685 = vmatprep.subr.bf16.mxu0 0
        %1686 = vmatpush1.bf16.msra.mxu0 0
        %1687 = vmatprep.subr.bf16.mxu0 0
        %1688 = vmatpush1.bf16.msra.mxu0 0
        %1689 = vmatprep.subr.bf16.mxu0 0
        %1690 = vmatpush1.bf16.msra.mxu0 0
        %1691 = vmatprep.subr.bf16.mxu0 0
        %1692 = vmatpush1.bf16.msra.mxu0 0
        %1693 = vmatprep.mubr.bf16.mxu0 0
        %1694 = vmatmul.mubr.bf16.gmra.mrb[0].mxu0 %v1611
        %v1695 = vpop.f32.mrb[0].mxu0
        %v1696 = vadd.f32 0.0, %v1695
        %v1697 = vpop.f32.mrb[0].mxu0
        %v1698 = vpop.f32.mrb[0].mxu0
        %v1699 = vadd.f32 0.0, %v1698
        %v1700 = vpop.f32.mrb[0].mxu0
        %1701 = vmatprep.mubr.bf16.mxu0 0
        %1702 = vmatmul.mubr.bf16.gmra.mrb[0].mxu0 %v1612
        %v1703 = vpop.f32.mrb[0].mxu0
        %v1704 = vadd.f32 0.0, %v1703
        %v1705 = vpop.f32.mrb[0].mxu0
        %v1706 = vpop.f32.mrb[0].mxu0
        %v1707 = vadd.f32 0.0, %v1706
        %v1708 = vpop.f32.mrb[0].mxu0
        %1709 = vdwg.mxu0
        %s1710 = scalar_lea.vmem [#allocation7], 192
        %v1711 = vld [vmem:[%s1710] sm:$0xff]
        %v1712 = vld [vmem:[%s1710 + $0x8] sm:$0xf]
        %v1713 = vld [vmem:[%s1710 + $0xc] sm:$0xff]
        %v1714 = vld [vmem:[%s1710 + $0x14] sm:$0xf]
        %v1715 = vld [vmem:[%s1710 + $0x18] sm:$0xff]
        %v1716 = vld [vmem:[%s1710 + $0x20] sm:$0xf]
        %v1717 = vld [vmem:[%s1710 + $0x24] sm:$0xff]
        %v1718 = vld [vmem:[%s1710 + $0x2c] sm:$0xf]
        %v1719 = vld [vmem:[%s1710 + $0x30] sm:$0xff]
        %v1720 = vld [vmem:[%s1710 + $0x38] sm:$0xf]
        %v1721 = vld [vmem:[%s1710 + $0x3c] sm:$0xff]
        %v1722 = vld [vmem:[%s1710 + $0x44] sm:$0xf]
        %v1723 = vld [vmem:[%s1710 + $0x48] sm:$0xff]
        %v1724 = vld [vmem:[%s1710 + $0x50] sm:$0xf]
        %v1725 = vld [vmem:[%s1710 + $0x54] sm:$0xff]
        %v1726 = vld [vmem:[%s1710 + $0x5c] sm:$0xf]
        %v1727 = vld [vmem:[%s1710 + $0x60] sm:$0xff]
        %v1728 = vld [vmem:[%s1710 + $0x68] sm:$0xf]
        %v1729 = vld [vmem:[%s1710 + $0x6c] sm:$0xff]
        %v1730 = vld [vmem:[%s1710 + $0x74] sm:$0xf]
        %v1731 = vld [vmem:[%s1710 + $0x78] sm:$0xff]
        %v1732 = vld [vmem:[%s1710 + $0x80] sm:$0xf]
        %v1733 = vld [vmem:[%s1710 + $0x84] sm:$0xff]
        %v1734 = vld [vmem:[%s1710 + $0x8c] sm:$0xf]
        %v1735 = vld [vmem:[%s1710 + $0x90] sm:$0xff]
        %v1736 = vld [vmem:[%s1710 + $0x98] sm:$0xf]
        %v1737 = vld [vmem:[%s1710 + $0x9c] sm:$0xff]
        %v1738 = vld [vmem:[%s1710 + $0xa4] sm:$0xf]
        %v1739 = vld [vmem:[%s1710 + $0xa8] sm:$0xff]
        %v1740 = vld [vmem:[%s1710 + $0xb0] sm:$0xf]
        %v1741 = vld [vmem:[%s1710 + $0xb4] sm:$0xff]
        %v1742 = vld [vmem:[%s1710 + $0xbc] sm:$0xf]
        %s1743 = scalar_lea.vmem [#allocation8], 64
        %v1744 = vld [vmem:[%s1743] sm:$0xf]
        %v1745 = vld [vmem:[%s1743 + $0x4] sm:$0xf]
        %v1746 = vld [vmem:[%s1743 + $0x8] sm:$0xf]
        %v1747 = vld [vmem:[%s1743 + $0xc] sm:$0xf]
        %v1748 = vld [vmem:[%s1743 + $0x10] sm:$0xf]
        %v1749 = vld [vmem:[%s1743 + $0x14] sm:$0xf]
        %v1750 = vld [vmem:[%s1743 + $0x18] sm:$0xf]
        %v1751 = vld [vmem:[%s1743 + $0x1c] sm:$0xf]
        %v1752 = vld [vmem:[%s1743 + $0x20] sm:$0xf]
        %v1753 = vld [vmem:[%s1743 + $0x24] sm:$0xf]
        %v1754 = vld [vmem:[%s1743 + $0x28] sm:$0xf]
        %v1755 = vld [vmem:[%s1743 + $0x2c] sm:$0xf]
        %v1756 = vld [vmem:[%s1743 + $0x30] sm:$0xf]
        %v1757 = vld [vmem:[%s1743 + $0x34] sm:$0xf]
        %v1758 = vld [vmem:[%s1743 + $0x38] sm:$0xf]
        %v1759 = vld [vmem:[%s1743 + $0x3c] sm:$0xf]
        %v1760 = vpack.c.bf16 %v1699, %v1696
        %v1761 = vpack.c.bf16 %v1707, %v1704
        %v1794 = vunpack.c.h.b16 %v1711
        %v1795 = vunpack.c.l.b16 %v1712
        %v1796 = vunpack.c.h.b16 %v1713
        %v1797 = vunpack.c.l.b16 %v1714
        %v1798 = vunpack.c.h.b16 %v1715
        %v1799 = vunpack.c.l.b16 %v1716
        %v1800 = vunpack.c.h.b16 %v1717
        %v1801 = vunpack.c.l.b16 %v1718
        %v1802 = vunpack.c.h.b16 %v1719
        %v1803 = vunpack.c.l.b16 %v1720
        %v1804 = vunpack.c.h.b16 %v1721
        %v1805 = vunpack.c.l.b16 %v1722
        %v1806 = vunpack.c.h.b16 %v1723
        %v1807 = vunpack.c.l.b16 %v1724
        %v1808 = vunpack.c.h.b16 %v1725
        %v1809 = vunpack.c.l.b16 %v1726
        %v1810 = vunpack.c.h.b16 %v1727
        %v1811 = vunpack.c.l.b16 %v1728
        %v1812 = vunpack.c.h.b16 %v1729
        %v1813 = vunpack.c.l.b16 %v1730
        %v1814 = vunpack.c.h.b16 %v1731
        %v1815 = vunpack.c.l.b16 %v1732
        %v1816 = vunpack.c.h.b16 %v1733
        %v1817 = vunpack.c.l.b16 %v1734
        %v1818 = vunpack.c.h.b16 %v1735
        %v1819 = vunpack.c.l.b16 %v1736
        %v1820 = vunpack.c.h.b16 %v1737
        %v1821 = vunpack.c.l.b16 %v1738
        %v1822 = vunpack.c.h.b16 %v1739
        %v1823 = vunpack.c.l.b16 %v1740
        %v1824 = vunpack.c.h.b16 %v1741
        %v1825 = vunpack.c.l.b16 %v1742
        %v1826 = vpack.c.b16 %v1796, %v1794
        %v1827 = vpack.c.b16 %v1797, %v1795
        %v1828 = vpack.c.b16 %v1800, %v1798
        %v1829 = vpack.c.b16 %v1801, %v1799
        %v1830 = vpack.c.b16 %v1804, %v1802
        %v1831 = vpack.c.b16 %v1805, %v1803
        %v1832 = vpack.c.b16 %v1808, %v1806
        %v1833 = vpack.c.b16 %v1809, %v1807
        %v1834 = vpack.c.b16 %v1812, %v1810
        %v1835 = vpack.c.b16 %v1813, %v1811
        %v1836 = vpack.c.b16 %v1816, %v1814
        %v1837 = vpack.c.b16 %v1817, %v1815
        %v1838 = vpack.c.b16 %v1820, %v1818
        %v1839 = vpack.c.b16 %v1821, %v1819
        %v1840 = vpack.c.b16 %v1824, %v1822
        %v1841 = vpack.c.b16 %v1825, %v1823
        %1858 = vmatprep.subr.bf16.mxu0 %v1827
        %1859 = vmatpush1.bf16.msra.mxu0 %v1826
        %1860 = vmatprep.subr.bf16.mxu0 %v1829
        %1861 = vmatpush1.bf16.msra.mxu0 %v1828
        %1862 = vmatprep.subr.bf16.mxu0 %v1831
        %1863 = vmatpush1.bf16.msra.mxu0 %v1830
        %1864 = vmatprep.subr.bf16.mxu0 %v1833
        %1865 = vmatpush1.bf16.msra.mxu0 %v1832
        %1866 = vmatprep.subr.bf16.mxu0 %v1835
        %1867 = vmatpush1.bf16.msra.mxu0 %v1834
        %1868 = vmatprep.subr.bf16.mxu0 %v1837
        %1869 = vmatpush1.bf16.msra.mxu0 %v1836
        %1870 = vmatprep.subr.bf16.mxu0 %v1839
        %1871 = vmatpush1.bf16.msra.mxu0 %v1838
        %1872 = vmatprep.subr.bf16.mxu0 %v1841
        %1873 = vmatpush1.bf16.msra.mxu0 %v1840
        %1874 = vmatprep.subr.bf16.mxu0 0
        %1875 = vmatpush1.bf16.msra.mxu0 0
        %1876 = vmatprep.subr.bf16.mxu0 0
        %1877 = vmatpush1.bf16.msra.mxu0 0
        %1878 = vmatprep.subr.bf16.mxu0 0
        %1879 = vmatpush1.bf16.msra.mxu0 0
        %1880 = vmatprep.subr.bf16.mxu0 0
        %1881 = vmatpush1.bf16.msra.mxu0 0
        %1882 = vmatprep.subr.bf16.mxu0 0
        %1883 = vmatpush1.bf16.msra.mxu0 0
        %1884 = vmatprep.subr.bf16.mxu0 0
        %1885 = vmatpush1.bf16.msra.mxu0 0
        %1886 = vmatprep.subr.bf16.mxu0 0
        %1887 = vmatpush1.bf16.msra.mxu0 0
        %1888 = vmatprep.subr.bf16.mxu0 0
        %1889 = vmatpush1.bf16.msra.mxu0 0
        %1890 = vmatprep.mubr.bf16.mxu0 0
        %1891 = vmatmul.mubr.bf16.gmra.mrb[0].mxu0 %v1760
        %v1892 = vpop.f32.mrb[0].mxu0
        %v1893 = vadd.f32 0.0, %v1892
        %v1894 = vpop.f32.mrb[0].mxu0
        %v1895 = vadd.f32 0.0, %v1894
        %v1896 = vpop.f32.mrb[0].mxu0
        %v1897 = vadd.f32 0.0, %v1896
        %v1898 = vpop.f32.mrb[0].mxu0
        %v1899 = vadd.f32 0.0, %v1898
        %1900 = vmatprep.mubr.bf16.mxu0 0
        %1901 = vmatmul.mubr.bf16.gmra.mrb[0].mxu0 %v1761
        %v1902 = vpop.f32.mrb[0].mxu0
        %v1903 = vadd.f32 0.0, %v1902
        %v1904 = vpop.f32.mrb[0].mxu0
        %v1905 = vadd.f32 0.0, %v1904
        %v1906 = vpop.f32.mrb[0].mxu0
        %v1907 = vadd.f32 0.0, %v1906
        %v1908 = vpop.f32.mrb[0].mxu0
        %v1909 = vadd.f32 0.0, %v1908
        %1910 = vdwg.mxu0
        %v1911 = vld [vmem:[%s2] sm:$0xf]
        %v1912 = vunpack.c.l.b16 %v1711
        %v1913 = vunpack.c.l.b16 %v1713
        %v1914 = vunpack.c.l.b16 %v1715
        %v1915 = vunpack.c.l.b16 %v1717
        %v1916 = vunpack.c.l.b16 %v1719
        %v1917 = vunpack.c.l.b16 %v1721
        %v1918 = vunpack.c.l.b16 %v1723
        %v1919 = vunpack.c.l.b16 %v1725
        %v1920 = vunpack.c.l.b16 %v1727
        %v1921 = vunpack.c.l.b16 %v1729
        %v1922 = vunpack.c.l.b16 %v1731
        %v1923 = vunpack.c.l.b16 %v1733
        %v1924 = vunpack.c.l.b16 %v1735
        %v1925 = vunpack.c.l.b16 %v1737
        %v1926 = vunpack.c.l.b16 %v1739
        %v1927 = vunpack.c.l.b16 %v1741
        %v1928 = vpack.c.b16 %v1913, %v1912
        %v1929 = vpack.c.b16 %v1915, %v1914
        %v1930 = vpack.c.b16 %v1917, %v1916
        %v1931 = vpack.c.b16 %v1919, %v1918
        %v1932 = vpack.c.b16 %v1921, %v1920
        %v1933 = vpack.c.b16 %v1923, %v1922
        %v1934 = vpack.c.b16 %v1925, %v1924
        %v1935 = vpack.c.b16 %v1927, %v1926
        %1944 = vmatprep.subr.bf16.mxu0 0
        %1945 = vmatpush1.bf16.msra.mxu0 %v1928
        %1946 = vmatprep.subr.bf16.mxu0 0
        %1947 = vmatpush1.bf16.msra.mxu0 %v1929
        %1948 = vmatprep.subr.bf16.mxu0 0
        %1949 = vmatpush1.bf16.msra.mxu0 %v1930
        %1950 = vmatprep.subr.bf16.mxu0 0
        %1951 = vmatpush1.bf16.msra.mxu0 %v1931
        %1952 = vmatprep.subr.bf16.mxu0 0
        %1953 = vmatpush1.bf16.msra.mxu0 %v1932
        %1954 = vmatprep.subr.bf16.mxu0 0
        %1955 = vmatpush1.bf16.msra.mxu0 %v1933
        %1956 = vmatprep.subr.bf16.mxu0 0
        %1957 = vmatpush1.bf16.msra.mxu0 %v1934
        %1958 = vmatprep.subr.bf16.mxu0 0
        %1959 = vmatpush1.bf16.msra.mxu0 %v1935
        %1960 = vmatprep.subr.bf16.mxu0 0
        %1961 = vmatpush1.bf16.msra.mxu0 0
        %1962 = vmatprep.subr.bf16.mxu0 0
        %1963 = vmatpush1.bf16.msra.mxu0 0
        %1964 = vmatprep.subr.bf16.mxu0 0
        %1965 = vmatpush1.bf16.msra.mxu0 0
        %1966 = vmatprep.subr.bf16.mxu0 0
        %1967 = vmatpush1.bf16.msra.mxu0 0
        %1968 = vmatprep.subr.bf16.mxu0 0
        %1969 = vmatpush1.bf16.msra.mxu0 0
        %1970 = vmatprep.subr.bf16.mxu0 0
        %1971 = vmatpush1.bf16.msra.mxu0 0
        %1972 = vmatprep.subr.bf16.mxu0 0
        %1973 = vmatpush1.bf16.msra.mxu0 0
        %1974 = vmatprep.subr.bf16.mxu0 0
        %1975 = vmatpush1.bf16.msra.mxu0 0
        %1976 = vmatprep.mubr.bf16.mxu0 0
        %1977 = vmatmul.mubr.bf16.gmra.mrb[0].mxu0 %v1911
        %v1978 = vpop.f32.mrb[0].mxu0
        %v1979 = vadd.f32 0.0, %v1978
        %v1980 = vpop.f32.mrb[0].mxu0
        %v1981 = vpop.f32.mrb[0].mxu0
        %v1982 = vpop.f32.mrb[0].mxu0
        %1983 = vdwg.mxu0
        %v1984 = vpack.c.bf16 %v1979, %v1979
        %v1985 = vpack.c.bf16 %v1897, %v1893
        %v1986 = vpack.c.bf16 %v1907, %v1903
        %v1987 = vpack.c.bf16 %v1899, %v1895
        %v1988 = vpack.c.bf16 %v1909, %v1905
        %v1990 = vsel %vm587, %v1984, 0
        %v1993 = vsel %vm587, %v1985, 0
        %1995 = vmatprep.subr.bf16.mxu0 0
        %1996 = vmatpush1.bf16.xpose.msra.mxu0 %v1993
        %1997 = vmatprep.subr.bf16.mxu0 0
        %1998 = vmatpush1.bf16.xpose.msra.mxu0 0
        %1999 = vmatprep.subr.bf16.mxu0 0
        %2000 = vmatpush1.bf16.xpose.msra.mxu0 0
        %2001 = vmatprep.subr.bf16.mxu0 0
        %2002 = vmatpush1.bf16.xpose.msra.mxu0 0
        %2003 = vmatprep.subr.bf16.mxu0 0
        %2004 = vmatpush1.bf16.xpose.msra.mxu0 0
        %2005 = vmatprep.subr.bf16.mxu0 0
        %2006 = vmatpush1.bf16.xpose.msra.mxu0 0
        %2007 = vmatprep.subr.bf16.mxu0 0
        %2008 = vmatpush1.bf16.xpose.msra.mxu0 0
        %2009 = vmatprep.subr.bf16.mxu0 0
        %2010 = vmatpush1.bf16.xpose.msra.mxu0 0
        %2011 = vmatprep.subr.bf16.mxu0 0
        %2012 = vmatpush1.bf16.xpose.msra.mxu0 0
        %2013 = vmatprep.subr.bf16.mxu0 0
        %2014 = vmatpush1.bf16.xpose.msra.mxu0 0
        %2015 = vmatprep.subr.bf16.mxu0 0
        %2016 = vmatpush1.bf16.xpose.msra.mxu0 0
        %2017 = vmatprep.subr.bf16.mxu0 0
        %2018 = vmatpush1.bf16.xpose.msra.mxu0 0
        %2019 = vmatprep.subr.bf16.mxu0 0
        %2020 = vmatpush1.bf16.xpose.msra.mxu0 0
        %2021 = vmatprep.subr.bf16.mxu0 0
        %2022 = vmatpush1.bf16.xpose.msra.mxu0 0
        %2023 = vmatprep.subr.bf16.mxu0 0
        %2024 = vmatpush1.bf16.xpose.msra.mxu0 0
        %2025 = vmatprep.subr.bf16.mxu0 0
        %2026 = vmatpush1.bf16.xpose.msra.mxu0 0
        %2027 = vmatprep.mubr.bf16.mxu0 0
        %2028 = vmatmul.mubr.bf16.gmra.mrb[0].mxu0 %v1990
        %v2029 = vpop.f32.mrb[0].mxu0
        %v2030 = vadd.f32 0.0, %v2029
        %v2031 = vpop.f32.mrb[0].mxu0
        %v2032 = vpop.f32.mrb[0].mxu0
        %v2033 = vpop.f32.mrb[0].mxu0
        %2034 = vdwg.mxu0
        %v2036 = vsel %vm587, %v1986, 0
        %2038 = vmatprep.subr.bf16.mxu0 0
        %2039 = vmatpush1.bf16.xpose.msra.mxu0 %v2036
        %2040 = vmatprep.subr.bf16.mxu0 0
        %2041 = vmatpush1.bf16.xpose.msra.mxu0 0
        %2042 = vmatprep.subr.bf16.mxu0 0
        %2043 = vmatpush1.bf16.xpose.msra.mxu0 0
        %2044 = vmatprep.subr.bf16.mxu0 0
        %2045 = vmatpush1.bf16.xpose.msra.mxu0 0
        %2046 = vmatprep.subr.bf16.mxu0 0
        %2047 = vmatpush1.bf16.xpose.msra.mxu0 0
        %2048 = vmatprep.subr.bf16.mxu0 0
        %2049 = vmatpush1.bf16.xpose.msra.mxu0 0
        %2050 = vmatprep.subr.bf16.mxu0 0
        %2051 = vmatpush1.bf16.xpose.msra.mxu0 0
        %2052 = vmatprep.subr.bf16.mxu0 0
        %2053 = vmatpush1.bf16.xpose.msra.mxu0 0
        %2054 = vmatprep.subr.bf16.mxu0 0
        %2055 = vmatpush1.bf16.xpose.msra.mxu0 0
        %2056 = vmatprep.subr.bf16.mxu0 0
        %2057 = vmatpush1.bf16.xpose.msra.mxu0 0
        %2058 = vmatprep.subr.bf16.mxu0 0
        %2059 = vmatpush1.bf16.xpose.msra.mxu0 0
        %2060 = vmatprep.subr.bf16.mxu0 0
        %2061 = vmatpush1.bf16.xpose.msra.mxu0 0
        %2062 = vmatprep.subr.bf16.mxu0 0
        %2063 = vmatpush1.bf16.xpose.msra.mxu0 0
        %2064 = vmatprep.subr.bf16.mxu0 0
        %2065 = vmatpush1.bf16.xpose.msra.mxu0 0
        %2066 = vmatprep.subr.bf16.mxu0 0
        %2067 = vmatpush1.bf16.xpose.msra.mxu0 0
        %2068 = vmatprep.subr.bf16.mxu0 0
        %2069 = vmatpush1.bf16.xpose.msra.mxu0 0
        %2070 = vmatprep.mubr.bf16.mxu0 0
        %2071 = vmatmul.mubr.bf16.gmra.mrb[0].mxu0 %v1990
        %v2072 = vpop.f32.mrb[0].mxu0
        %v2073 = vadd.f32 0.0, %v2072
        %v2074 = vpop.f32.mrb[0].mxu0
        %v2075 = vpop.f32.mrb[0].mxu0
        %v2076 = vpop.f32.mrb[0].mxu0
        %2077 = vdwg.mxu0
        %v2078 = vsel %vm682, %v2030, -inf
        %2079 = vmax.xlane.f32.xlu0 %v2078
        %v2080 = vpop.xlane.xlu0 %2079
        %v2081 = vsel %vm682, %v2073, -inf
        %2082 = vmax.xlane.f32.xlu0 %v2081
        %v2083 = vpop.xlane.xlu0 %2082
        %v2084 = vsub.f32 %v2030, %v2080
        %v2085 = vsub.f32 %v2073, %v2083
        %v2086 = vmul.f32 %v2084, 1.442695
        %v2087 = vpow.pop %v2086
        %v2088 = vmul.f32 %v2085, 1.442695
        %v2089 = vpow.pop %v2088
        %v2090 = vsel %vm682, %v2087, 0.0
        %2091 = vadd.xlane.f32.xlu0 %v2090
        %v2092 = vpop.xlane.xlu0 %2091
        %v2093 = vsel %vm682, %v2089, 0.0
        %2094 = vadd.xlane.f32.xlu0 %v2093
        %v2095 = vpop.xlane.xlu0 %2094
        %v2096 = vrcp.pop %v2092
        %v2097 = vmul.f32 %v2087, %v2096
        %v2098 = vrcp.pop %v2095
        %v2099 = vmul.f32 %v2089, %v2098
        %v2100 = vpack.c.bf16 %v2097, %v2097
        %v2101 = vpack.c.bf16 %v2099, %v2099
        %v2103 = vsel %vm682, %v2100, 0
        %2105 = vmatprep.subr.bf16.mxu0 0
        %2106 = vmatpush1.bf16.msra.mxu0 %v1987
        %2107 = vmatprep.subr.bf16.mxu0 0
        %2108 = vmatpush1.bf16.msra.mxu0 0
        %2109 = vmatprep.subr.bf16.mxu0 0
        %2110 = vmatpush1.bf16.msra.mxu0 0
        %2111 = vmatprep.subr.bf16.mxu0 0
        %2112 = vmatpush1.bf16.msra.mxu0 0
        %2113 = vmatprep.subr.bf16.mxu0 0
        %2114 = vmatpush1.bf16.msra.mxu0 0
        %2115 = vmatprep.subr.bf16.mxu0 0
        %2116 = vmatpush1.bf16.msra.mxu0 0
        %2117 = vmatprep.subr.bf16.mxu0 0
        %2118 = vmatpush1.bf16.msra.mxu0 0
        %2119 = vmatprep.subr.bf16.mxu0 0
        %2120 = vmatpush1.bf16.msra.mxu0 0
        %2121 = vmatprep.subr.bf16.mxu0 0
        %2122 = vmatpush1.bf16.msra.mxu0 0
        %2123 = vmatprep.subr.bf16.mxu0 0
        %2124 = vmatpush1.bf16.msra.mxu0 0
        %2125 = vmatprep.subr.bf16.mxu0 0
        %2126 = vmatpush1.bf16.msra.mxu0 0
        %2127 = vmatprep.subr.bf16.mxu0 0
        %2128 = vmatpush1.bf16.msra.mxu0 0
        %2129 = vmatprep.subr.bf16.mxu0 0
        %2130 = vmatpush1.bf16.msra.mxu0 0
        %2131 = vmatprep.subr.bf16.mxu0 0
        %2132 = vmatpush1.bf16.msra.mxu0 0
        %2133 = vmatprep.subr.bf16.mxu0 0
        %2134 = vmatpush1.bf16.msra.mxu0 0
        %2135 = vmatprep.subr.bf16.mxu0 0
        %2136 = vmatpush1.bf16.msra.mxu0 0
        %2137 = vmatprep.mubr.bf16.mxu0 0
        %2138 = vmatmul.mubr.bf16.gmra.mrb[0].mxu0 %v2103
        %v2139 = vpop.f32.mrb[0].mxu0
        %v2140 = vadd.f32 0.0, %v2139
        %v2141 = vpop.f32.mrb[0].mxu0
        %v2142 = vpop.f32.mrb[0].mxu0
        %v2143 = vpop.f32.mrb[0].mxu0
        %2144 = vdwg.mxu0
        %v2146 = vsel %vm682, %v2101, 0
        %2148 = vmatprep.subr.bf16.mxu0 0
        %2149 = vmatpush1.bf16.msra.mxu0 %v1988
        %2150 = vmatprep.subr.bf16.mxu0 0
        %2151 = vmatpush1.bf16.msra.mxu0 0
        %2152 = vmatprep.subr.bf16.mxu0 0
        %2153 = vmatpush1.bf16.msra.mxu0 0
        %2154 = vmatprep.subr.bf16.mxu0 0
        %2155 = vmatpush1.bf16.msra.mxu0 0
        %2156 = vmatprep.subr.bf16.mxu0 0
        %2157 = vmatpush1.bf16.msra.mxu0 0
        %2158 = vmatprep.subr.bf16.mxu0 0
        %2159 = vmatpush1.bf16.msra.mxu0 0
        %2160 = vmatprep.subr.bf16.mxu0 0
        %2161 = vmatpush1.bf16.msra.mxu0 0
        %2162 = vmatprep.subr.bf16.mxu0 0
        %2163 = vmatpush1.bf16.msra.mxu0 0
        %2164 = vmatprep.subr.bf16.mxu0 0
        %2165 = vmatpush1.bf16.msra.mxu0 0
        %2166 = vmatprep.subr.bf16.mxu0 0
        %2167 = vmatpush1.bf16.msra.mxu0 0
        %2168 = vmatprep.subr.bf16.mxu0 0
        %2169 = vmatpush1.bf16.msra.mxu0 0
        %2170 = vmatprep.subr.bf16.mxu0 0
        %2171 = vmatpush1.bf16.msra.mxu0 0
        %2172 = vmatprep.subr.bf16.mxu0 0
        %2173 = vmatpush1.bf16.msra.mxu0 0
        %2174 = vmatprep.subr.bf16.mxu0 0
        %2175 = vmatpush1.bf16.msra.mxu0 0
        %2176 = vmatprep.subr.bf16.mxu0 0
        %2177 = vmatpush1.bf16.msra.mxu0 0
        %2178 = vmatprep.subr.bf16.mxu0 0
        %2179 = vmatpush1.bf16.msra.mxu0 0
        %2180 = vmatprep.mubr.bf16.mxu0 0
        %2181 = vmatmul.mubr.bf16.gmra.mrb[0].mxu0 %v2146
        %v2182 = vpop.f32.mrb[0].mxu0
        %v2183 = vadd.f32 0.0, %v2182
        %v2184 = vpop.f32.mrb[0].mxu0
        %v2185 = vpop.f32.mrb[0].mxu0
        %v2186 = vpop.f32.mrb[0].mxu0
        %2187 = vdwg.mxu0
        %2189 = vrot.lane.b32.xlu0 %v1984, 96
        %v2190 = vpop.permute.xlu0 %2189
        %2192 = vrot.lane.b32.xlu0 %v1985, 96
        %v2193 = vpop.permute.xlu0 %2192
        %v2195 = vsel %vm587, %v2190, 0
        %v2198 = vsel %vm587, %v2193, 0
        %2200 = vmatprep.subr.bf16.mxu0 0
        %2201 = vmatpush1.bf16.xpose.msra.mxu0 %v2198
        %2202 = vmatprep.subr.bf16.mxu0 0
        %2203 = vmatpush1.bf16.xpose.msra.mxu0 0
        %2204 = vmatprep.subr.bf16.mxu0 0
        %2205 = vmatpush1.bf16.xpose.msra.mxu0 0
        %2206 = vmatprep.subr.bf16.mxu0 0
        %2207 = vmatpush1.bf16.xpose.msra.mxu0 0
        %2208 = vmatprep.subr.bf16.mxu0 0
        %2209 = vmatpush1.bf16.xpose.msra.mxu0 0
        %2210 = vmatprep.subr.bf16.mxu0 0
        %2211 = vmatpush1.bf16.xpose.msra.mxu0 0
        %2212 = vmatprep.subr.bf16.mxu0 0
        %2213 = vmatpush1.bf16.xpose.msra.mxu0 0
        %2214 = vmatprep.subr.bf16.mxu0 0
        %2215 = vmatpush1.bf16.xpose.msra.mxu0 0
        %2216 = vmatprep.subr.bf16.mxu0 0
        %2217 = vmatpush1.bf16.xpose.msra.mxu0 0
        %2218 = vmatprep.subr.bf16.mxu0 0
        %2219 = vmatpush1.bf16.xpose.msra.mxu0 0
        %2220 = vmatprep.subr.bf16.mxu0 0
        %2221 = vmatpush1.bf16.xpose.msra.mxu0 0
        %2222 = vmatprep.subr.bf16.mxu0 0
        %2223 = vmatpush1.bf16.xpose.msra.mxu0 0
        %2224 = vmatprep.subr.bf16.mxu0 0
        %2225 = vmatpush1.bf16.xpose.msra.mxu0 0
        %2226 = vmatprep.subr.bf16.mxu0 0
        %2227 = vmatpush1.bf16.xpose.msra.mxu0 0
        %2228 = vmatprep.subr.bf16.mxu0 0
        %2229 = vmatpush1.bf16.xpose.msra.mxu0 0
        %2230 = vmatprep.subr.bf16.mxu0 0
        %2231 = vmatpush1.bf16.xpose.msra.mxu0 0
        %2232 = vmatprep.mubr.bf16.mxu0 0
        %2233 = vmatmul.mubr.bf16.gmra.mrb[0].mxu0 %v2195
        %v2234 = vpop.f32.mrb[0].mxu0
        %v2235 = vadd.f32 0.0, %v2234
        %v2236 = vpop.f32.mrb[0].mxu0
        %v2237 = vpop.f32.mrb[0].mxu0
        %v2238 = vpop.f32.mrb[0].mxu0
        %2239 = vdwg.mxu0
        %2241 = vrot.lane.b32.xlu0 %v1986, 96
        %v2242 = vpop.permute.xlu0 %2241
        %v2244 = vsel %vm587, %v2242, 0
        %2246 = vmatprep.subr.bf16.mxu0 0
        %2247 = vmatpush1.bf16.xpose.msra.mxu0 %v2244
        %2248 = vmatprep.subr.bf16.mxu0 0
        %2249 = vmatpush1.bf16.xpose.msra.mxu0 0
        %2250 = vmatprep.subr.bf16.mxu0 0
        %2251 = vmatpush1.bf16.xpose.msra.mxu0 0
        %2252 = vmatprep.subr.bf16.mxu0 0
        %2253 = vmatpush1.bf16.xpose.msra.mxu0 0
        %2254 = vmatprep.subr.bf16.mxu0 0
        %2255 = vmatpush1.bf16.xpose.msra.mxu0 0
        %2256 = vmatprep.subr.bf16.mxu0 0
        %2257 = vmatpush1.bf16.xpose.msra.mxu0 0
        %2258 = vmatprep.subr.bf16.mxu0 0
        %2259 = vmatpush1.bf16.xpose.msra.mxu0 0
        %2260 = vmatprep.subr.bf16.mxu0 0
        %2261 = vmatpush1.bf16.xpose.msra.mxu0 0
        %2262 = vmatprep.subr.bf16.mxu0 0
        %2263 = vmatpush1.bf16.xpose.msra.mxu0 0
        %2264 = vmatprep.subr.bf16.mxu0 0
        %2265 = vmatpush1.bf16.xpose.msra.mxu0 0
        %2266 = vmatprep.subr.bf16.mxu0 0
        %2267 = vmatpush1.bf16.xpose.msra.mxu0 0
        %2268 = vmatprep.subr.bf16.mxu0 0
        %2269 = vmatpush1.bf16.xpose.msra.mxu0 0
        %2270 = vmatprep.subr.bf16.mxu0 0
        %2271 = vmatpush1.bf16.xpose.msra.mxu0 0
        %2272 = vmatprep.subr.bf16.mxu0 0
        %2273 = vmatpush1.bf16.xpose.msra.mxu0 0
        %2274 = vmatprep.subr.bf16.mxu0 0
        %2275 = vmatpush1.bf16.xpose.msra.mxu0 0
        %2276 = vmatprep.subr.bf16.mxu0 0
        %2277 = vmatpush1.bf16.xpose.msra.mxu0 0
        %2278 = vmatprep.mubr.bf16.mxu0 0
        %2279 = vmatmul.mubr.bf16.gmra.mrb[0].mxu0 %v2195
        %v2280 = vpop.f32.mrb[0].mxu0
        %v2281 = vadd.f32 0.0, %v2280
        %v2282 = vpop.f32.mrb[0].mxu0
        %v2283 = vpop.f32.mrb[0].mxu0
        %v2284 = vpop.f32.mrb[0].mxu0
        %2285 = vdwg.mxu0
        %v2286 = vsel %vm682, %v2235, -inf
        %2287 = vmax.xlane.f32.xlu0 %v2286
        %v2288 = vpop.xlane.xlu0 %2287
        %v2289 = vsel %vm682, %v2281, -inf
        %2290 = vmax.xlane.f32.xlu0 %v2289
        %v2291 = vpop.xlane.xlu0 %2290
        %v2292 = vsub.f32 %v2235, %v2288
        %v2293 = vsub.f32 %v2281, %v2291
        %v2294 = vmul.f32 %v2292, 1.442695
        %v2295 = vpow.pop %v2294
        %v2296 = vmul.f32 %v2293, 1.442695
        %v2297 = vpow.pop %v2296
        %v2298 = vsel %vm682, %v2295, 0.0
        %2299 = vadd.xlane.f32.xlu0 %v2298
        %v2300 = vpop.xlane.xlu0 %2299
        %v2301 = vsel %vm682, %v2297, 0.0
        %2302 = vadd.xlane.f32.xlu0 %v2301
        %v2303 = vpop.xlane.xlu0 %2302
        %v2304 = vrcp.pop %v2300
        %v2305 = vmul.f32 %v2295, %v2304
        %v2306 = vrcp.pop %v2303
        %v2307 = vmul.f32 %v2297, %v2306
        %v2308 = vpack.c.bf16 %v2305, %v2305
        %v2309 = vpack.c.bf16 %v2307, %v2307
        %2311 = vrot.lane.b32.xlu0 %v1987, 96
        %v2312 = vpop.permute.xlu0 %2311
        %v2315 = vsel %vm682, %v2308, 0
        %2317 = vmatprep.subr.bf16.mxu0 0
        %2318 = vmatpush1.bf16.msra.mxu0 %v2312
        %2319 = vmatprep.subr.bf16.mxu0 0
        %2320 = vmatpush1.bf16.msra.mxu0 0
        %2321 = vmatprep.subr.bf16.mxu0 0
        %2322 = vmatpush1.bf16.msra.mxu0 0
        %2323 = vmatprep.subr.bf16.mxu0 0
        %2324 = vmatpush1.bf16.msra.mxu0 0
        %2325 = vmatprep.subr.bf16.mxu0 0
        %2326 = vmatpush1.bf16.msra.mxu0 0
        %2327 = vmatprep.subr.bf16.mxu0 0
        %2328 = vmatpush1.bf16.msra.mxu0 0
        %2329 = vmatprep.subr.bf16.mxu0 0
        %2330 = vmatpush1.bf16.msra.mxu0 0
        %2331 = vmatprep.subr.bf16.mxu0 0
        %2332 = vmatpush1.bf16.msra.mxu0 0
        %2333 = vmatprep.subr.bf16.mxu0 0
        %2334 = vmatpush1.bf16.msra.mxu0 0
        %2335 = vmatprep.subr.bf16.mxu0 0
        %2336 = vmatpush1.bf16.msra.mxu0 0
        %2337 = vmatprep.subr.bf16.mxu0 0
        %2338 = vmatpush1.bf16.msra.mxu0 0
        %2339 = vmatprep.subr.bf16.mxu0 0
        %2340 = vmatpush1.bf16.msra.mxu0 0
        %2341 = vmatprep.subr.bf16.mxu0 0
        %2342 = vmatpush1.bf16.msra.mxu0 0
        %2343 = vmatprep.subr.bf16.mxu0 0
        %2344 = vmatpush1.bf16.msra.mxu0 0
        %2345 = vmatprep.subr.bf16.mxu0 0
        %2346 = vmatpush1.bf16.msra.mxu0 0
        %2347 = vmatprep.subr.bf16.mxu0 0
        %2348 = vmatpush1.bf16.msra.mxu0 0
        %2349 = vmatprep.mubr.bf16.mxu0 0
        %2350 = vmatmul.mubr.bf16.gmra.mrb[0].mxu0 %v2315
        %v2351 = vpop.f32.mrb[0].mxu0
        %v2352 = vadd.f32 0.0, %v2351
        %v2353 = vpop.f32.mrb[0].mxu0
        %v2354 = vpop.f32.mrb[0].mxu0
        %v2355 = vpop.f32.mrb[0].mxu0
        %2356 = vdwg.mxu0
        %2358 = vrot.lane.b32.xlu0 %v1988, 96
        %v2359 = vpop.permute.xlu0 %2358
        %v2362 = vsel %vm682, %v2309, 0
        %2364 = vmatprep.subr.bf16.mxu0 0
        %2365 = vmatpush1.bf16.msra.mxu0 %v2359
        %2366 = vmatprep.subr.bf16.mxu0 0
        %2367 = vmatpush1.bf16.msra.mxu0 0
        %2368 = vmatprep.subr.bf16.mxu0 0
        %2369 = vmatpush1.bf16.msra.mxu0 0
        %2370 = vmatprep.subr.bf16.mxu0 0
        %2371 = vmatpush1.bf16.msra.mxu0 0
        %2372 = vmatprep.subr.bf16.mxu0 0
        %2373 = vmatpush1.bf16.msra.mxu0 0
        %2374 = vmatprep.subr.bf16.mxu0 0
        %2375 = vmatpush1.bf16.msra.mxu0 0
        %2376 = vmatprep.subr.bf16.mxu0 0
        %2377 = vmatpush1.bf16.msra.mxu0 0
        %2378 = vmatprep.subr.bf16.mxu0 0
        %2379 = vmatpush1.bf16.msra.mxu0 0
        %2380 = vmatprep.subr.bf16.mxu0 0
        %2381 = vmatpush1.bf16.msra.mxu0 0
        %2382 = vmatprep.subr.bf16.mxu0 0
        %2383 = vmatpush1.bf16.msra.mxu0 0
        %2384 = vmatprep.subr.bf16.mxu0 0
        %2385 = vmatpush1.bf16.msra.mxu0 0
        %2386 = vmatprep.subr.bf16.mxu0 0
        %2387 = vmatpush1.bf16.msra.mxu0 0
        %2388 = vmatprep.subr.bf16.mxu0 0
        %2389 = vmatpush1.bf16.msra.mxu0 0
        %2390 = vmatprep.subr.bf16.mxu0 0
        %2391 = vmatpush1.bf16.msra.mxu0 0
        %2392 = vmatprep.subr.bf16.mxu0 0
        %2393 = vmatpush1.bf16.msra.mxu0 0
        %2394 = vmatprep.subr.bf16.mxu0 0
        %2395 = vmatpush1.bf16.msra.mxu0 0
        %2396 = vmatprep.mubr.bf16.mxu0 0
        %2397 = vmatmul.mubr.bf16.gmra.mrb[0].mxu0 %v2362
        %v2398 = vpop.f32.mrb[0].mxu0
        %v2399 = vadd.f32 0.0, %v2398
        %v2400 = vpop.f32.mrb[0].mxu0
        %v2401 = vpop.f32.mrb[0].mxu0
        %v2402 = vpop.f32.mrb[0].mxu0
        %2403 = vdwg.mxu0
        %2404 = vrot.lane.b32.xlu0 %v1984, 64
        %v2405 = vpop.permute.xlu0 %2404
        %2406 = vrot.lane.b32.xlu0 %v1985, 64
        %v2407 = vpop.permute.xlu0 %2406
        %v2409 = vsel %vm587, %v2405, 0
        %v2412 = vsel %vm587, %v2407, 0
        %2414 = vmatprep.subr.bf16.mxu0 0
        %2415 = vmatpush1.bf16.xpose.msra.mxu0 %v2412
        %2416 = vmatprep.subr.bf16.mxu0 0
        %2417 = vmatpush1.bf16.xpose.msra.mxu0 0
        %2418 = vmatprep.subr.bf16.mxu0 0
        %2419 = vmatpush1.bf16.xpose.msra.mxu0 0
        %2420 = vmatprep.subr.bf16.mxu0 0
        %2421 = vmatpush1.bf16.xpose.msra.mxu0 0
        %2422 = vmatprep.subr.bf16.mxu0 0
        %2423 = vmatpush1.bf16.xpose.msra.mxu0 0
        %2424 = vmatprep.subr.bf16.mxu0 0
        %2425 = vmatpush1.bf16.xpose.msra.mxu0 0
        %2426 = vmatprep.subr.bf16.mxu0 0
        %2427 = vmatpush1.bf16.xpose.msra.mxu0 0
        %2428 = vmatprep.subr.bf16.mxu0 0
        %2429 = vmatpush1.bf16.xpose.msra.mxu0 0
        %2430 = vmatprep.subr.bf16.mxu0 0
        %2431 = vmatpush1.bf16.xpose.msra.mxu0 0
        %2432 = vmatprep.subr.bf16.mxu0 0
        %2433 = vmatpush1.bf16.xpose.msra.mxu0 0
        %2434 = vmatprep.subr.bf16.mxu0 0
        %2435 = vmatpush1.bf16.xpose.msra.mxu0 0
        %2436 = vmatprep.subr.bf16.mxu0 0
        %2437 = vmatpush1.bf16.xpose.msra.mxu0 0
        %2438 = vmatprep.subr.bf16.mxu0 0
        %2439 = vmatpush1.bf16.xpose.msra.mxu0 0
        %2440 = vmatprep.subr.bf16.mxu0 0
        %2441 = vmatpush1.bf16.xpose.msra.mxu0 0
        %2442 = vmatprep.subr.bf16.mxu0 0
        %2443 = vmatpush1.bf16.xpose.msra.mxu0 0
        %2444 = vmatprep.subr.bf16.mxu0 0
        %2445 = vmatpush1.bf16.xpose.msra.mxu0 0
        %2446 = vmatprep.mubr.bf16.mxu0 0
        %2447 = vmatmul.mubr.bf16.gmra.mrb[0].mxu0 %v2409
        %v2448 = vpop.f32.mrb[0].mxu0
        %v2449 = vadd.f32 0.0, %v2448
        %v2450 = vpop.f32.mrb[0].mxu0
        %v2451 = vpop.f32.mrb[0].mxu0
        %v2452 = vpop.f32.mrb[0].mxu0
        %2453 = vdwg.mxu0
        %2454 = vrot.lane.b32.xlu0 %v1986, 64
        %v2455 = vpop.permute.xlu0 %2454
        %v2457 = vsel %vm587, %v2455, 0
        %2459 = vmatprep.subr.bf16.mxu0 0
        %2460 = vmatpush1.bf16.xpose.msra.mxu0 %v2457
        %2461 = vmatprep.subr.bf16.mxu0 0
        %2462 = vmatpush1.bf16.xpose.msra.mxu0 0
        %2463 = vmatprep.subr.bf16.mxu0 0
        %2464 = vmatpush1.bf16.xpose.msra.mxu0 0
        %2465 = vmatprep.subr.bf16.mxu0 0
        %2466 = vmatpush1.bf16.xpose.msra.mxu0 0
        %2467 = vmatprep.subr.bf16.mxu0 0
        %2468 = vmatpush1.bf16.xpose.msra.mxu0 0
        %2469 = vmatprep.subr.bf16.mxu0 0
        %2470 = vmatpush1.bf16.xpose.msra.mxu0 0
        %2471 = vmatprep.subr.bf16.mxu0 0
        %2472 = vmatpush1.bf16.xpose.msra.mxu0 0
        %2473 = vmatprep.subr.bf16.mxu0 0
        %2474 = vmatpush1.bf16.xpose.msra.mxu0 0
        %2475 = vmatprep.subr.bf16.mxu0 0
        %2476 = vmatpush1.bf16.xpose.msra.mxu0 0
        %2477 = vmatprep.subr.bf16.mxu0 0
        %2478 = vmatpush1.bf16.xpose.msra.mxu0 0
        %2479 = vmatprep.subr.bf16.mxu0 0
        %2480 = vmatpush1.bf16.xpose.msra.mxu0 0
        %2481 = vmatprep.subr.bf16.mxu0 0
        %2482 = vmatpush1.bf16.xpose.msra.mxu0 0
        %2483 = vmatprep.subr.bf16.mxu0 0
        %2484 = vmatpush1.bf16.xpose.msra.mxu0 0
        %2485 = vmatprep.subr.bf16.mxu0 0
        %2486 = vmatpush1.bf16.xpose.msra.mxu0 0
        %2487 = vmatprep.subr.bf16.mxu0 0
        %2488 = vmatpush1.bf16.xpose.msra.mxu0 0
        %2489 = vmatprep.subr.bf16.mxu0 0
        %2490 = vmatpush1.bf16.xpose.msra.mxu0 0
        %2491 = vmatprep.mubr.bf16.mxu0 0
        %2492 = vmatmul.mubr.bf16.gmra.mrb[0].mxu0 %v2409
        %v2493 = vpop.f32.mrb[0].mxu0
        %v2494 = vadd.f32 0.0, %v2493
        %v2495 = vpop.f32.mrb[0].mxu0
        %v2496 = vpop.f32.mrb[0].mxu0
        %v2497 = vpop.f32.mrb[0].mxu0
        %2498 = vdwg.mxu0
        %v2499 = vsel %vm682, %v2449, -inf
        %2500 = vmax.xlane.f32.xlu0 %v2499
        %v2501 = vpop.xlane.xlu0 %2500
        %v2502 = vsel %vm682, %v2494, -inf
        %2503 = vmax.xlane.f32.xlu0 %v2502
        %v2504 = vpop.xlane.xlu0 %2503
        %v2505 = vsub.f32 %v2449, %v2501
        %v2506 = vsub.f32 %v2494, %v2504
        %v2507 = vmul.f32 %v2505, 1.442695
        %v2508 = vpow.pop %v2507
        %v2509 = vmul.f32 %v2506, 1.442695
        %v2510 = vpow.pop %v2509
        %v2511 = vsel %vm682, %v2508, 0.0
        %2512 = vadd.xlane.f32.xlu0 %v2511
        %v2513 = vpop.xlane.xlu0 %2512
        %v2514 = vsel %vm682, %v2510, 0.0
        %2515 = vadd.xlane.f32.xlu0 %v2514
        %v2516 = vpop.xlane.xlu0 %2515
        %v2517 = vrcp.pop %v2513
        %v2518 = vmul.f32 %v2508, %v2517
        %v2519 = vrcp.pop %v2516
        %v2520 = vmul.f32 %v2510, %v2519
        %v2521 = vpack.c.bf16 %v2518, %v2518
        %v2522 = vpack.c.bf16 %v2520, %v2520
        %2523 = vrot.lane.b32.xlu0 %v1987, 64
        %v2524 = vpop.permute.xlu0 %2523
        %v2527 = vsel %vm682, %v2521, 0
        %2529 = vmatprep.subr.bf16.mxu0 0
        %2530 = vmatpush1.bf16.msra.mxu0 %v2524
        %2531 = vmatprep.subr.bf16.mxu0 0
        %2532 = vmatpush1.bf16.msra.mxu0 0
        %2533 = vmatprep.subr.bf16.mxu0 0
        %2534 = vmatpush1.bf16.msra.mxu0 0
        %2535 = vmatprep.subr.bf16.mxu0 0
        %2536 = vmatpush1.bf16.msra.mxu0 0
        %2537 = vmatprep.subr.bf16.mxu0 0
        %2538 = vmatpush1.bf16.msra.mxu0 0
        %2539 = vmatprep.subr.bf16.mxu0 0
        %2540 = vmatpush1.bf16.msra.mxu0 0
        %2541 = vmatprep.subr.bf16.mxu0 0
        %2542 = vmatpush1.bf16.msra.mxu0 0
        %2543 = vmatprep.subr.bf16.mxu0 0
        %2544 = vmatpush1.bf16.msra.mxu0 0
        %2545 = vmatprep.subr.bf16.mxu0 0
        %2546 = vmatpush1.bf16.msra.mxu0 0
        %2547 = vmatprep.subr.bf16.mxu0 0
        %2548 = vmatpush1.bf16.msra.mxu0 0
        %2549 = vmatprep.subr.bf16.mxu0 0
        %2550 = vmatpush1.bf16.msra.mxu0 0
        %2551 = vmatprep.subr.bf16.mxu0 0
        %2552 = vmatpush1.bf16.msra.mxu0 0
        %2553 = vmatprep.subr.bf16.mxu0 0
        %2554 = vmatpush1.bf16.msra.mxu0 0
        %2555 = vmatprep.subr.bf16.mxu0 0
        %2556 = vmatpush1.bf16.msra.mxu0 0
        %2557 = vmatprep.subr.bf16.mxu0 0
        %2558 = vmatpush1.bf16.msra.mxu0 0
        %2559 = vmatprep.subr.bf16.mxu0 0
        %2560 = vmatpush1.bf16.msra.mxu0 0
        %2561 = vmatprep.mubr.bf16.mxu0 0
        %2562 = vmatmul.mubr.bf16.gmra.mrb[0].mxu0 %v2527
        %v2563 = vpop.f32.mrb[0].mxu0
        %v2564 = vadd.f32 0.0, %v2563
        %v2565 = vpop.f32.mrb[0].mxu0
        %v2566 = vpop.f32.mrb[0].mxu0
        %v2567 = vpop.f32.mrb[0].mxu0
        %2568 = vdwg.mxu0
        %2569 = vrot.lane.b32.xlu0 %v1988, 64
        %v2570 = vpop.permute.xlu0 %2569
        %v2573 = vsel %vm682, %v2522, 0
        %2575 = vmatprep.subr.bf16.mxu0 0
        %2576 = vmatpush1.bf16.msra.mxu0 %v2570
        %2577 = vmatprep.subr.bf16.mxu0 0
        %2578 = vmatpush1.bf16.msra.mxu0 0
        %2579 = vmatprep.subr.bf16.mxu0 0
        %2580 = vmatpush1.bf16.msra.mxu0 0
        %2581 = vmatprep.subr.bf16.mxu0 0
        %2582 = vmatpush1.bf16.msra.mxu0 0
        %2583 = vmatprep.subr.bf16.mxu0 0
        %2584 = vmatpush1.bf16.msra.mxu0 0
        %2585 = vmatprep.subr.bf16.mxu0 0
        %2586 = vmatpush1.bf16.msra.mxu0 0
        %2587 = vmatprep.subr.bf16.mxu0 0
        %2588 = vmatpush1.bf16.msra.mxu0 0
        %2589 = vmatprep.subr.bf16.mxu0 0
        %2590 = vmatpush1.bf16.msra.mxu0 0
        %2591 = vmatprep.subr.bf16.mxu0 0
        %2592 = vmatpush1.bf16.msra.mxu0 0
        %2593 = vmatprep.subr.bf16.mxu0 0
        %2594 = vmatpush1.bf16.msra.mxu0 0
        %2595 = vmatprep.subr.bf16.mxu0 0
        %2596 = vmatpush1.bf16.msra.mxu0 0
        %2597 = vmatprep.subr.bf16.mxu0 0
        %2598 = vmatpush1.bf16.msra.mxu0 0
        %2599 = vmatprep.subr.bf16.mxu0 0
        %2600 = vmatpush1.bf16.msra.mxu0 0
        %2601 = vmatprep.subr.bf16.mxu0 0
        %2602 = vmatpush1.bf16.msra.mxu0 0
        %2603 = vmatprep.subr.bf16.mxu0 0
        %2604 = vmatpush1.bf16.msra.mxu0 0
        %2605 = vmatprep.subr.bf16.mxu0 0
        %2606 = vmatpush1.bf16.msra.mxu0 0
        %2607 = vmatprep.mubr.bf16.mxu0 0
        %2608 = vmatmul.mubr.bf16.gmra.mrb[0].mxu0 %v2573
        %v2609 = vpop.f32.mrb[0].mxu0
        %v2610 = vadd.f32 0.0, %v2609
        %v2611 = vpop.f32.mrb[0].mxu0
        %v2612 = vpop.f32.mrb[0].mxu0
        %v2613 = vpop.f32.mrb[0].mxu0
        %2614 = vdwg.mxu0
        %2615 = vrot.lane.b32.xlu0 %v1984, 32
        %v2616 = vpop.permute.xlu0 %2615
        %2617 = vrot.lane.b32.xlu0 %v1985, 32
        %v2618 = vpop.permute.xlu0 %2617
        %v2620 = vsel %vm587, %v2616, 0
        %v2623 = vsel %vm587, %v2618, 0
        %2625 = vmatprep.subr.bf16.mxu0 0
        %2626 = vmatpush1.bf16.xpose.msra.mxu0 %v2623
        %2627 = vmatprep.subr.bf16.mxu0 0
        %2628 = vmatpush1.bf16.xpose.msra.mxu0 0
        %2629 = vmatprep.subr.bf16.mxu0 0
        %2630 = vmatpush1.bf16.xpose.msra.mxu0 0
        %2631 = vmatprep.subr.bf16.mxu0 0
        %2632 = vmatpush1.bf16.xpose.msra.mxu0 0
        %2633 = vmatprep.subr.bf16.mxu0 0
        %2634 = vmatpush1.bf16.xpose.msra.mxu0 0
        %2635 = vmatprep.subr.bf16.mxu0 0
        %2636 = vmatpush1.bf16.xpose.msra.mxu0 0
        %2637 = vmatprep.subr.bf16.mxu0 0
        %2638 = vmatpush1.bf16.xpose.msra.mxu0 0
        %2639 = vmatprep.subr.bf16.mxu0 0
        %2640 = vmatpush1.bf16.xpose.msra.mxu0 0
        %2641 = vmatprep.subr.bf16.mxu0 0
        %2642 = vmatpush1.bf16.xpose.msra.mxu0 0
        %2643 = vmatprep.subr.bf16.mxu0 0
        %2644 = vmatpush1.bf16.xpose.msra.mxu0 0
        %2645 = vmatprep.subr.bf16.mxu0 0
        %2646 = vmatpush1.bf16.xpose.msra.mxu0 0
        %2647 = vmatprep.subr.bf16.mxu0 0
        %2648 = vmatpush1.bf16.xpose.msra.mxu0 0
        %2649 = vmatprep.subr.bf16.mxu0 0
        %2650 = vmatpush1.bf16.xpose.msra.mxu0 0
        %2651 = vmatprep.subr.bf16.mxu0 0
        %2652 = vmatpush1.bf16.xpose.msra.mxu0 0
        %2653 = vmatprep.subr.bf16.mxu0 0
        %2654 = vmatpush1.bf16.xpose.msra.mxu0 0
        %2655 = vmatprep.subr.bf16.mxu0 0
        %2656 = vmatpush1.bf16.xpose.msra.mxu0 0
        %2657 = vmatprep.mubr.bf16.mxu0 0
        %2658 = vmatmul.mubr.bf16.gmra.mrb[0].mxu0 %v2620
        %v2659 = vpop.f32.mrb[0].mxu0
        %v2660 = vadd.f32 0.0, %v2659
        %v2661 = vpop.f32.mrb[0].mxu0
        %v2662 = vpop.f32.mrb[0].mxu0
        %v2663 = vpop.f32.mrb[0].mxu0
        %2664 = vdwg.mxu0
        %2665 = vrot.lane.b32.xlu0 %v1986, 32
        %v2666 = vpop.permute.xlu0 %2665
        %v2668 = vsel %vm587, %v2666, 0
        %2670 = vmatprep.subr.bf16.mxu0 0
        %2671 = vmatpush1.bf16.xpose.msra.mxu0 %v2668
        %2672 = vmatprep.subr.bf16.mxu0 0
        %2673 = vmatpush1.bf16.xpose.msra.mxu0 0
        %2674 = vmatprep.subr.bf16.mxu0 0
        %2675 = vmatpush1.bf16.xpose.msra.mxu0 0
        %2676 = vmatprep.subr.bf16.mxu0 0
        %2677 = vmatpush1.bf16.xpose.msra.mxu0 0
        %2678 = vmatprep.subr.bf16.mxu0 0
        %2679 = vmatpush1.bf16.xpose.msra.mxu0 0
        %2680 = vmatprep.subr.bf16.mxu0 0
        %2681 = vmatpush1.bf16.xpose.msra.mxu0 0
        %2682 = vmatprep.subr.bf16.mxu0 0
        %2683 = vmatpush1.bf16.xpose.msra.mxu0 0
        %2684 = vmatprep.subr.bf16.mxu0 0
        %2685 = vmatpush1.bf16.xpose.msra.mxu0 0
        %2686 = vmatprep.subr.bf16.mxu0 0
        %2687 = vmatpush1.bf16.xpose.msra.mxu0 0
        %2688 = vmatprep.subr.bf16.mxu0 0
        %2689 = vmatpush1.bf16.xpose.msra.mxu0 0
        %2690 = vmatprep.subr.bf16.mxu0 0
        %2691 = vmatpush1.bf16.xpose.msra.mxu0 0
        %2692 = vmatprep.subr.bf16.mxu0 0
        %2693 = vmatpush1.bf16.xpose.msra.mxu0 0
        %2694 = vmatprep.subr.bf16.mxu0 0
        %2695 = vmatpush1.bf16.xpose.msra.mxu0 0
        %2696 = vmatprep.subr.bf16.mxu0 0
        %2697 = vmatpush1.bf16.xpose.msra.mxu0 0
        %2698 = vmatprep.subr.bf16.mxu0 0
        %2699 = vmatpush1.bf16.xpose.msra.mxu0 0
        %2700 = vmatprep.subr.bf16.mxu0 0
        %2701 = vmatpush1.bf16.xpose.msra.mxu0 0
        %2702 = vmatprep.mubr.bf16.mxu0 0
        %2703 = vmatmul.mubr.bf16.gmra.mrb[0].mxu0 %v2620
        %v2704 = vpop.f32.mrb[0].mxu0
        %v2705 = vadd.f32 0.0, %v2704
        %v2706 = vpop.f32.mrb[0].mxu0
        %v2707 = vpop.f32.mrb[0].mxu0
        %v2708 = vpop.f32.mrb[0].mxu0
        %2709 = vdwg.mxu0
        %v2710 = vsel %vm682, %v2660, -inf
        %2711 = vmax.xlane.f32.xlu0 %v2710
        %v2712 = vpop.xlane.xlu0 %2711
        %v2713 = vsel %vm682, %v2705, -inf
        %2714 = vmax.xlane.f32.xlu0 %v2713
        %v2715 = vpop.xlane.xlu0 %2714
        %v2716 = vsub.f32 %v2660, %v2712
        %v2717 = vsub.f32 %v2705, %v2715
        %v2718 = vmul.f32 %v2716, 1.442695
        %v2719 = vpow.pop %v2718
        %v2720 = vmul.f32 %v2717, 1.442695
        %v2721 = vpow.pop %v2720
        %v2722 = vsel %vm682, %v2719, 0.0
        %2723 = vadd.xlane.f32.xlu0 %v2722
        %v2724 = vpop.xlane.xlu0 %2723
        %v2725 = vsel %vm682, %v2721, 0.0
        %2726 = vadd.xlane.f32.xlu0 %v2725
        %v2727 = vpop.xlane.xlu0 %2726
        %v2728 = vrcp.pop %v2724
        %v2729 = vmul.f32 %v2719, %v2728
        %v2730 = vrcp.pop %v2727
        %v2731 = vmul.f32 %v2721, %v2730
        %v2732 = vpack.c.bf16 %v2729, %v2729
        %v2733 = vpack.c.bf16 %v2731, %v2731
        %2734 = vrot.lane.b32.xlu0 %v1987, 32
        %v2735 = vpop.permute.xlu0 %2734
        %v2738 = vsel %vm682, %v2732, 0
        %2740 = vmatprep.subr.bf16.mxu0 0
        %2741 = vmatpush1.bf16.msra.mxu0 %v2735
        %2742 = vmatprep.subr.bf16.mxu0 0
        %2743 = vmatpush1.bf16.msra.mxu0 0
        %2744 = vmatprep.subr.bf16.mxu0 0
        %2745 = vmatpush1.bf16.msra.mxu0 0
        %2746 = vmatprep.subr.bf16.mxu0 0
        %2747 = vmatpush1.bf16.msra.mxu0 0
        %2748 = vmatprep.subr.bf16.mxu0 0
        %2749 = vmatpush1.bf16.msra.mxu0 0
        %2750 = vmatprep.subr.bf16.mxu0 0
        %2751 = vmatpush1.bf16.msra.mxu0 0
        %2752 = vmatprep.subr.bf16.mxu0 0
        %2753 = vmatpush1.bf16.msra.mxu0 0
        %2754 = vmatprep.subr.bf16.mxu0 0
        %2755 = vmatpush1.bf16.msra.mxu0 0
        %2756 = vmatprep.subr.bf16.mxu0 0
        %2757 = vmatpush1.bf16.msra.mxu0 0
        %2758 = vmatprep.subr.bf16.mxu0 0
        %2759 = vmatpush1.bf16.msra.mxu0 0
        %2760 = vmatprep.subr.bf16.mxu0 0
        %2761 = vmatpush1.bf16.msra.mxu0 0
        %2762 = vmatprep.subr.bf16.mxu0 0
        %2763 = vmatpush1.bf16.msra.mxu0 0
        %2764 = vmatprep.subr.bf16.mxu0 0
        %2765 = vmatpush1.bf16.msra.mxu0 0
        %2766 = vmatprep.subr.bf16.mxu0 0
        %2767 = vmatpush1.bf16.msra.mxu0 0
        %2768 = vmatprep.subr.bf16.mxu0 0
        %2769 = vmatpush1.bf16.msra.mxu0 0
        %2770 = vmatprep.subr.bf16.mxu0 0
        %2771 = vmatpush1.bf16.msra.mxu0 0
        %2772 = vmatprep.mubr.bf16.mxu0 0
        %2773 = vmatmul.mubr.bf16.gmra.mrb[0].mxu0 %v2738
        %v2774 = vpop.f32.mrb[0].mxu0
        %v2775 = vadd.f32 0.0, %v2774
        %v2776 = vpop.f32.mrb[0].mxu0
        %v2777 = vpop.f32.mrb[0].mxu0
        %v2778 = vpop.f32.mrb[0].mxu0
        %2779 = vdwg.mxu0
        %2780 = vrot.lane.b32.xlu0 %v1988, 32
        %v2781 = vpop.permute.xlu0 %2780
        %v2784 = vsel %vm682, %v2733, 0
        %2786 = vmatprep.subr.bf16.mxu0 0
        %2787 = vmatpush1.bf16.msra.mxu0 %v2781
        %2788 = vmatprep.subr.bf16.mxu0 0
        %2789 = vmatpush1.bf16.msra.mxu0 0
        %2790 = vmatprep.subr.bf16.mxu0 0
        %2791 = vmatpush1.bf16.msra.mxu0 0
        %2792 = vmatprep.subr.bf16.mxu0 0
        %2793 = vmatpush1.bf16.msra.mxu0 0
        %2794 = vmatprep.subr.bf16.mxu0 0
        %2795 = vmatpush1.bf16.msra.mxu0 0
        %2796 = vmatprep.subr.bf16.mxu0 0
        %2797 = vmatpush1.bf16.msra.mxu0 0
        %2798 = vmatprep.subr.bf16.mxu0 0
        %2799 = vmatpush1.bf16.msra.mxu0 0
        %2800 = vmatprep.subr.bf16.mxu0 0
        %2801 = vmatpush1.bf16.msra.mxu0 0
        %2802 = vmatprep.subr.bf16.mxu0 0
        %2803 = vmatpush1.bf16.msra.mxu0 0
        %2804 = vmatprep.subr.bf16.mxu0 0
        %2805 = vmatpush1.bf16.msra.mxu0 0
        %2806 = vmatprep.subr.bf16.mxu0 0
        %2807 = vmatpush1.bf16.msra.mxu0 0
        %2808 = vmatprep.subr.bf16.mxu0 0
        %2809 = vmatpush1.bf16.msra.mxu0 0
        %2810 = vmatprep.subr.bf16.mxu0 0
        %2811 = vmatpush1.bf16.msra.mxu0 0
        %2812 = vmatprep.subr.bf16.mxu0 0
        %2813 = vmatpush1.bf16.msra.mxu0 0
        %2814 = vmatprep.subr.bf16.mxu0 0
        %2815 = vmatpush1.bf16.msra.mxu0 0
        %2816 = vmatprep.subr.bf16.mxu0 0
        %2817 = vmatpush1.bf16.msra.mxu0 0
        %2818 = vmatprep.mubr.bf16.mxu0 0
        %2819 = vmatmul.mubr.bf16.gmra.mrb[0].mxu0 %v2784
        %v2820 = vpop.f32.mrb[0].mxu0
        %v2821 = vadd.f32 0.0, %v2820
        %v2822 = vpop.f32.mrb[0].mxu0
        %v2823 = vpop.f32.mrb[0].mxu0
        %v2824 = vpop.f32.mrb[0].mxu0
        %2825 = vdwg.mxu0
        %2828 = vrot.lane.b32.xlu0 %v2352, 32
        %v2829 = vpop.permute.xlu0 %2828
        %2830 = vrot.lane.b32.xlu0 %v2399, 32
        %v2831 = vpop.permute.xlu0 %2830
        %2836 = vrot.lane.b32.xlu0 %v2564, 64
        %v2837 = vpop.permute.xlu0 %2836
        %2838 = vrot.lane.b32.xlu0 %v2610, 64
        %v2839 = vpop.permute.xlu0 %2838
        %2844 = vrot.lane.b32.xlu0 %v2775, 96
        %v2845 = vpop.permute.xlu0 %2844
        %2846 = vrot.lane.b32.xlu0 %v2821, 96
        %v2847 = vpop.permute.xlu0 %2846
        %v2850 = vsel %vm587, %v2140, %v2829
        %v2851 = vsel %vm587, %v2183, %v2831
        %v2852 = vsel %vm1601, %v2850, %v2837
        %v2853 = vsel %vm1601, %v2851, %v2839
        %v2854 = vsel %vm1606, %v2852, %v2845
        %v2855 = vsel %vm1606, %v2853, %v2847
        %v2856 = vpack.c.bf16 %v2855, %v2854
        %v2873 = vunpack.c.l.b16 %v1744
        %v2874 = vunpack.c.l.b16 %v1745
        %v2875 = vunpack.c.l.b16 %v1746
        %v2876 = vunpack.c.l.b16 %v1747
        %v2877 = vunpack.c.l.b16 %v1748
        %v2878 = vunpack.c.l.b16 %v1749
        %v2879 = vunpack.c.l.b16 %v1750
        %v2880 = vunpack.c.l.b16 %v1751
        %v2881 = vunpack.c.l.b16 %v1752
        %v2882 = vunpack.c.l.b16 %v1753
        %v2883 = vunpack.c.l.b16 %v1754
        %v2884 = vunpack.c.l.b16 %v1755
        %v2885 = vunpack.c.l.b16 %v1756
        %v2886 = vunpack.c.l.b16 %v1757
        %v2887 = vunpack.c.l.b16 %v1758
        %v2888 = vunpack.c.l.b16 %v1759
        %v2889 = vpack.c.b16 %v2874, %v2873
        %v2890 = vpack.c.b16 %v2876, %v2875
        %v2891 = vpack.c.b16 %v2878, %v2877
        %v2892 = vpack.c.b16 %v2880, %v2879
        %v2893 = vpack.c.b16 %v2882, %v2881
        %v2894 = vpack.c.b16 %v2884, %v2883
        %v2895 = vpack.c.b16 %v2886, %v2885
        %v2896 = vpack.c.b16 %v2888, %v2887
        %2905 = vmatprep.subr.bf16.mxu0 0
        %2906 = vmatpush1.bf16.msra.mxu0 %v2889
        %2907 = vmatprep.subr.bf16.mxu0 0
        %2908 = vmatpush1.bf16.msra.mxu0 %v2890
        %2909 = vmatprep.subr.bf16.mxu0 0
        %2910 = vmatpush1.bf16.msra.mxu0 %v2891
        %2911 = vmatprep.subr.bf16.mxu0 0
        %2912 = vmatpush1.bf16.msra.mxu0 %v2892
        %2913 = vmatprep.subr.bf16.mxu0 0
        %2914 = vmatpush1.bf16.msra.mxu0 %v2893
        %2915 = vmatprep.subr.bf16.mxu0 0
        %2916 = vmatpush1.bf16.msra.mxu0 %v2894
        %2917 = vmatprep.subr.bf16.mxu0 0
        %2918 = vmatpush1.bf16.msra.mxu0 %v2895
        %2919 = vmatprep.subr.bf16.mxu0 0
        %2920 = vmatpush1.bf16.msra.mxu0 %v2896
        %2921 = vmatprep.subr.bf16.mxu0 0
        %2922 = vmatpush1.bf16.msra.mxu0 0
        %2923 = vmatprep.subr.bf16.mxu0 0
        %2924 = vmatpush1.bf16.msra.mxu0 0
        %2925 = vmatprep.subr.bf16.mxu0 0
        %2926 = vmatpush1.bf16.msra.mxu0 0
        %2927 = vmatprep.subr.bf16.mxu0 0
        %2928 = vmatpush1.bf16.msra.mxu0 0
        %2929 = vmatprep.subr.bf16.mxu0 0
        %2930 = vmatpush1.bf16.msra.mxu0 0
        %2931 = vmatprep.subr.bf16.mxu0 0
        %2932 = vmatpush1.bf16.msra.mxu0 0
        %2933 = vmatprep.subr.bf16.mxu0 0
        %2934 = vmatpush1.bf16.msra.mxu0 0
        %2935 = vmatprep.subr.bf16.mxu0 0
        %2936 = vmatpush1.bf16.msra.mxu0 0
        %2937 = vmatprep.mubr.bf16.mxu0 0
        %2938 = vmatmul.mubr.bf16.gmra.mrb[0].mxu0 %v2856
        %v2939 = vpop.f32.mrb[0].mxu0
        %v2940 = vadd.f32 0.0, %v2939
        %v2941 = vpop.f32.mrb[0].mxu0
        %v2942 = vpop.f32.mrb[0].mxu0
        %v2943 = vadd.f32 0.0, %v2942
        %v2944 = vpop.f32.mrb[0].mxu0
        %2945 = vdwg.mxu0
        %s2946 = scalar_lea.vmem [#allocation7], 384
        %v2947 = vld [vmem:[%s2946] sm:$0xff]
        %v2948 = vld [vmem:[%s2946 + $0x8] sm:$0xf]
        %v2949 = vld [vmem:[%s2946 + $0xc] sm:$0xff]
        %v2950 = vld [vmem:[%s2946 + $0x14] sm:$0xf]
        %v2951 = vld [vmem:[%s2946 + $0x18] sm:$0xff]
        %v2952 = vld [vmem:[%s2946 + $0x20] sm:$0xf]
        %v2953 = vld [vmem:[%s2946 + $0x24] sm:$0xff]
        %v2954 = vld [vmem:[%s2946 + $0x2c] sm:$0xf]
        %v2955 = vld [vmem:[%s2946 + $0x30] sm:$0xff]
        %v2956 = vld [vmem:[%s2946 + $0x38] sm:$0xf]
        %v2957 = vld [vmem:[%s2946 + $0x3c] sm:$0xff]
        %v2958 = vld [vmem:[%s2946 + $0x44] sm:$0xf]
        %v2959 = vld [vmem:[%s2946 + $0x48] sm:$0xff]
        %v2960 = vld [vmem:[%s2946 + $0x50] sm:$0xf]
        %v2961 = vld [vmem:[%s2946 + $0x54] sm:$0xff]
        %v2962 = vld [vmem:[%s2946 + $0x5c] sm:$0xf]
        %v2963 = vld [vmem:[%s2946 + $0x60] sm:$0xff]
        %v2964 = vld [vmem:[%s2946 + $0x68] sm:$0xf]
        %v2965 = vld [vmem:[%s2946 + $0x6c] sm:$0xff]
        %v2966 = vld [vmem:[%s2946 + $0x74] sm:$0xf]
        %v2967 = vld [vmem:[%s2946 + $0x78] sm:$0xff]
        %v2968 = vld [vmem:[%s2946 + $0x80] sm:$0xf]
        %v2969 = vld [vmem:[%s2946 + $0x84] sm:$0xff]
        %v2970 = vld [vmem:[%s2946 + $0x8c] sm:$0xf]
        %v2971 = vld [vmem:[%s2946 + $0x90] sm:$0xff]
        %v2972 = vld [vmem:[%s2946 + $0x98] sm:$0xf]
        %v2973 = vld [vmem:[%s2946 + $0x9c] sm:$0xff]
        %v2974 = vld [vmem:[%s2946 + $0xa4] sm:$0xf]
        %v2975 = vld [vmem:[%s2946 + $0xa8] sm:$0xff]
        %v2976 = vld [vmem:[%s2946 + $0xb0] sm:$0xf]
        %v2977 = vld [vmem:[%s2946 + $0xb4] sm:$0xff]
        %v2978 = vld [vmem:[%s2946 + $0xbc] sm:$0xf]
        %s2979 = scalar_lea.vmem [#allocation8], 128
        %v2980 = vld [vmem:[%s2979] sm:$0xf]
        %v2981 = vld [vmem:[%s2979 + $0x4] sm:$0xf]
        %v2982 = vld [vmem:[%s2979 + $0x8] sm:$0xf]
        %v2983 = vld [vmem:[%s2979 + $0xc] sm:$0xf]
        %v2984 = vld [vmem:[%s2979 + $0x10] sm:$0xf]
        %v2985 = vld [vmem:[%s2979 + $0x14] sm:$0xf]
        %v2986 = vld [vmem:[%s2979 + $0x18] sm:$0xf]
        %v2987 = vld [vmem:[%s2979 + $0x1c] sm:$0xf]
        %v2988 = vld [vmem:[%s2979 + $0x20] sm:$0xf]
        %v2989 = vld [vmem:[%s2979 + $0x24] sm:$0xf]
        %v2990 = vld [vmem:[%s2979 + $0x28] sm:$0xf]
        %v2991 = vld [vmem:[%s2979 + $0x2c] sm:$0xf]
        %v2992 = vld [vmem:[%s2979 + $0x30] sm:$0xf]
        %v2993 = vld [vmem:[%s2979 + $0x34] sm:$0xf]
        %v2994 = vld [vmem:[%s2979 + $0x38] sm:$0xf]
        %v2995 = vld [vmem:[%s2979 + $0x3c] sm:$0xf]
        %v2996 = vpack.c.bf16 %v2943, %v2940
        %v3029 = vunpack.c.l.b16 %v2947
        %v3030 = vunpack.c.h.b16 %v2947
        %v3031 = vunpack.c.l.b16 %v2948
        %v3032 = vunpack.c.l.b16 %v2949
        %v3033 = vunpack.c.h.b16 %v2949
        %v3034 = vunpack.c.l.b16 %v2950
        %v3035 = vunpack.c.l.b16 %v2951
        %v3036 = vunpack.c.h.b16 %v2951
        %v3037 = vunpack.c.l.b16 %v2952
        %v3038 = vunpack.c.l.b16 %v2953
        %v3039 = vunpack.c.h.b16 %v2953
        %v3040 = vunpack.c.l.b16 %v2954
        %v3041 = vunpack.c.l.b16 %v2955
        %v3042 = vunpack.c.h.b16 %v2955
        %v3043 = vunpack.c.l.b16 %v2956
        %v3044 = vunpack.c.l.b16 %v2957
        %v3045 = vunpack.c.h.b16 %v2957
        %v3046 = vunpack.c.l.b16 %v2958
        %v3047 = vunpack.c.l.b16 %v2959
        %v3048 = vunpack.c.h.b16 %v2959
        %v3049 = vunpack.c.l.b16 %v2960
        %v3050 = vunpack.c.l.b16 %v2961
        %v3051 = vunpack.c.h.b16 %v2961
        %v3052 = vunpack.c.l.b16 %v2962
        %v3053 = vunpack.c.l.b16 %v2963
        %v3054 = vunpack.c.h.b16 %v2963
        %v3055 = vunpack.c.l.b16 %v2964
        %v3056 = vunpack.c.l.b16 %v2965
        %v3057 = vunpack.c.h.b16 %v2965
        %v3058 = vunpack.c.l.b16 %v2966
        %v3059 = vunpack.c.l.b16 %v2967
        %v3060 = vunpack.c.h.b16 %v2967
        %v3061 = vunpack.c.l.b16 %v2968
        %v3062 = vunpack.c.l.b16 %v2969
        %v3063 = vunpack.c.h.b16 %v2969
        %v3064 = vunpack.c.l.b16 %v2970
        %v3065 = vunpack.c.l.b16 %v2971
        %v3066 = vunpack.c.h.b16 %v2971
        %v3067 = vunpack.c.l.b16 %v2972
        %v3068 = vunpack.c.l.b16 %v2973
        %v3069 = vunpack.c.h.b16 %v2973
        %v3070 = vunpack.c.l.b16 %v2974
        %v3071 = vunpack.c.l.b16 %v2975
        %v3072 = vunpack.c.h.b16 %v2975
        %v3073 = vunpack.c.l.b16 %v2976
        %v3074 = vunpack.c.l.b16 %v2977
        %v3075 = vunpack.c.h.b16 %v2977
        %v3076 = vunpack.c.l.b16 %v2978
        %v3077 = vpack.c.b16 %v3032, %v3029
        %v3078 = vpack.c.b16 %v3033, %v3030
        %v3079 = vpack.c.b16 %v3034, %v3031
        %v3080 = vpack.c.b16 %v3038, %v3035
        %v3081 = vpack.c.b16 %v3039, %v3036
        %v3082 = vpack.c.b16 %v3040, %v3037
        %v3083 = vpack.c.b16 %v3044, %v3041
        %v3084 = vpack.c.b16 %v3045, %v3042
        %v3085 = vpack.c.b16 %v3046, %v3043
        %v3086 = vpack.c.b16 %v3050, %v3047
        %v3087 = vpack.c.b16 %v3051, %v3048
        %v3088 = vpack.c.b16 %v3052, %v3049
        %v3089 = vpack.c.b16 %v3056, %v3053
        %v3090 = vpack.c.b16 %v3057, %v3054
        %v3091 = vpack.c.b16 %v3058, %v3055
        %v3092 = vpack.c.b16 %v3062, %v3059
        %v3093 = vpack.c.b16 %v3063, %v3060
        %v3094 = vpack.c.b16 %v3064, %v3061
        %v3095 = vpack.c.b16 %v3068, %v3065
        %v3096 = vpack.c.b16 %v3069, %v3066
        %v3097 = vpack.c.b16 %v3070, %v3067
        %v3098 = vpack.c.b16 %v3074, %v3071
        %v3099 = vpack.c.b16 %v3075, %v3072
        %v3100 = vpack.c.b16 %v3076, %v3073
        %3125 = vmatprep.subr.bf16.mxu0 %v3078
        %3126 = vmatpush1.bf16.msra.mxu0 %v3077
        %3127 = vmatprep.subr.bf16.mxu0 %v3081
        %3128 = vmatpush1.bf16.msra.mxu0 %v3080
        %3129 = vmatprep.subr.bf16.mxu0 %v3084
        %3130 = vmatpush1.bf16.msra.mxu0 %v3083
        %3131 = vmatprep.subr.bf16.mxu0 %v3087
        %3132 = vmatpush1.bf16.msra.mxu0 %v3086
        %3133 = vmatprep.subr.bf16.mxu0 %v3090
        %3134 = vmatpush1.bf16.msra.mxu0 %v3089
        %3135 = vmatprep.subr.bf16.mxu0 %v3093
        %3136 = vmatpush1.bf16.msra.mxu0 %v3092
        %3137 = vmatprep.subr.bf16.mxu0 %v3096
        %3138 = vmatpush1.bf16.msra.mxu0 %v3095
        %3139 = vmatprep.subr.bf16.mxu0 %v3099
        %3140 = vmatpush1.bf16.msra.mxu0 %v3098
        %3141 = vmatprep.subr.bf16.mxu0 0
        %3142 = vmatpush1.bf16.msra.mxu0 0
        %3143 = vmatprep.subr.bf16.mxu0 0
        %3144 = vmatpush1.bf16.msra.mxu0 0
        %3145 = vmatprep.subr.bf16.mxu0 0
        %3146 = vmatpush1.bf16.msra.mxu0 0
        %3147 = vmatprep.subr.bf16.mxu0 0
        %3148 = vmatpush1.bf16.msra.mxu0 0
        %3149 = vmatprep.subr.bf16.mxu0 0
        %3150 = vmatpush1.bf16.msra.mxu0 0
        %3151 = vmatprep.subr.bf16.mxu0 0
        %3152 = vmatpush1.bf16.msra.mxu0 0
        %3153 = vmatprep.subr.bf16.mxu0 0
        %3154 = vmatpush1.bf16.msra.mxu0 0
        %3155 = vmatprep.subr.bf16.mxu0 0
        %3156 = vmatpush1.bf16.msra.mxu0 0
        %3157 = vmatprep.mubr.bf16.mxu0 0
        %3158 = vmatmul.mubr.bf16.gmra.mrb[0].mxu0 %v2996
        %v3159 = vpop.f32.mrb[0].mxu0
        %v3160 = vadd.f32 0.0, %v3159
        %v3161 = vpop.f32.mrb[0].mxu0
        %v3162 = vadd.f32 0.0, %v3161
        %v3163 = vpop.f32.mrb[0].mxu0
        %v3164 = vadd.f32 0.0, %v3163
        %v3165 = vpop.f32.mrb[0].mxu0
        %v3166 = vadd.f32 0.0, %v3165
        %3167 = vdwg.mxu0
        %3168 = vmatprep.subr.bf16.mxu0 0
        %3169 = vmatpush1.bf16.msra.mxu0 %v3079
        %3170 = vmatprep.subr.bf16.mxu0 0
        %3171 = vmatpush1.bf16.msra.mxu0 %v3082
        %3172 = vmatprep.subr.bf16.mxu0 0
        %3173 = vmatpush1.bf16.msra.mxu0 %v3085
        %3174 = vmatprep.subr.bf16.mxu0 0
        %3175 = vmatpush1.bf16.msra.mxu0 %v3088
        %3176 = vmatprep.subr.bf16.mxu0 0
        %3177 = vmatpush1.bf16.msra.mxu0 %v3091
        %3178 = vmatprep.subr.bf16.mxu0 0
        %3179 = vmatpush1.bf16.msra.mxu0 %v3094
        %3180 = vmatprep.subr.bf16.mxu0 0
        %3181 = vmatpush1.bf16.msra.mxu0 %v3097
        %3182 = vmatprep.subr.bf16.mxu0 0
        %3183 = vmatpush1.bf16.msra.mxu0 %v3100
        %3184 = vmatprep.subr.bf16.mxu0 0
        %3185 = vmatpush1.bf16.msra.mxu0 0
        %3186 = vmatprep.subr.bf16.mxu0 0
        %3187 = vmatpush1.bf16.msra.mxu0 0
        %3188 = vmatprep.subr.bf16.mxu0 0
        %3189 = vmatpush1.bf16.msra.mxu0 0
        %3190 = vmatprep.subr.bf16.mxu0 0
        %3191 = vmatpush1.bf16.msra.mxu0 0
        %3192 = vmatprep.subr.bf16.mxu0 0
        %3193 = vmatpush1.bf16.msra.mxu0 0
        %3194 = vmatprep.subr.bf16.mxu0 0
        %3195 = vmatpush1.bf16.msra.mxu0 0
        %3196 = vmatprep.subr.bf16.mxu0 0
        %3197 = vmatpush1.bf16.msra.mxu0 0
        %3198 = vmatprep.subr.bf16.mxu0 0
        %3199 = vmatpush1.bf16.msra.mxu0 0
        %3200 = vmatprep.mubr.bf16.mxu0 0
        %3201 = vmatmul.mubr.bf16.gmra.mrb[0].mxu0 %v2996
        %v3202 = vpop.f32.mrb[0].mxu0
        %v3203 = vadd.f32 0.0, %v3202
        %v3204 = vpop.f32.mrb[0].mxu0
        %v3205 = vpop.f32.mrb[0].mxu0
        %v3206 = vadd.f32 0.0, %v3205
        %v3207 = vpop.f32.mrb[0].mxu0
        %3208 = vdwg.mxu0
        %v3209 = vpack.c.bf16 %v3160, %v3160
        %v3210 = vpack.c.bf16 %v3164, %v3164
        %v3211 = vpack.c.bf16 %v3162, %v3162
        %v3212 = vpack.c.bf16 %v3166, %v3166
        %v3213 = vpack.c.bf16 %v3203, %v3203
        %v3214 = vpack.c.bf16 %v3206, %v3206
        %v3216 = vsel %vm587, %v3209, 0
        %v3219 = vsel %vm587, %v3211, 0
        %3221 = vmatprep.subr.bf16.mxu0 0
        %3222 = vmatpush1.bf16.xpose.msra.mxu0 %v3219
        %3223 = vmatprep.subr.bf16.mxu0 0
        %3224 = vmatpush1.bf16.xpose.msra.mxu0 0
        %3225 = vmatprep.subr.bf16.mxu0 0
        %3226 = vmatpush1.bf16.xpose.msra.mxu0 0
        %3227 = vmatprep.subr.bf16.mxu0 0
        %3228 = vmatpush1.bf16.xpose.msra.mxu0 0
        %3229 = vmatprep.subr.bf16.mxu0 0
        %3230 = vmatpush1.bf16.xpose.msra.mxu0 0
        %3231 = vmatprep.subr.bf16.mxu0 0
        %3232 = vmatpush1.bf16.xpose.msra.mxu0 0
        %3233 = vmatprep.subr.bf16.mxu0 0
        %3234 = vmatpush1.bf16.xpose.msra.mxu0 0
        %3235 = vmatprep.subr.bf16.mxu0 0
        %3236 = vmatpush1.bf16.xpose.msra.mxu0 0
        %3237 = vmatprep.subr.bf16.mxu0 0
        %3238 = vmatpush1.bf16.xpose.msra.mxu0 0
        %3239 = vmatprep.subr.bf16.mxu0 0
        %3240 = vmatpush1.bf16.xpose.msra.mxu0 0
        %3241 = vmatprep.subr.bf16.mxu0 0
        %3242 = vmatpush1.bf16.xpose.msra.mxu0 0
        %3243 = vmatprep.subr.bf16.mxu0 0
        %3244 = vmatpush1.bf16.xpose.msra.mxu0 0
        %3245 = vmatprep.subr.bf16.mxu0 0
        %3246 = vmatpush1.bf16.xpose.msra.mxu0 0
        %3247 = vmatprep.subr.bf16.mxu0 0
        %3248 = vmatpush1.bf16.xpose.msra.mxu0 0
        %3249 = vmatprep.subr.bf16.mxu0 0
        %3250 = vmatpush1.bf16.xpose.msra.mxu0 0
        %3251 = vmatprep.subr.bf16.mxu0 0
        %3252 = vmatpush1.bf16.xpose.msra.mxu0 0
        %3253 = vmatprep.mubr.bf16.mxu0 0
        %3254 = vmatmul.mubr.bf16.gmra.mrb[0].mxu0 %v3216
        %v3255 = vpop.f32.mrb[0].mxu0
        %v3256 = vadd.f32 0.0, %v3255
        %v3257 = vpop.f32.mrb[0].mxu0
        %v3258 = vpop.f32.mrb[0].mxu0
        %v3259 = vpop.f32.mrb[0].mxu0
        %3260 = vdwg.mxu0
        %v3262 = vsel %vm587, %v3210, 0
        %v3265 = vsel %vm587, %v3212, 0
        %3267 = vmatprep.subr.bf16.mxu0 0
        %3268 = vmatpush1.bf16.xpose.msra.mxu0 %v3265
        %3269 = vmatprep.subr.bf16.mxu0 0
        %3270 = vmatpush1.bf16.xpose.msra.mxu0 0
        %3271 = vmatprep.subr.bf16.mxu0 0
        %3272 = vmatpush1.bf16.xpose.msra.mxu0 0
        %3273 = vmatprep.subr.bf16.mxu0 0
        %3274 = vmatpush1.bf16.xpose.msra.mxu0 0
        %3275 = vmatprep.subr.bf16.mxu0 0
        %3276 = vmatpush1.bf16.xpose.msra.mxu0 0
        %3277 = vmatprep.subr.bf16.mxu0 0
        %3278 = vmatpush1.bf16.xpose.msra.mxu0 0
        %3279 = vmatprep.subr.bf16.mxu0 0
        %3280 = vmatpush1.bf16.xpose.msra.mxu0 0
        %3281 = vmatprep.subr.bf16.mxu0 0
        %3282 = vmatpush1.bf16.xpose.msra.mxu0 0
        %3283 = vmatprep.subr.bf16.mxu0 0
        %3284 = vmatpush1.bf16.xpose.msra.mxu0 0
        %3285 = vmatprep.subr.bf16.mxu0 0
        %3286 = vmatpush1.bf16.xpose.msra.mxu0 0
        %3287 = vmatprep.subr.bf16.mxu0 0
        %3288 = vmatpush1.bf16.xpose.msra.mxu0 0
        %3289 = vmatprep.subr.bf16.mxu0 0
        %3290 = vmatpush1.bf16.xpose.msra.mxu0 0
        %3291 = vmatprep.subr.bf16.mxu0 0
        %3292 = vmatpush1.bf16.xpose.msra.mxu0 0
        %3293 = vmatprep.subr.bf16.mxu0 0
        %3294 = vmatpush1.bf16.xpose.msra.mxu0 0
        %3295 = vmatprep.subr.bf16.mxu0 0
        %3296 = vmatpush1.bf16.xpose.msra.mxu0 0
        %3297 = vmatprep.subr.bf16.mxu0 0
        %3298 = vmatpush1.bf16.xpose.msra.mxu0 0
        %3299 = vmatprep.mubr.bf16.mxu0 0
        %3300 = vmatmul.mubr.bf16.gmra.mrb[0].mxu0 %v3262
        %v3301 = vpop.f32.mrb[0].mxu0
        %v3302 = vadd.f32 0.0, %v3301
        %v3303 = vpop.f32.mrb[0].mxu0
        %v3304 = vpop.f32.mrb[0].mxu0
        %v3305 = vpop.f32.mrb[0].mxu0
        %3306 = vdwg.mxu0
        %vm3307 = vcmask 64512
        %v3308 = vsel %vm3307, %v3256, -inf
        %3309 = vmax.xlane.f32.xlu0 %v3308
        %v3310 = vpop.xlane.xlu0 %3309
        %v3311 = vsel %vm3307, %v3302, -inf
        %3312 = vmax.xlane.f32.xlu0 %v3311
        %v3313 = vpop.xlane.xlu0 %3312
        %v3314 = vsub.f32 %v3256, %v3310
        %v3315 = vsub.f32 %v3302, %v3313
        %v3316 = vmul.f32 %v3314, 1.442695
        %v3317 = vpow.pop %v3316
        %v3318 = vmul.f32 %v3315, 1.442695
        %v3319 = vpow.pop %v3318
        %v3320 = vsel %vm3307, %v3317, 0.0
        %3321 = vadd.xlane.f32.xlu0 %v3320
        %v3322 = vpop.xlane.xlu0 %3321
        %v3323 = vsel %vm3307, %v3319, 0.0
        %3324 = vadd.xlane.f32.xlu0 %v3323
        %v3325 = vpop.xlane.xlu0 %3324
        %v3326 = vrcp.pop %v3322
        %v3327 = vmul.f32 %v3317, %v3326
        %v3328 = vrcp.pop %v3325
        %v3329 = vmul.f32 %v3319, %v3328
        %v3330 = vpack.c.bf16 %v3327, %v3327
        %v3331 = vpack.c.bf16 %v3329, %v3329
        %v3333 = vsel %vm3307, %v3330, 0
        %vm3335 = vcmask 1043456
        %v3337 = vsel %vm3335, %v3213, 0
        %3339 = vmatprep.subr.bf16.mxu0 0
        %3340 = vmatpush1.bf16.msra.mxu0 %v3337
        %3341 = vmatprep.subr.bf16.mxu0 0
        %3342 = vmatpush1.bf16.msra.mxu0 0
        %3343 = vmatprep.subr.bf16.mxu0 0
        %3344 = vmatpush1.bf16.msra.mxu0 0
        %3345 = vmatprep.subr.bf16.mxu0 0
        %3346 = vmatpush1.bf16.msra.mxu0 0
        %3347 = vmatprep.subr.bf16.mxu0 0
        %3348 = vmatpush1.bf16.msra.mxu0 0
        %3349 = vmatprep.subr.bf16.mxu0 0
        %3350 = vmatpush1.bf16.msra.mxu0 0
        %3351 = vmatprep.subr.bf16.mxu0 0
        %3352 = vmatpush1.bf16.msra.mxu0 0
        %3353 = vmatprep.subr.bf16.mxu0 0
        %3354 = vmatpush1.bf16.msra.mxu0 0
        %3355 = vmatprep.subr.bf16.mxu0 0
        %3356 = vmatpush1.bf16.msra.mxu0 0
        %3357 = vmatprep.subr.bf16.mxu0 0
        %3358 = vmatpush1.bf16.msra.mxu0 0
        %3359 = vmatprep.subr.bf16.mxu0 0
        %3360 = vmatpush1.bf16.msra.mxu0 0
        %3361 = vmatprep.subr.bf16.mxu0 0
        %3362 = vmatpush1.bf16.msra.mxu0 0
        %3363 = vmatprep.subr.bf16.mxu0 0
        %3364 = vmatpush1.bf16.msra.mxu0 0
        %3365 = vmatprep.subr.bf16.mxu0 0
        %3366 = vmatpush1.bf16.msra.mxu0 0
        %3367 = vmatprep.subr.bf16.mxu0 0
        %3368 = vmatpush1.bf16.msra.mxu0 0
        %3369 = vmatprep.subr.bf16.mxu0 0
        %3370 = vmatpush1.bf16.msra.mxu0 0
        %3371 = vmatprep.mubr.bf16.mxu0 0
        %3372 = vmatmul.mubr.bf16.gmra.mrb[0].mxu0 %v3333
        %v3373 = vpop.f32.mrb[0].mxu0
        %v3374 = vadd.f32 0.0, %v3373
        %v3375 = vpop.f32.mrb[0].mxu0
        %v3376 = vpop.f32.mrb[0].mxu0
        %v3377 = vpop.f32.mrb[0].mxu0
        %3378 = vdwg.mxu0
        %v3380 = vsel %vm3307, %v3331, 0
        %v3383 = vsel %vm3335, %v3214, 0
        %3385 = vmatprep.subr.bf16.mxu0 0
        %3386 = vmatpush1.bf16.msra.mxu0 %v3383
        %3387 = vmatprep.subr.bf16.mxu0 0
        %3388 = vmatpush1.bf16.msra.mxu0 0
        %3389 = vmatprep.subr.bf16.mxu0 0
        %3390 = vmatpush1.bf16.msra.mxu0 0
        %3391 = vmatprep.subr.bf16.mxu0 0
        %3392 = vmatpush1.bf16.msra.mxu0 0
        %3393 = vmatprep.subr.bf16.mxu0 0
        %3394 = vmatpush1.bf16.msra.mxu0 0
        %3395 = vmatprep.subr.bf16.mxu0 0
        %3396 = vmatpush1.bf16.msra.mxu0 0
        %3397 = vmatprep.subr.bf16.mxu0 0
        %3398 = vmatpush1.bf16.msra.mxu0 0
        %3399 = vmatprep.subr.bf16.mxu0 0
        %3400 = vmatpush1.bf16.msra.mxu0 0
        %3401 = vmatprep.subr.bf16.mxu0 0
        %3402 = vmatpush1.bf16.msra.mxu0 0
        %3403 = vmatprep.subr.bf16.mxu0 0
        %3404 = vmatpush1.bf16.msra.mxu0 0
        %3405 = vmatprep.subr.bf16.mxu0 0
        %3406 = vmatpush1.bf16.msra.mxu0 0
        %3407 = vmatprep.subr.bf16.mxu0 0
        %3408 = vmatpush1.bf16.msra.mxu0 0
        %3409 = vmatprep.subr.bf16.mxu0 0
        %3410 = vmatpush1.bf16.msra.mxu0 0
        %3411 = vmatprep.subr.bf16.mxu0 0
        %3412 = vmatpush1.bf16.msra.mxu0 0
        %3413 = vmatprep.subr.bf16.mxu0 0
        %3414 = vmatpush1.bf16.msra.mxu0 0
        %3415 = vmatprep.subr.bf16.mxu0 0
        %3416 = vmatpush1.bf16.msra.mxu0 0
        %3417 = vmatprep.mubr.bf16.mxu0 0
        %3418 = vmatmul.mubr.bf16.gmra.mrb[0].mxu0 %v3380
        %v3419 = vpop.f32.mrb[0].mxu0
        %v3420 = vadd.f32 0.0, %v3419
        %v3421 = vpop.f32.mrb[0].mxu0
        %v3422 = vpop.f32.mrb[0].mxu0
        %v3423 = vpop.f32.mrb[0].mxu0
        %3424 = vdwg.mxu0
        %3426 = vrot.lane.b32.xlu0 %v3209, 96
        %v3427 = vpop.permute.xlu0 %3426
        %3429 = vrot.lane.b32.xlu0 %v3211, 96
        %v3430 = vpop.permute.xlu0 %3429
        %v3432 = vsel %vm587, %v3427, 0
        %v3435 = vsel %vm587, %v3430, 0
        %3437 = vmatprep.subr.bf16.mxu0 0
        %3438 = vmatpush1.bf16.xpose.msra.mxu0 %v3435
        %3439 = vmatprep.subr.bf16.mxu0 0
        %3440 = vmatpush1.bf16.xpose.msra.mxu0 0
        %3441 = vmatprep.subr.bf16.mxu0 0
        %3442 = vmatpush1.bf16.xpose.msra.mxu0 0
        %3443 = vmatprep.subr.bf16.mxu0 0
        %3444 = vmatpush1.bf16.xpose.msra.mxu0 0
        %3445 = vmatprep.subr.bf16.mxu0 0
        %3446 = vmatpush1.bf16.xpose.msra.mxu0 0
        %3447 = vmatprep.subr.bf16.mxu0 0
        %3448 = vmatpush1.bf16.xpose.msra.mxu0 0
        %3449 = vmatprep.subr.bf16.mxu0 0
        %3450 = vmatpush1.bf16.xpose.msra.mxu0 0
        %3451 = vmatprep.subr.bf16.mxu0 0
        %3452 = vmatpush1.bf16.xpose.msra.mxu0 0
        %3453 = vmatprep.subr.bf16.mxu0 0
        %3454 = vmatpush1.bf16.xpose.msra.mxu0 0
        %3455 = vmatprep.subr.bf16.mxu0 0
        %3456 = vmatpush1.bf16.xpose.msra.mxu0 0
        %3457 = vmatprep.subr.bf16.mxu0 0
        %3458 = vmatpush1.bf16.xpose.msra.mxu0 0
        %3459 = vmatprep.subr.bf16.mxu0 0
        %3460 = vmatpush1.bf16.xpose.msra.mxu0 0
        %3461 = vmatprep.subr.bf16.mxu0 0
        %3462 = vmatpush1.bf16.xpose.msra.mxu0 0
        %3463 = vmatprep.subr.bf16.mxu0 0
        %3464 = vmatpush1.bf16.xpose.msra.mxu0 0
        %3465 = vmatprep.subr.bf16.mxu0 0
        %3466 = vmatpush1.bf16.xpose.msra.mxu0 0
        %3467 = vmatprep.subr.bf16.mxu0 0
        %3468 = vmatpush1.bf16.xpose.msra.mxu0 0
        %3469 = vmatprep.mubr.bf16.mxu0 0
        %3470 = vmatmul.mubr.bf16.gmra.mrb[0].mxu0 %v3432
        %v3471 = vpop.f32.mrb[0].mxu0
        %v3472 = vadd.f32 0.0, %v3471
        %v3473 = vpop.f32.mrb[0].mxu0
        %v3474 = vpop.f32.mrb[0].mxu0
        %v3475 = vpop.f32.mrb[0].mxu0
        %3476 = vdwg.mxu0
        %3478 = vrot.lane.b32.xlu0 %v3210, 96
        %v3479 = vpop.permute.xlu0 %3478
        %3481 = vrot.lane.b32.xlu0 %v3212, 96
        %v3482 = vpop.permute.xlu0 %3481
        %v3484 = vsel %vm587, %v3479, 0
        %v3487 = vsel %vm587, %v3482, 0
        %3489 = vmatprep.subr.bf16.mxu0 0
        %3490 = vmatpush1.bf16.xpose.msra.mxu0 %v3487
        %3491 = vmatprep.subr.bf16.mxu0 0
        %3492 = vmatpush1.bf16.xpose.msra.mxu0 0
        %3493 = vmatprep.subr.bf16.mxu0 0
        %3494 = vmatpush1.bf16.xpose.msra.mxu0 0
        %3495 = vmatprep.subr.bf16.mxu0 0
        %3496 = vmatpush1.bf16.xpose.msra.mxu0 0
        %3497 = vmatprep.subr.bf16.mxu0 0
        %3498 = vmatpush1.bf16.xpose.msra.mxu0 0
        %3499 = vmatprep.subr.bf16.mxu0 0
        %3500 = vmatpush1.bf16.xpose.msra.mxu0 0
        %3501 = vmatprep.subr.bf16.mxu0 0
        %3502 = vmatpush1.bf16.xpose.msra.mxu0 0
        %3503 = vmatprep.subr.bf16.mxu0 0
        %3504 = vmatpush1.bf16.xpose.msra.mxu0 0
        %3505 = vmatprep.subr.bf16.mxu0 0
        %3506 = vmatpush1.bf16.xpose.msra.mxu0 0
        %3507 = vmatprep.subr.bf16.mxu0 0
        %3508 = vmatpush1.bf16.xpose.msra.mxu0 0
        %3509 = vmatprep.subr.bf16.mxu0 0
        %3510 = vmatpush1.bf16.xpose.msra.mxu0 0
        %3511 = vmatprep.subr.bf16.mxu0 0
        %3512 = vmatpush1.bf16.xpose.msra.mxu0 0
        %3513 = vmatprep.subr.bf16.mxu0 0
        %3514 = vmatpush1.bf16.xpose.msra.mxu0 0
        %3515 = vmatprep.subr.bf16.mxu0 0
        %3516 = vmatpush1.bf16.xpose.msra.mxu0 0
        %3517 = vmatprep.subr.bf16.mxu0 0
        %3518 = vmatpush1.bf16.xpose.msra.mxu0 0
        %3519 = vmatprep.subr.bf16.mxu0 0
        %3520 = vmatpush1.bf16.xpose.msra.mxu0 0
        %3521 = vmatprep.mubr.bf16.mxu0 0
        %3522 = vmatmul.mubr.bf16.gmra.mrb[0].mxu0 %v3484
        %v3523 = vpop.f32.mrb[0].mxu0
        %v3524 = vadd.f32 0.0, %v3523
        %v3525 = vpop.f32.mrb[0].mxu0
        %v3526 = vpop.f32.mrb[0].mxu0
        %v3527 = vpop.f32.mrb[0].mxu0
        %3528 = vdwg.mxu0
        %v3529 = vsel %vm3307, %v3472, -inf
        %3530 = vmax.xlane.f32.xlu0 %v3529
        %v3531 = vpop.xlane.xlu0 %3530
        %v3532 = vsel %vm3307, %v3524, -inf
        %3533 = vmax.xlane.f32.xlu0 %v3532
        %v3534 = vpop.xlane.xlu0 %3533
        %v3535 = vsub.f32 %v3472, %v3531
        %v3536 = vsub.f32 %v3524, %v3534
        %v3537 = vmul.f32 %v3535, 1.442695
        %v3538 = vpow.pop %v3537
        %v3539 = vmul.f32 %v3536, 1.442695
        %v3540 = vpow.pop %v3539
        %v3541 = vsel %vm3307, %v3538, 0.0
        %3542 = vadd.xlane.f32.xlu0 %v3541
        %v3543 = vpop.xlane.xlu0 %3542
        %v3544 = vsel %vm3307, %v3540, 0.0
        %3545 = vadd.xlane.f32.xlu0 %v3544
        %v3546 = vpop.xlane.xlu0 %3545
        %v3547 = vrcp.pop %v3543
        %v3548 = vmul.f32 %v3538, %v3547
        %v3549 = vrcp.pop %v3546
        %v3550 = vmul.f32 %v3540, %v3549
        %v3551 = vpack.c.bf16 %v3548, %v3548
        %v3552 = vpack.c.bf16 %v3550, %v3550
        %3554 = vrot.lane.b32.xlu0 %v3213, 96
        %v3555 = vpop.permute.xlu0 %3554
        %v3557 = vsel %vm3307, %v3551, 0
        %v3560 = vsel %vm3335, %v3555, 0
        %3562 = vmatprep.subr.bf16.mxu0 0
        %3563 = vmatpush1.bf16.msra.mxu0 %v3560
        %3564 = vmatprep.subr.bf16.mxu0 0
        %3565 = vmatpush1.bf16.msra.mxu0 0
        %3566 = vmatprep.subr.bf16.mxu0 0
        %3567 = vmatpush1.bf16.msra.mxu0 0
        %3568 = vmatprep.subr.bf16.mxu0 0
        %3569 = vmatpush1.bf16.msra.mxu0 0
        %3570 = vmatprep.subr.bf16.mxu0 0
        %3571 = vmatpush1.bf16.msra.mxu0 0
        %3572 = vmatprep.subr.bf16.mxu0 0
        %3573 = vmatpush1.bf16.msra.mxu0 0
        %3574 = vmatprep.subr.bf16.mxu0 0
        %3575 = vmatpush1.bf16.msra.mxu0 0
        %3576 = vmatprep.subr.bf16.mxu0 0
        %3577 = vmatpush1.bf16.msra.mxu0 0
        %3578 = vmatprep.subr.bf16.mxu0 0
        %3579 = vmatpush1.bf16.msra.mxu0 0
        %3580 = vmatprep.subr.bf16.mxu0 0
        %3581 = vmatpush1.bf16.msra.mxu0 0
        %3582 = vmatprep.subr.bf16.mxu0 0
        %3583 = vmatpush1.bf16.msra.mxu0 0
        %3584 = vmatprep.subr.bf16.mxu0 0
        %3585 = vmatpush1.bf16.msra.mxu0 0
        %3586 = vmatprep.subr.bf16.mxu0 0
        %3587 = vmatpush1.bf16.msra.mxu0 0
        %3588 = vmatprep.subr.bf16.mxu0 0
        %3589 = vmatpush1.bf16.msra.mxu0 0
        %3590 = vmatprep.subr.bf16.mxu0 0
        %3591 = vmatpush1.bf16.msra.mxu0 0
        %3592 = vmatprep.subr.bf16.mxu0 0
        %3593 = vmatpush1.bf16.msra.mxu0 0
        %3594 = vmatprep.mubr.bf16.mxu0 0
        %3595 = vmatmul.mubr.bf16.gmra.mrb[0].mxu0 %v3557
        %v3596 = vpop.f32.mrb[0].mxu0
        %v3597 = vadd.f32 0.0, %v3596
        %v3598 = vpop.f32.mrb[0].mxu0
        %v3599 = vpop.f32.mrb[0].mxu0
        %v3600 = vpop.f32.mrb[0].mxu0
        %3601 = vdwg.mxu0
        %3603 = vrot.lane.b32.xlu0 %v3214, 96
        %v3604 = vpop.permute.xlu0 %3603
        %v3606 = vsel %vm3307, %v3552, 0
        %v3609 = vsel %vm3335, %v3604, 0
        %3611 = vmatprep.subr.bf16.mxu0 0
        %3612 = vmatpush1.bf16.msra.mxu0 %v3609
        %3613 = vmatprep.subr.bf16.mxu0 0
        %3614 = vmatpush1.bf16.msra.mxu0 0
        %3615 = vmatprep.subr.bf16.mxu0 0
        %3616 = vmatpush1.bf16.msra.mxu0 0
        %3617 = vmatprep.subr.bf16.mxu0 0
        %3618 = vmatpush1.bf16.msra.mxu0 0
        %3619 = vmatprep.subr.bf16.mxu0 0
        %3620 = vmatpush1.bf16.msra.mxu0 0
        %3621 = vmatprep.subr.bf16.mxu0 0
        %3622 = vmatpush1.bf16.msra.mxu0 0
        %3623 = vmatprep.subr.bf16.mxu0 0
        %3624 = vmatpush1.bf16.msra.mxu0 0
        %3625 = vmatprep.subr.bf16.mxu0 0
        %3626 = vmatpush1.bf16.msra.mxu0 0
        %3627 = vmatprep.subr.bf16.mxu0 0
        %3628 = vmatpush1.bf16.msra.mxu0 0
        %3629 = vmatprep.subr.bf16.mxu0 0
        %3630 = vmatpush1.bf16.msra.mxu0 0
        %3631 = vmatprep.subr.bf16.mxu0 0
        %3632 = vmatpush1.bf16.msra.mxu0 0
        %3633 = vmatprep.subr.bf16.mxu0 0
        %3634 = vmatpush1.bf16.msra.mxu0 0
        %3635 = vmatprep.subr.bf16.mxu0 0
        %3636 = vmatpush1.bf16.msra.mxu0 0
        %3637 = vmatprep.subr.bf16.mxu0 0
        %3638 = vmatpush1.bf16.msra.mxu0 0
        %3639 = vmatprep.subr.bf16.mxu0 0
        %3640 = vmatpush1.bf16.msra.mxu0 0
        %3641 = vmatprep.subr.bf16.mxu0 0
        %3642 = vmatpush1.bf16.msra.mxu0 0
        %3643 = vmatprep.mubr.bf16.mxu0 0
        %3644 = vmatmul.mubr.bf16.gmra.mrb[0].mxu0 %v3606
        %v3645 = vpop.f32.mrb[0].mxu0
        %v3646 = vadd.f32 0.0, %v3645
        %v3647 = vpop.f32.mrb[0].mxu0
        %v3648 = vpop.f32.mrb[0].mxu0
        %v3649 = vpop.f32.mrb[0].mxu0
        %3650 = vdwg.mxu0
        %3651 = vrot.lane.b32.xlu0 %v3209, 64
        %v3652 = vpop.permute.xlu0 %3651
        %3653 = vrot.lane.b32.xlu0 %v3211, 64
        %v3654 = vpop.permute.xlu0 %3653
        %v3656 = vsel %vm587, %v3652, 0
        %v3659 = vsel %vm587, %v3654, 0
        %3661 = vmatprep.subr.bf16.mxu0 0
        %3662 = vmatpush1.bf16.xpose.msra.mxu0 %v3659
        %3663 = vmatprep.subr.bf16.mxu0 0
        %3664 = vmatpush1.bf16.xpose.msra.mxu0 0
        %3665 = vmatprep.subr.bf16.mxu0 0
        %3666 = vmatpush1.bf16.xpose.msra.mxu0 0
        %3667 = vmatprep.subr.bf16.mxu0 0
        %3668 = vmatpush1.bf16.xpose.msra.mxu0 0
        %3669 = vmatprep.subr.bf16.mxu0 0
        %3670 = vmatpush1.bf16.xpose.msra.mxu0 0
        %3671 = vmatprep.subr.bf16.mxu0 0
        %3672 = vmatpush1.bf16.xpose.msra.mxu0 0
        %3673 = vmatprep.subr.bf16.mxu0 0
        %3674 = vmatpush1.bf16.xpose.msra.mxu0 0
        %3675 = vmatprep.subr.bf16.mxu0 0
        %3676 = vmatpush1.bf16.xpose.msra.mxu0 0
        %3677 = vmatprep.subr.bf16.mxu0 0
        %3678 = vmatpush1.bf16.xpose.msra.mxu0 0
        %3679 = vmatprep.subr.bf16.mxu0 0
        %3680 = vmatpush1.bf16.xpose.msra.mxu0 0
        %3681 = vmatprep.subr.bf16.mxu0 0
        %3682 = vmatpush1.bf16.xpose.msra.mxu0 0
        %3683 = vmatprep.subr.bf16.mxu0 0
        %3684 = vmatpush1.bf16.xpose.msra.mxu0 0
        %3685 = vmatprep.subr.bf16.mxu0 0
        %3686 = vmatpush1.bf16.xpose.msra.mxu0 0
        %3687 = vmatprep.subr.bf16.mxu0 0
        %3688 = vmatpush1.bf16.xpose.msra.mxu0 0
        %3689 = vmatprep.subr.bf16.mxu0 0
        %3690 = vmatpush1.bf16.xpose.msra.mxu0 0
        %3691 = vmatprep.subr.bf16.mxu0 0
        %3692 = vmatpush1.bf16.xpose.msra.mxu0 0
        %3693 = vmatprep.mubr.bf16.mxu0 0
        %3694 = vmatmul.mubr.bf16.gmra.mrb[0].mxu0 %v3656
        %v3695 = vpop.f32.mrb[0].mxu0
        %v3696 = vadd.f32 0.0, %v3695
        %v3697 = vpop.f32.mrb[0].mxu0
        %v3698 = vpop.f32.mrb[0].mxu0
        %v3699 = vpop.f32.mrb[0].mxu0
        %3700 = vdwg.mxu0
        %3701 = vrot.lane.b32.xlu0 %v3210, 64
        %v3702 = vpop.permute.xlu0 %3701
        %3703 = vrot.lane.b32.xlu0 %v3212, 64
        %v3704 = vpop.permute.xlu0 %3703
        %v3706 = vsel %vm587, %v3702, 0
        %v3709 = vsel %vm587, %v3704, 0
        %3711 = vmatprep.subr.bf16.mxu0 0
        %3712 = vmatpush1.bf16.xpose.msra.mxu0 %v3709
        %3713 = vmatprep.subr.bf16.mxu0 0
        %3714 = vmatpush1.bf16.xpose.msra.mxu0 0
        %3715 = vmatprep.subr.bf16.mxu0 0
        %3716 = vmatpush1.bf16.xpose.msra.mxu0 0
        %3717 = vmatprep.subr.bf16.mxu0 0
        %3718 = vmatpush1.bf16.xpose.msra.mxu0 0
        %3719 = vmatprep.subr.bf16.mxu0 0
        %3720 = vmatpush1.bf16.xpose.msra.mxu0 0
        %3721 = vmatprep.subr.bf16.mxu0 0
        %3722 = vmatpush1.bf16.xpose.msra.mxu0 0
        %3723 = vmatprep.subr.bf16.mxu0 0
        %3724 = vmatpush1.bf16.xpose.msra.mxu0 0
        %3725 = vmatprep.subr.bf16.mxu0 0
        %3726 = vmatpush1.bf16.xpose.msra.mxu0 0
        %3727 = vmatprep.subr.bf16.mxu0 0
        %3728 = vmatpush1.bf16.xpose.msra.mxu0 0
        %3729 = vmatprep.subr.bf16.mxu0 0
        %3730 = vmatpush1.bf16.xpose.msra.mxu0 0
        %3731 = vmatprep.subr.bf16.mxu0 0
        %3732 = vmatpush1.bf16.xpose.msra.mxu0 0
        %3733 = vmatprep.subr.bf16.mxu0 0
        %3734 = vmatpush1.bf16.xpose.msra.mxu0 0
        %3735 = vmatprep.subr.bf16.mxu0 0
        %3736 = vmatpush1.bf16.xpose.msra.mxu0 0
        %3737 = vmatprep.subr.bf16.mxu0 0
        %3738 = vmatpush1.bf16.xpose.msra.mxu0 0
        %3739 = vmatprep.subr.bf16.mxu0 0
        %3740 = vmatpush1.bf16.xpose.msra.mxu0 0
        %3741 = vmatprep.subr.bf16.mxu0 0
        %3742 = vmatpush1.bf16.xpose.msra.mxu0 0
        %3743 = vmatprep.mubr.bf16.mxu0 0
        %3744 = vmatmul.mubr.bf16.gmra.mrb[0].mxu0 %v3706
        %v3745 = vpop.f32.mrb[0].mxu0
        %v3746 = vadd.f32 0.0, %v3745
        %v3747 = vpop.f32.mrb[0].mxu0
        %v3748 = vpop.f32.mrb[0].mxu0
        %v3749 = vpop.f32.mrb[0].mxu0
        %3750 = vdwg.mxu0
        %v3751 = vsel %vm3307, %v3696, -inf
        %3752 = vmax.xlane.f32.xlu0 %v3751
        %v3753 = vpop.xlane.xlu0 %3752
        %v3754 = vsel %vm3307, %v3746, -inf
        %3755 = vmax.xlane.f32.xlu0 %v3754
        %v3756 = vpop.xlane.xlu0 %3755
        %v3757 = vsub.f32 %v3696, %v3753
        %v3758 = vsub.f32 %v3746, %v3756
        %v3759 = vmul.f32 %v3757, 1.442695
        %v3760 = vpow.pop %v3759
        %v3761 = vmul.f32 %v3758, 1.442695
        %v3762 = vpow.pop %v3761
        %v3763 = vsel %vm3307, %v3760, 0.0
        %3764 = vadd.xlane.f32.xlu0 %v3763
        %v3765 = vpop.xlane.xlu0 %3764
        %v3766 = vsel %vm3307, %v3762, 0.0
        %3767 = vadd.xlane.f32.xlu0 %v3766
        %v3768 = vpop.xlane.xlu0 %3767
        %v3769 = vrcp.pop %v3765
        %v3770 = vmul.f32 %v3760, %v3769
        %v3771 = vrcp.pop %v3768
        %v3772 = vmul.f32 %v3762, %v3771
        %v3773 = vpack.c.bf16 %v3770, %v3770
        %v3774 = vpack.c.bf16 %v3772, %v3772
        %3775 = vrot.lane.b32.xlu0 %v3213, 64
        %v3776 = vpop.permute.xlu0 %3775
        %v3778 = vsel %vm3307, %v3773, 0
        %v3781 = vsel %vm3335, %v3776, 0
        %3783 = vmatprep.subr.bf16.mxu0 0
        %3784 = vmatpush1.bf16.msra.mxu0 %v3781
        %3785 = vmatprep.subr.bf16.mxu0 0
        %3786 = vmatpush1.bf16.msra.mxu0 0
        %3787 = vmatprep.subr.bf16.mxu0 0
        %3788 = vmatpush1.bf16.msra.mxu0 0
        %3789 = vmatprep.subr.bf16.mxu0 0
        %3790 = vmatpush1.bf16.msra.mxu0 0
        %3791 = vmatprep.subr.bf16.mxu0 0
        %3792 = vmatpush1.bf16.msra.mxu0 0
        %3793 = vmatprep.subr.bf16.mxu0 0
        %3794 = vmatpush1.bf16.msra.mxu0 0
        %3795 = vmatprep.subr.bf16.mxu0 0
        %3796 = vmatpush1.bf16.msra.mxu0 0
        %3797 = vmatprep.subr.bf16.mxu0 0
        %3798 = vmatpush1.bf16.msra.mxu0 0
        %3799 = vmatprep.subr.bf16.mxu0 0
        %3800 = vmatpush1.bf16.msra.mxu0 0
        %3801 = vmatprep.subr.bf16.mxu0 0
        %3802 = vmatpush1.bf16.msra.mxu0 0
        %3803 = vmatprep.subr.bf16.mxu0 0
        %3804 = vmatpush1.bf16.msra.mxu0 0
        %3805 = vmatprep.subr.bf16.mxu0 0
        %3806 = vmatpush1.bf16.msra.mxu0 0
        %3807 = vmatprep.subr.bf16.mxu0 0
        %3808 = vmatpush1.bf16.msra.mxu0 0
        %3809 = vmatprep.subr.bf16.mxu0 0
        %3810 = vmatpush1.bf16.msra.mxu0 0
        %3811 = vmatprep.subr.bf16.mxu0 0
        %3812 = vmatpush1.bf16.msra.mxu0 0
        %3813 = vmatprep.subr.bf16.mxu0 0
        %3814 = vmatpush1.bf16.msra.mxu0 0
        %3815 = vmatprep.mubr.bf16.mxu0 0
        %3816 = vmatmul.mubr.bf16.gmra.mrb[0].mxu0 %v3778
        %v3817 = vpop.f32.mrb[0].mxu0
        %v3818 = vadd.f32 0.0, %v3817
        %v3819 = vpop.f32.mrb[0].mxu0
        %v3820 = vpop.f32.mrb[0].mxu0
        %v3821 = vpop.f32.mrb[0].mxu0
        %3822 = vdwg.mxu0
        %3823 = vrot.lane.b32.xlu0 %v3214, 64
        %v3824 = vpop.permute.xlu0 %3823
        %v3826 = vsel %vm3307, %v3774, 0
        %v3829 = vsel %vm3335, %v3824, 0
        %3831 = vmatprep.subr.bf16.mxu0 0
        %3832 = vmatpush1.bf16.msra.mxu0 %v3829
        %3833 = vmatprep.subr.bf16.mxu0 0
        %3834 = vmatpush1.bf16.msra.mxu0 0
        %3835 = vmatprep.subr.bf16.mxu0 0
        %3836 = vmatpush1.bf16.msra.mxu0 0
        %3837 = vmatprep.subr.bf16.mxu0 0
        %3838 = vmatpush1.bf16.msra.mxu0 0
        %3839 = vmatprep.subr.bf16.mxu0 0
        %3840 = vmatpush1.bf16.msra.mxu0 0
        %3841 = vmatprep.subr.bf16.mxu0 0
        %3842 = vmatpush1.bf16.msra.mxu0 0
        %3843 = vmatprep.subr.bf16.mxu0 0
        %3844 = vmatpush1.bf16.msra.mxu0 0
        %3845 = vmatprep.subr.bf16.mxu0 0
        %3846 = vmatpush1.bf16.msra.mxu0 0
        %3847 = vmatprep.subr.bf16.mxu0 0
        %3848 = vmatpush1.bf16.msra.mxu0 0
        %3849 = vmatprep.subr.bf16.mxu0 0
        %3850 = vmatpush1.bf16.msra.mxu0 0
        %3851 = vmatprep.subr.bf16.mxu0 0
        %3852 = vmatpush1.bf16.msra.mxu0 0
        %3853 = vmatprep.subr.bf16.mxu0 0
        %3854 = vmatpush1.bf16.msra.mxu0 0
        %3855 = vmatprep.subr.bf16.mxu0 0
        %3856 = vmatpush1.bf16.msra.mxu0 0
        %3857 = vmatprep.subr.bf16.mxu0 0
        %3858 = vmatpush1.bf16.msra.mxu0 0
        %3859 = vmatprep.subr.bf16.mxu0 0
        %3860 = vmatpush1.bf16.msra.mxu0 0
        %3861 = vmatprep.subr.bf16.mxu0 0
        %3862 = vmatpush1.bf16.msra.mxu0 0
        %3863 = vmatprep.mubr.bf16.mxu0 0
        %3864 = vmatmul.mubr.bf16.gmra.mrb[0].mxu0 %v3826
        %v3865 = vpop.f32.mrb[0].mxu0
        %v3866 = vadd.f32 0.0, %v3865
        %v3867 = vpop.f32.mrb[0].mxu0
        %v3868 = vpop.f32.mrb[0].mxu0
        %v3869 = vpop.f32.mrb[0].mxu0
        %3870 = vdwg.mxu0
        %3871 = vrot.lane.b32.xlu0 %v3209, 32
        %v3872 = vpop.permute.xlu0 %3871
        %3873 = vrot.lane.b32.xlu0 %v3211, 32
        %v3874 = vpop.permute.xlu0 %3873
        %v3876 = vsel %vm587, %v3872, 0
        %v3879 = vsel %vm587, %v3874, 0
        %3881 = vmatprep.subr.bf16.mxu0 0
        %3882 = vmatpush1.bf16.xpose.msra.mxu0 %v3879
        %3883 = vmatprep.subr.bf16.mxu0 0
        %3884 = vmatpush1.bf16.xpose.msra.mxu0 0
        %3885 = vmatprep.subr.bf16.mxu0 0
        %3886 = vmatpush1.bf16.xpose.msra.mxu0 0
        %3887 = vmatprep.subr.bf16.mxu0 0
        %3888 = vmatpush1.bf16.xpose.msra.mxu0 0
        %3889 = vmatprep.subr.bf16.mxu0 0
        %3890 = vmatpush1.bf16.xpose.msra.mxu0 0
        %3891 = vmatprep.subr.bf16.mxu0 0
        %3892 = vmatpush1.bf16.xpose.msra.mxu0 0
        %3893 = vmatprep.subr.bf16.mxu0 0
        %3894 = vmatpush1.bf16.xpose.msra.mxu0 0
        %3895 = vmatprep.subr.bf16.mxu0 0
        %3896 = vmatpush1.bf16.xpose.msra.mxu0 0
        %3897 = vmatprep.subr.bf16.mxu0 0
        %3898 = vmatpush1.bf16.xpose.msra.mxu0 0
        %3899 = vmatprep.subr.bf16.mxu0 0
        %3900 = vmatpush1.bf16.xpose.msra.mxu0 0
        %3901 = vmatprep.subr.bf16.mxu0 0
        %3902 = vmatpush1.bf16.xpose.msra.mxu0 0
        %3903 = vmatprep.subr.bf16.mxu0 0
        %3904 = vmatpush1.bf16.xpose.msra.mxu0 0
        %3905 = vmatprep.subr.bf16.mxu0 0
        %3906 = vmatpush1.bf16.xpose.msra.mxu0 0
        %3907 = vmatprep.subr.bf16.mxu0 0
        %3908 = vmatpush1.bf16.xpose.msra.mxu0 0
        %3909 = vmatprep.subr.bf16.mxu0 0
        %3910 = vmatpush1.bf16.xpose.msra.mxu0 0
        %3911 = vmatprep.subr.bf16.mxu0 0
        %3912 = vmatpush1.bf16.xpose.msra.mxu0 0
        %3913 = vmatprep.mubr.bf16.mxu0 0
        %3914 = vmatmul.mubr.bf16.gmra.mrb[0].mxu0 %v3876
        %v3915 = vpop.f32.mrb[0].mxu0
        %v3916 = vadd.f32 0.0, %v3915
        %v3917 = vpop.f32.mrb[0].mxu0
        %v3918 = vpop.f32.mrb[0].mxu0
        %v3919 = vpop.f32.mrb[0].mxu0
        %3920 = vdwg.mxu0
        %3921 = vrot.lane.b32.xlu0 %v3210, 32
        %v3922 = vpop.permute.xlu0 %3921
        %3923 = vrot.lane.b32.xlu0 %v3212, 32
        %v3924 = vpop.permute.xlu0 %3923
        %v3926 = vsel %vm587, %v3922, 0
        %v3929 = vsel %vm587, %v3924, 0
        %3931 = vmatprep.subr.bf16.mxu0 0
        %3932 = vmatpush1.bf16.xpose.msra.mxu0 %v3929
        %3933 = vmatprep.subr.bf16.mxu0 0
        %3934 = vmatpush1.bf16.xpose.msra.mxu0 0
        %3935 = vmatprep.subr.bf16.mxu0 0
        %3936 = vmatpush1.bf16.xpose.msra.mxu0 0
        %3937 = vmatprep.subr.bf16.mxu0 0
        %3938 = vmatpush1.bf16.xpose.msra.mxu0 0
        %3939 = vmatprep.subr.bf16.mxu0 0
        %3940 = vmatpush1.bf16.xpose.msra.mxu0 0
        %3941 = vmatprep.subr.bf16.mxu0 0
        %3942 = vmatpush1.bf16.xpose.msra.mxu0 0
        %3943 = vmatprep.subr.bf16.mxu0 0
        %3944 = vmatpush1.bf16.xpose.msra.mxu0 0
        %3945 = vmatprep.subr.bf16.mxu0 0
        %3946 = vmatpush1.bf16.xpose.msra.mxu0 0
        %3947 = vmatprep.subr.bf16.mxu0 0
        %3948 = vmatpush1.bf16.xpose.msra.mxu0 0
        %3949 = vmatprep.subr.bf16.mxu0 0
        %3950 = vmatpush1.bf16.xpose.msra.mxu0 0
        %3951 = vmatprep.subr.bf16.mxu0 0
        %3952 = vmatpush1.bf16.xpose.msra.mxu0 0
        %3953 = vmatprep.subr.bf16.mxu0 0
        %3954 = vmatpush1.bf16.xpose.msra.mxu0 0
        %3955 = vmatprep.subr.bf16.mxu0 0
        %3956 = vmatpush1.bf16.xpose.msra.mxu0 0
        %3957 = vmatprep.subr.bf16.mxu0 0
        %3958 = vmatpush1.bf16.xpose.msra.mxu0 0
        %3959 = vmatprep.subr.bf16.mxu0 0
        %3960 = vmatpush1.bf16.xpose.msra.mxu0 0
        %3961 = vmatprep.subr.bf16.mxu0 0
        %3962 = vmatpush1.bf16.xpose.msra.mxu0 0
        %3963 = vmatprep.mubr.bf16.mxu0 0
        %3964 = vmatmul.mubr.bf16.gmra.mrb[0].mxu0 %v3926
        %v3965 = vpop.f32.mrb[0].mxu0
        %v3966 = vadd.f32 0.0, %v3965
        %v3967 = vpop.f32.mrb[0].mxu0
        %v3968 = vpop.f32.mrb[0].mxu0
        %v3969 = vpop.f32.mrb[0].mxu0
        %3970 = vdwg.mxu0
        %v3971 = vsel %vm3307, %v3916, -inf
        %3972 = vmax.xlane.f32.xlu0 %v3971
        %v3973 = vpop.xlane.xlu0 %3972
        %v3974 = vsel %vm3307, %v3966, -inf
        %3975 = vmax.xlane.f32.xlu0 %v3974
        %v3976 = vpop.xlane.xlu0 %3975
        %v3977 = vsub.f32 %v3916, %v3973
        %v3978 = vsub.f32 %v3966, %v3976
        %v3979 = vmul.f32 %v3977, 1.442695
        %v3980 = vpow.pop %v3979
        %v3981 = vmul.f32 %v3978, 1.442695
        %v3982 = vpow.pop %v3981
        %v3983 = vsel %vm3307, %v3980, 0.0
        %3984 = vadd.xlane.f32.xlu0 %v3983
        %v3985 = vpop.xlane.xlu0 %3984
        %v3986 = vsel %vm3307, %v3982, 0.0
        %3987 = vadd.xlane.f32.xlu0 %v3986
        %v3988 = vpop.xlane.xlu0 %3987
        %v3989 = vrcp.pop %v3985
        %v3990 = vmul.f32 %v3980, %v3989
        %v3991 = vrcp.pop %v3988
        %v3992 = vmul.f32 %v3982, %v3991
        %v3993 = vpack.c.bf16 %v3990, %v3990
        %v3994 = vpack.c.bf16 %v3992, %v3992
        %3995 = vrot.lane.b32.xlu0 %v3213, 32
        %v3996 = vpop.permute.xlu0 %3995
        %v3998 = vsel %vm3307, %v3993, 0
        %v4001 = vsel %vm3335, %v3996, 0
        %4003 = vmatprep.subr.bf16.mxu0 0
        %4004 = vmatpush1.bf16.msra.mxu0 %v4001
        %4005 = vmatprep.subr.bf16.mxu0 0
        %4006 = vmatpush1.bf16.msra.mxu0 0
        %4007 = vmatprep.subr.bf16.mxu0 0
        %4008 = vmatpush1.bf16.msra.mxu0 0
        %4009 = vmatprep.subr.bf16.mxu0 0
        %4010 = vmatpush1.bf16.msra.mxu0 0
        %4011 = vmatprep.subr.bf16.mxu0 0
        %4012 = vmatpush1.bf16.msra.mxu0 0
        %4013 = vmatprep.subr.bf16.mxu0 0
        %4014 = vmatpush1.bf16.msra.mxu0 0
        %4015 = vmatprep.subr.bf16.mxu0 0
        %4016 = vmatpush1.bf16.msra.mxu0 0
        %4017 = vmatprep.subr.bf16.mxu0 0
        %4018 = vmatpush1.bf16.msra.mxu0 0
        %4019 = vmatprep.subr.bf16.mxu0 0
        %4020 = vmatpush1.bf16.msra.mxu0 0
        %4021 = vmatprep.subr.bf16.mxu0 0
        %4022 = vmatpush1.bf16.msra.mxu0 0
        %4023 = vmatprep.subr.bf16.mxu0 0
        %4024 = vmatpush1.bf16.msra.mxu0 0
        %4025 = vmatprep.subr.bf16.mxu0 0
        %4026 = vmatpush1.bf16.msra.mxu0 0
        %4027 = vmatprep.subr.bf16.mxu0 0
        %4028 = vmatpush1.bf16.msra.mxu0 0
        %4029 = vmatprep.subr.bf16.mxu0 0
        %4030 = vmatpush1.bf16.msra.mxu0 0
        %4031 = vmatprep.subr.bf16.mxu0 0
        %4032 = vmatpush1.bf16.msra.mxu0 0
        %4033 = vmatprep.subr.bf16.mxu0 0
        %4034 = vmatpush1.bf16.msra.mxu0 0
        %4035 = vmatprep.mubr.bf16.mxu0 0
        %4036 = vmatmul.mubr.bf16.gmra.mrb[0].mxu0 %v3998
        %v4037 = vpop.f32.mrb[0].mxu0
        %v4038 = vadd.f32 0.0, %v4037
        %v4039 = vpop.f32.mrb[0].mxu0
        %v4040 = vpop.f32.mrb[0].mxu0
        %v4041 = vpop.f32.mrb[0].mxu0
        %4042 = vdwg.mxu0
        %4043 = vrot.lane.b32.xlu0 %v3214, 32
        %v4044 = vpop.permute.xlu0 %4043
        %v4046 = vsel %vm3307, %v3994, 0
        %v4049 = vsel %vm3335, %v4044, 0
        %4051 = vmatprep.subr.bf16.mxu0 0
        %4052 = vmatpush1.bf16.msra.mxu0 %v4049
        %4053 = vmatprep.subr.bf16.mxu0 0
        %4054 = vmatpush1.bf16.msra.mxu0 0
        %4055 = vmatprep.subr.bf16.mxu0 0
        %4056 = vmatpush1.bf16.msra.mxu0 0
        %4057 = vmatprep.subr.bf16.mxu0 0
        %4058 = vmatpush1.bf16.msra.mxu0 0
        %4059 = vmatprep.subr.bf16.mxu0 0
        %4060 = vmatpush1.bf16.msra.mxu0 0
        %4061 = vmatprep.subr.bf16.mxu0 0
        %4062 = vmatpush1.bf16.msra.mxu0 0
        %4063 = vmatprep.subr.bf16.mxu0 0
        %4064 = vmatpush1.bf16.msra.mxu0 0
        %4065 = vmatprep.subr.bf16.mxu0 0
        %4066 = vmatpush1.bf16.msra.mxu0 0
        %4067 = vmatprep.subr.bf16.mxu0 0
        %4068 = vmatpush1.bf16.msra.mxu0 0
        %4069 = vmatprep.subr.bf16.mxu0 0
        %4070 = vmatpush1.bf16.msra.mxu0 0
        %4071 = vmatprep.subr.bf16.mxu0 0
        %4072 = vmatpush1.bf16.msra.mxu0 0
        %4073 = vmatprep.subr.bf16.mxu0 0
        %4074 = vmatpush1.bf16.msra.mxu0 0
        %4075 = vmatprep.subr.bf16.mxu0 0
        %4076 = vmatpush1.bf16.msra.mxu0 0
        %4077 = vmatprep.subr.bf16.mxu0 0
        %4078 = vmatpush1.bf16.msra.mxu0 0
        %4079 = vmatprep.subr.bf16.mxu0 0
        %4080 = vmatpush1.bf16.msra.mxu0 0
        %4081 = vmatprep.subr.bf16.mxu0 0
        %4082 = vmatpush1.bf16.msra.mxu0 0
        %4083 = vmatprep.mubr.bf16.mxu0 0
        %4084 = vmatmul.mubr.bf16.gmra.mrb[0].mxu0 %v4046
        %v4085 = vpop.f32.mrb[0].mxu0
        %v4086 = vadd.f32 0.0, %v4085
        %v4087 = vpop.f32.mrb[0].mxu0
        %v4088 = vpop.f32.mrb[0].mxu0
        %v4089 = vpop.f32.mrb[0].mxu0
        %4090 = vdwg.mxu0
        %4093 = vrot.lane.b32.xlu0 %v3597, 32
        %v4094 = vpop.permute.xlu0 %4093
        %4095 = vrot.lane.b32.xlu0 %v3646, 32
        %v4096 = vpop.permute.xlu0 %4095
        %4101 = vrot.lane.b32.xlu0 %v3818, 64
        %v4102 = vpop.permute.xlu0 %4101
        %4103 = vrot.lane.b32.xlu0 %v3866, 64
        %v4104 = vpop.permute.xlu0 %4103
        %4109 = vrot.lane.b32.xlu0 %v4038, 96
        %v4110 = vpop.permute.xlu0 %4109
        %4111 = vrot.lane.b32.xlu0 %v4086, 96
        %v4112 = vpop.permute.xlu0 %4111
        %v4115 = vsel %vm587, %v3374, %v4094
        %v4116 = vsel %vm587, %v3420, %v4096
        %v4117 = vsel %vm1601, %v4115, %v4102
        %v4118 = vsel %vm1601, %v4116, %v4104
        %v4119 = vsel %vm1606, %v4117, %v4110
        %v4120 = vsel %vm1606, %v4118, %v4112
        %v4121 = vpack.c.bf16 %v4120, %v4119
        %v4138 = vunpack.c.l.b16 %v2980
        %v4139 = vunpack.c.l.b16 %v2981
        %v4140 = vunpack.c.l.b16 %v2982
        %v4141 = vunpack.c.l.b16 %v2983
        %v4142 = vunpack.c.l.b16 %v2984
        %v4143 = vunpack.c.l.b16 %v2985
        %v4144 = vunpack.c.l.b16 %v2986
        %v4145 = vunpack.c.l.b16 %v2987
        %v4146 = vunpack.c.l.b16 %v2988
        %v4147 = vunpack.c.l.b16 %v2989
        %v4148 = vunpack.c.l.b16 %v2990
        %v4149 = vunpack.c.l.b16 %v2991
        %v4150 = vunpack.c.l.b16 %v2992
        %v4151 = vunpack.c.l.b16 %v2993
        %v4152 = vunpack.c.l.b16 %v2994
        %v4153 = vunpack.c.l.b16 %v2995
        %v4154 = vpack.c.b16 %v4139, %v4138
        %v4155 = vpack.c.b16 %v4141, %v4140
        %v4156 = vpack.c.b16 %v4143, %v4142
        %v4157 = vpack.c.b16 %v4145, %v4144
        %v4158 = vpack.c.b16 %v4147, %v4146
        %v4159 = vpack.c.b16 %v4149, %v4148
        %v4160 = vpack.c.b16 %v4151, %v4150
        %v4161 = vpack.c.b16 %v4153, %v4152
        %4170 = vmatprep.subr.bf16.mxu0 0
        %4171 = vmatpush1.bf16.msra.mxu0 %v4154
        %4172 = vmatprep.subr.bf16.mxu0 0
        %4173 = vmatpush1.bf16.msra.mxu0 %v4155
        %4174 = vmatprep.subr.bf16.mxu0 0
        %4175 = vmatpush1.bf16.msra.mxu0 %v4156
        %4176 = vmatprep.subr.bf16.mxu0 0
        %4177 = vmatpush1.bf16.msra.mxu0 %v4157
        %4178 = vmatprep.subr.bf16.mxu0 0
        %4179 = vmatpush1.bf16.msra.mxu0 %v4158
        %4180 = vmatprep.subr.bf16.mxu0 0
        %4181 = vmatpush1.bf16.msra.mxu0 %v4159
        %4182 = vmatprep.subr.bf16.mxu0 0
        %4183 = vmatpush1.bf16.msra.mxu0 %v4160
        %4184 = vmatprep.subr.bf16.mxu0 0
        %4185 = vmatpush1.bf16.msra.mxu0 %v4161
        %4186 = vmatprep.subr.bf16.mxu0 0
        %4187 = vmatpush1.bf16.msra.mxu0 0
        %4188 = vmatprep.subr.bf16.mxu0 0
        %4189 = vmatpush1.bf16.msra.mxu0 0
        %4190 = vmatprep.subr.bf16.mxu0 0
        %4191 = vmatpush1.bf16.msra.mxu0 0
        %4192 = vmatprep.subr.bf16.mxu0 0
        %4193 = vmatpush1.bf16.msra.mxu0 0
        %4194 = vmatprep.subr.bf16.mxu0 0
        %4195 = vmatpush1.bf16.msra.mxu0 0
        %4196 = vmatprep.subr.bf16.mxu0 0
        %4197 = vmatpush1.bf16.msra.mxu0 0
        %4198 = vmatprep.subr.bf16.mxu0 0
        %4199 = vmatpush1.bf16.msra.mxu0 0
        %4200 = vmatprep.subr.bf16.mxu0 0
        %4201 = vmatpush1.bf16.msra.mxu0 0
        %4202 = vmatprep.mubr.bf16.mxu0 0
        %4203 = vmatmul.mubr.bf16.gmra.mrb[0].mxu0 %v4121
        %v4204 = vpop.f32.mrb[0].mxu0
        %v4205 = vadd.f32 0.0, %v4204
        %v4206 = vpop.f32.mrb[0].mxu0
        %v4207 = vpop.f32.mrb[0].mxu0
        %v4208 = vadd.f32 0.0, %v4207
        %v4209 = vpop.f32.mrb[0].mxu0
        %4210 = vdwg.mxu0
        %4211 = vst [vmem:[%s287] sm:$0xff] %v4205
        %4212 = vst [vmem:[%s287 + $0x8] sm:$0xff] %v4208
        %s4213 = sand.u32 %s142, 1
        %s4214 = scalar_lea.sflag [#allocation4], %s4213
        %s4215 = sand.u32 %s142, 1
        %s4216 = smul.addr %s4215, 16
        %s4217 = scalar_lea.vmem [#allocation10], %s4216
        // Predicated region
        $region57: #{tpu_custom_call.1} parent=39 // pred_check
          %p4218 = pneg %p152
        $region58: #{tpu_custom_call.1} parent=39 // pred_check_branch
          %4220 = sbr.rel (%p4218) target = $region60
        $region59: #{tpu_custom_call.1} parent=39 // pred_region
          %s4221 = smul.u32 2, %s24
          %s4223 = ssub.s32 256, 256
          %4224 = vsyncadd %s4214, %s4223
          %s4225 = smul.addr %s4221, 128
          %s4226 = scalar_lea.hbm %s5, %s4225
          %s4227 = sshll.u32 %s4217, 4
          %s4228 = int_to_ptr.vmem [resolvable:$true] %s4227
          %4233 = dma.vmem_to_hbm [thread:$0]  %s4228, 256, %s4226, %s4214, 128, 128, 8
        $region60: #{tpu_custom_call.1} parent=39 // pred_fallthru
          _
      $region40: #{tpu_custom_call.1} parent=5 // pred_fallthru
        _
      %p4234 = scmp.le.s32.totalorder 2, %s19
      // Predicated region
      $region61: #{tpu_custom_call.1} parent=5 // pred_check
        %p4235 = pneg %p4234
      $region62: #{tpu_custom_call.1} parent=5 // pred_check_branch
        %4237 = sbr.rel (%p4235) target = $region64
      $region63: #{tpu_custom_call.1} parent=5 // pred_region
        %s4238 = ssub.s32 %s19, 2
        // Predicated region
        $region65: #{tpu_custom_call.1} parent=63 // pred_check
          %p4239 = pneg %p158
        $region66: #{tpu_custom_call.1} parent=63 // pred_check_branch
          %4241 = sbr.rel (%p4239) target = $region68
        $region67: #{tpu_custom_call.1} parent=63 // pred_region
          %s4242 = sand.u32 %s143, 1
          %s4243 = scalar_lea.sflag [#allocation4], %s4242
          %s4244 = sand.u32 %s143, 1
          %s4245 = smul.addr %s4244, 16
          %s4246 = scalar_lea.vmem [#allocation10], %s4245
          %4247 = dma.done %s4243, 256
        $region68: #{tpu_custom_call.1} parent=63 // pred_fallthru
          _
      $region64: #{tpu_custom_call.1} parent=5 // pred_fallthru
        _
    $region6: #{tpu_custom_call.1} parent=1 // loop_footer
      %s23 = sadd.s32 1, %s19
    $region7: #{tpu_custom_call.1} parent=1 // loop_footer_branch
      %18 = sbr.rel target = $region3
    $region8: #{tpu_custom_call.1} parent=1 // loop_exit
      _
    %4248 = vsyncpa [#allocation3], 1
    %s4249 = scalar_lea.sflag [#allocation3], 1
    %4250 = vsyncpa %s4249, 1
    %4251 = vsyncpa [#allocation6], 1
    %4252 = vsyncpa [#allocation9], 1
    %4253 = vsyncpa [#allocation4], 1
    %s4254 = scalar_lea.sflag [#allocation4], 1
    %4255 = vsyncpa %s4254, 1

</llo_original>
